<compile_context>
chip_gen: v5e
topology: v5e:2x2
jax: 0.10.0
libtpu: 0.0.40
codegen_flags: <defaults>
</compile_context>

<pallas_src>
import functools
import math

import jax
import jax.numpy as jnp
from jax.experimental import pallas as pl
from jax.experimental.pallas import tpu as pltpu


_PAR1 = pltpu.CompilerParams(dimension_semantics=("parallel",))


# ------------------------------------------------------------------------------ kernels

def _sea_block_kernel(x_ref, s0_ref, t0_ref, scc_ref, shc_ref, s2_ref, t2_ref, ib_ref,
                      wqkv_ref, bqkv_ref, wo_ref, bo_ref,
                      wd_ref, bd_ref,
                      cwqkv_ref, cbqkv_ref, cwo_ref, cbo_ref,
                      wup_ref, bup_ref,
                      w1_ref, b1_ref, w2_ref, b2_ref,
                      wp_ref, bp_ref,
                      o_ref, *, V, n_heads, D, dd, T):
    """One full SEA block for one batch element (all V variables resident in VMEM)."""
    f32, bf16 = jnp.float32, jnp.bfloat16
    Dh = D // n_heads
    dh = dd // n_heads
    P = max(V - 1, 1)

    # Additive causal mask, built once and shared by self- and cross-attention.
    # TODO(synk): reference MaskedMultiHeadCrossAttention is assumed to use the same
    # causal (col<=row) mask as the self-attention path.
    row = jax.lax.broadcasted_iota(jnp.int32, (T, T), 0)
    col = jax.lax.broadcasted_iota(jnp.int32, (T, T), 1)
    causal = jnp.where(col <= row, 0.0, -1e30).astype(f32)

    def layer_norm(z, scale, shift):                     # scale/shift: (1, d) f32, eps=1e-5
        mean = jnp.mean(z, axis=-1, keepdims=True)
        var = jnp.mean(jnp.square(z - mean), axis=-1, keepdims=True)
        return (z - mean) * jax.lax.rsqrt(var + 1e-5) * scale + shift

    def attend(q_all, k_all, v_all, hd):
        """Per-head causal softmax attention; per-head outputs lane-concatenated back."""
        scale = 1.0 / math.sqrt(hd)
        outs = []
        for hh in range(n_heads):
            sl = slice(hh * hd, (hh + 1) * hd)
            qh = (q_all[:, sl] * scale).astype(bf16)
            kh = k_all[:, sl].astype(bf16)
            vh = v_all[:, sl].astype(bf16)
            s = jnp.einsum('td,sd->ts', qh, kh, preferred_element_type=f32) + causal
            m = jnp.max(s, axis=-1, keepdims=True)
            p = jnp.exp(s - m)
            p = p * pl.reciprocal(jnp.sum(p, axis=-1, keepdims=True), approx=True)
            outs.append(jnp.einsum('ts,sd->td', p.astype(bf16), vh,
                                   preferred_element_type=f32))
        return jnp.concatenate(outs, axis=-1)

    x_all = x_ref[0]                                     # (T, V*D) f32 — single load
    s0v, t0v = s0_ref[0], t0_ref[0]                      # (V, D)  effective AdaLN scale/shift
    sccv, shcv = scc_ref[0], shc_ref[0]                  # (V, dd)
    s2v, t2v = s2_ref[0], t2_ref[0]                      # (V, D)
    ib = ib_ref[0]                                       # (1, D)  Fourier info embedding

    # --- phase 1: AdaLN -> wide QKV -> causal MHA -> out proj -> residual --------------
    xs = []
    for v in range(V):
        xv = x_all[:, v * D:(v + 1) * D]                 # (T, D) f32
        h = layer_norm(xv, s0v[v:v + 1], t0v[v:v + 1]).astype(bf16)
        qkv = jnp.dot(h, wqkv_ref[v].astype(bf16),
                      preferred_element_type=f32) + bqkv_ref[v]          # (T, 3D)
        att = attend(qkv[:, :D], qkv[:, D:2 * D], qkv[:, 2 * D:], Dh)
        att = jnp.dot(att.astype(bf16), wo_ref[v].astype(bf16),
                      preferred_element_type=f32) + bo_ref[v]
        xs.append(xv + att)

    # --- phase 2: SEA cross exchange ----------------------------------------------------
    # cross_down + AdaLN are hoisted out of the (i, j) pair loop (identical per pair).
    normed = []
    for v in range(V):
        dn = jnp.dot(xs[v].astype(bf16), wd_ref[v].astype(bf16),
                     preferred_element_type=f32) + bd_ref[v]             # (T, dd)
        normed.append(layer_norm(dn, sccv[v:v + 1], shcv[v:v + 1]))

    x2 = []
    for i in range(V):
        acc = jnp.zeros((T, D), f32)
        qn = normed[i].astype(bf16)
        others = [j for j in range(V) if j != i]
        for jj, j in enumerate(others):
            p_idx = i * P + jj
            kvn = normed[j].astype(bf16)
            cw = cwqkv_ref[p_idx]                                        # (dd, 3*dd)
            cb = cbqkv_ref[p_idx]                                        # (1, 3*dd)
            q_all = jnp.dot(qn, cw[:, :dd].astype(bf16),
                            preferred_element_type=f32) + cb[:, :dd]
            kv = jnp.dot(kvn, cw[:, dd:].astype(bf16),
                         preferred_element_type=f32) + cb[:, dd:]
            att = attend(q_all, kv[:, :dd], kv[:, dd:], dh)
            att = jnp.dot(att.astype(bf16), cwo_ref[p_idx].astype(bf16),
                          preferred_element_type=f32) + cbo_ref[p_idx]
            # TODO(synk): reference nn.GELU() is exact erf; tanh approximation used on TPU.
            g = jax.nn.gelu(att, approximate=True)
            acc = acc + jnp.dot(g.astype(bf16), wup_ref[i].astype(bf16),
                                preferred_element_type=f32) + bup_ref[i]
        # add_info_after_cross=True, ib_addition_mode='add' (Fourier, broadcast over T)
        x2.append(xs[i] + acc + ib)

    # --- phase 3: AdaLN -> MLP (fc1 + GELU + fc2) -> residual -> output projection ------
    outs = []
    for v in range(V):
        h = layer_norm(x2[v], s2v[v:v + 1], t2v[v:v + 1]).astype(bf16)
        h1 = jnp.dot(h, w1_ref[v].astype(bf16),
                     preferred_element_type=f32) + b1_ref[v]
        h1 = jax.nn.gelu(h1, approximate=True)
        h2 = jnp.dot(h1.astype(bf16), w2_ref[v].astype(bf16),
                     preferred_element_type=f32) + b2_ref[v]
        y = x2[v] + h2
        outs.append(jnp.dot(y.astype(bf16), wp_ref[v].astype(bf16),
                            preferred_element_type=f32) + bp_ref[v])

    # single lane-dense (T, V*D) store
    o_ref[0] = jnp.concatenate(outs, axis=-1)


def _final_adaln_kernel(x_ref, s_ref, t_ref, o_ref, *, V, D):
    """Final per-variable AdaLN (affine folded into precomputed scale/shift)."""
    x_all = x_ref[0]                                     # (T, V*D)
    s_all, t_all = s_ref[0], t_ref[0]                    # (V, D)
    outs = []
    for v in range(V):
        xv = x_all[:, v * D:(v + 1) * D]
        mean = jnp.mean(xv, axis=-1, keepdims=True)
        var = jnp.mean(jnp.square(xv - mean), axis=-1, keepdims=True)
        xn = (xv - mean) * jax.lax.rsqrt(var + 1e-5)
        outs.append(xn * s_all[v:v + 1] + t_all[v:v + 1])
    o_ref[0] = jnp.concatenate(outs, axis=-1)


# ------------------------------------------------------------------------------ wrappers

def sea_block_call(x, cond_l, w, cfg):
    """x: (B, T, V*D) f32 -> (B, T, V*D) f32. One fused pallas_call per SEA block."""
    B, T, VD = x.shape
    V, D, H = cfg['num_variables'], cfg['embed_dim'], cfg['n_heads']
    dd = D // cfg['down_proj']
    s0, t0, scc, shc, s2, t2, ib = cond_l

    def per_b(a):
        shp = a.shape
        return pl.BlockSpec((1,) + shp[1:], lambda b: (b,) + (0,) * (len(shp) - 1))

    def full(a):
        shp = a.shape
        return pl.BlockSpec(shp, lambda b: (0,) * len(shp))

    operands = [x, s0, t0, scc, shc, s2, t2, ib,
                w['wqkv'], w['bqkv'], w['wo'], w['bo'],
                w['wdown'], w['bdown'],
                w['cwqkv'], w['cbqkv'], w['cwo'], w['cbo'],
                w['wup'], w['bup'],
                w['w1'], w['b1'], w['w2'], w['b2'],
                w['wproj'], w['bproj']]
    in_specs = [per_b(a) for a in operands[:8]] + [full(a) for a in operands[8:]]

    kern = functools.partial(_sea_block_kernel, V=V, n_heads=H, D=D, dd=dd, T=T)
    return pl.pallas_call(
        kern,
        out_shape=jax.ShapeDtypeStruct((B, T, VD), jnp.float32),
        grid=(B,),
        in_specs=in_specs,
        out_specs=pl.BlockSpec((1, T, VD), lambda b: (b, 0, 0)),
        compiler_params=_PAR1,
    )(*operands)


def final_adaln_call(x, s, t, cfg):
    B, T, VD = x.shape
    V, D = cfg['num_variables'], cfg['embed_dim']
    kern = functools.partial(_final_adaln_kernel, V=V, D=D)
    return pl.pallas_call(
        kern,
        out_shape=jax.ShapeDtypeStruct((B, T, VD), jnp.float32),
        grid=(B,),
        in_specs=[pl.BlockSpec((1, T, VD), lambda b: (b, 0, 0)),
                  pl.BlockSpec((1, V, D), lambda b: (b, 0, 0)),
                  pl.BlockSpec((1, V, D), lambda b: (b, 0, 0))],
        out_specs=pl.BlockSpec((1, T, VD), lambda b: (b, 0, 0)),
        compiler_params=_PAR1,
    )(x, s, t)


# ----------------------------------------------------------------------- parameter setup

class KeyGen:
    def __init__(self, seed=0):
        self.key = jax.random.PRNGKey(seed)

    def __call__(self):
        self.key, sub = jax.random.split(self.key)
        return sub


def init_temporal_model(kg, cfg):
    L, V, D, H = cfg['num_layers'], cfg['num_variables'], cfg['embed_dim'], cfg['n_heads']
    dd = D // cfg['down_proj']
    Hd = cfg['scale_ratio'] * D
    ib = cfg['ib_num']
    P = max(V - 1, 1)

    def w(shape):   # _init_weights: Linear weights ~ N(0, 0.02), biases zero
        return 0.02 * jax.random.normal(kg(), shape, jnp.float32)

    def z(shape):
        return jnp.zeros(shape, jnp.float32)

    def block():
        return {
            # self-attention: flattened head-major weights, lane-dense trailing dims
            'wqkv': w((V, D, 3 * D)), 'bqkv': z((V, 1, 3 * D)),
            'wo': w((V, D, D)), 'bo': z((V, 1, D)),
            # SEA cross-exchange
            'wdown': w((V, D, dd)), 'bdown': z((V, 1, dd)),
            'cwqkv': w((V * P, dd, 3 * dd)), 'cbqkv': z((V * P, 1, 3 * dd)),
            'cwo': w((V * P, dd, dd)), 'cbo': z((V * P, 1, dd)),
            'wup': w((V, dd, D)), 'bup': z((V, 1, D)),
            # MLP + output projection
            'w1': w((V, D, Hd)), 'b1': z((V, 1, Hd)),
            'w2': w((V, Hd, D)), 'b2': z((V, 1, D)),
            'wproj': w((V, D, D)), 'bproj': z((V, 1, D)),
        }

    # AdaLN affine (weight=1, bias=0) + modulation Linear(ib_num -> 2*dim), stacked over L.
    ada = {
        'ln0_mw': w((L, V, ib, 2 * D)), 'ln0_mb': z((L, V, 2 * D)),
        'ln0_w': jnp.ones((L, V, D), jnp.float32), 'ln0_b': z((L, V, D)),
        'lnc_mw': w((L, V, ib, 2 * dd)), 'lnc_mb': z((L, V, 2 * dd)),
        'lnc_w': jnp.ones((L, V, dd), jnp.float32), 'lnc_b': z((L, V, dd)),
        'ln2_mw': w((L, V, ib, 2 * D)), 'ln2_mb': z((L, V, 2 * D)),
        'ln2_w': jnp.ones((L, V, D), jnp.float32), 'ln2_b': z((L, V, D)),
        # GaussianFourierProjection(ib_num, D//2): fixed random projection per layer
        'gfp_W': jax.random.normal(kg(), (L, ib, D // 2), jnp.float32),
        # final per-variable AdaLN
        'lnf_mw': w((V, ib, 2 * D)), 'lnf_mb': z((V, 2 * D)),
        'lnf_w': jnp.ones((V, D), jnp.float32), 'lnf_b': z((V, D)),
    }
    return {'blocks': [block() for _ in range(L)], 'ada': ada}


# ------------------------------------------------------------------------------ glue math

def precompute_conditioning(ada, x_add):
    """All AdaLN effective scale/shift pairs and Fourier info embeddings, all layers,
    computed with a few batched einsums (depends only on x_add)."""
    cond = x_add[:, 0, :]                                           # (B, ib_num)

    def eff(mw, mb, wgt, bias):
        # mw (L,V,ib,2d), mb (L,V,2d), wgt/bias (L,V,d) -> scale/shift (L,B,V,d)
        mod = jnp.einsum('bi,lvio->lbvo', cond, mw) + mb[:, None]
        d = mod.shape[-1] // 2
        sc, sh = mod[..., :d], mod[..., d:]
        wq, bq = wgt[:, None], bias[:, None]
        # fold LN affine into the modulation: (xn*w+b)*(1+sc)+sh = xn*seff + teff
        return wq * (1.0 + sc), bq * (1.0 + sc) + sh

    S0, T0 = eff(ada['ln0_mw'], ada['ln0_mb'], ada['ln0_w'], ada['ln0_b'])
    SC, TC = eff(ada['lnc_mw'], ada['lnc_mb'], ada['lnc_w'], ada['lnc_b'])
    S2, T2 = eff(ada['ln2_mw'], ada['ln2_mb'], ada['ln2_w'], ada['ln2_b'])
    SF, TF = eff(ada['lnf_mw'][None], ada['lnf_mb'][None],
                 ada['lnf_w'][None], ada['lnf_b'][None])
    SF, TF = SF[0], TF[0]                                           # (B, V, D)

    proj = jnp.einsum('bti,lih->lbth', x_add, ada['gfp_W']) * (2.0 * jnp.pi)
    IB = jnp.concatenate([jnp.sin(proj), jnp.cos(proj)], axis=-1)   # (L, B, 1, D)
    return (S0, T0, SC, TC, S2, T2, IB), (SF, TF)


# ------------------------------------------------------------------------------- forward

def temporal_model_forward(params, x, x_add, cfg):
    B, T, V, D = x.shape
    assert V == cfg['num_variables'] and D == cfg['embed_dim']
    xf = x.reshape(B, T, V * D)                                     # lane-dense layer state
    (S0, T0, SC, TC, S2, T2, IB), (SF, TF) = precompute_conditioning(params['ada'], x_add)
    for l, w in enumerate(params['blocks']):
        cond_l = (S0[l], T0[l], SC[l], TC[l], S2[l], T2[l], IB[l])
        xf = sea_block_call(xf, cond_l, w, cfg)
    xf = final_adaln_call(xf, SF, TF, cfg)
    return xf.reshape(B, T, V, D)


# ----------------------------------------------------------------------------------- main

if __name__ == "__main__":
    cfg = dict(num_layers=1, embed_dim=32, n_heads=4, max_len=8, scale_ratio=2,
               src_len=8, num_variables=2, down_proj=2, ib_num=1)

    kg = KeyGen(seed=0)
    params = init_temporal_model(kg, cfg)

    key = jax.random.PRNGKey(0)
    kx, ka = jax.random.split(key)
    B, T, V, D = 2, cfg['max_len'], cfg['num_variables'], cfg['embed_dim']
    x = jax.random.normal(kx, (B, T, V, D), jnp.float32)
    x_additional_info = jax.random.normal(ka, (B, 1, cfg['ib_num']), jnp.float32)

    fwd = jax.jit(functools.partial(temporal_model_forward, cfg=cfg))
    out = jax.block_until_ready(fwd(params, x, x_additional_info))

    assert out.shape == (B, T, V, D), out.shape
    assert bool(jnp.all(jnp.isfinite(out)))
    print("KERNEL_OK")
</pallas_src>

<mosaic_0001>
module attributes {stable_mosaic.version = 11 : i64} {
  func.func @_final_adaln_kernel(%arg0: i32, %arg1: memref<1x8x64xf32, #tpu.memory_space<vmem>>, %arg2: memref<1x2x32xf32, #tpu.memory_space<vmem>>, %arg3: memref<1x2x32xf32, #tpu.memory_space<vmem>>, %arg4: memref<1x8x64xf32, #tpu.memory_space<vmem>>) attributes {dimension_semantics = [#tpu.dimension_semantics<parallel>], iteration_bounds = array<i64: 2>, scalar_prefetch = 0 : i64, scratch_operands = 0 : i64, tpu.core_type = #tpu.core_type<tc>, window_params = [{transform_indices = @transform_0, window_bounds = array<i64: 1, 8, 64>}, {transform_indices = @transform_1, window_bounds = array<i64: 1, 2, 32>}, {transform_indices = @transform_2, window_bounds = array<i64: 1, 2, 32>}, {transform_indices = @transform_3, window_bounds = array<i64: 1, 8, 64>}]} {
    %c0 = arith.constant 0 : index
    %c0_0 = arith.constant 0 : index
    %c0_1 = arith.constant 0 : index
    %0 = vector.load %arg1[%c0, %c0_0, %c0_1] : memref<1x8x64xf32, #tpu.memory_space<vmem>>, vector<1x8x64xf32>
    %1 = vector.shape_cast %0 : vector<1x8x64xf32> to vector<8x64xf32>
    %c0_2 = arith.constant 0 : index
    %c0_3 = arith.constant 0 : index
    %c0_4 = arith.constant 0 : index
    %2 = vector.load %arg2[%c0_2, %c0_3, %c0_4] : memref<1x2x32xf32, #tpu.memory_space<vmem>>, vector<1x2x32xf32>
    %3 = vector.shape_cast %2 : vector<1x2x32xf32> to vector<2x32xf32>
    %c0_5 = arith.constant 0 : index
    %c0_6 = arith.constant 0 : index
    %c0_7 = arith.constant 0 : index
    %4 = vector.load %arg3[%c0_5, %c0_6, %c0_7] : memref<1x2x32xf32, #tpu.memory_space<vmem>>, vector<1x2x32xf32>
    %5 = vector.shape_cast %4 : vector<1x2x32xf32> to vector<2x32xf32>
    %6 = vector.extract_strided_slice %1 {offsets = [0, 0], sizes = [8, 32], strides = [1, 1]} : vector<8x64xf32> to vector<8x32xf32>
    %cst = arith.constant dense<0.000000e+00> : vector<8xf32>
    %7 = vector.multi_reduction <add>, %6, %cst [1] : vector<8x32xf32> to vector<8xf32>
    %8 = vector.shape_cast %7 : vector<8xf32> to vector<8x1xf32>
    %cst_8 = arith.constant 3.200000e+01 : f32
    %9 = vector.broadcast %cst_8 : f32 to vector<8x1xf32>
    %10 = arith.divf %8, %9 : vector<8x1xf32>
    %11 = vector.broadcast %10 : vector<8x1xf32> to vector<8x32xf32>
    %12 = arith.subf %6, %11 : vector<8x32xf32>
    %13 = arith.mulf %12, %12 : vector<8x32xf32>
    %cst_9 = arith.constant dense<0.000000e+00> : vector<8xf32>
    %14 = vector.multi_reduction <add>, %13, %cst_9 [1] : vector<8x32xf32> to vector<8xf32>
    %15 = vector.shape_cast %14 : vector<8xf32> to vector<8x1xf32>
    %cst_10 = arith.constant 3.200000e+01 : f32
    %16 = vector.broadcast %cst_10 : f32 to vector<8x1xf32>
    %17 = arith.divf %15, %16 : vector<8x1xf32>
    %18 = vector.broadcast %10 : vector<8x1xf32> to vector<8x32xf32>
    %19 = arith.subf %6, %18 : vector<8x32xf32>
    %cst_11 = arith.constant 9.99999974E-6 : f32
    %20 = vector.broadcast %cst_11 : f32 to vector<8x1xf32>
    %21 = arith.addf %17, %20 : vector<8x1xf32>
    %22 = math.rsqrt %21 : vector<8x1xf32>
    %23 = vector.broadcast %22 : vector<8x1xf32> to vector<8x32xf32>
    %24 = arith.mulf %19, %23 : vector<8x32xf32>
    %25 = vector.extract_strided_slice %3 {offsets = [0, 0], sizes = [1, 32], strides = [1, 1]} : vector<2x32xf32> to vector<1x32xf32>
    %26 = vector.broadcast %25 : vector<1x32xf32> to vector<8x32xf32>
    %27 = arith.mulf %24, %26 : vector<8x32xf32>
    %28 = vector.extract_strided_slice %5 {offsets = [0, 0], sizes = [1, 32], strides = [1, 1]} : vector<2x32xf32> to vector<1x32xf32>
    %29 = vector.broadcast %28 : vector<1x32xf32> to vector<8x32xf32>
    %30 = arith.addf %27, %29 : vector<8x32xf32>
    %31 = vector.extract_strided_slice %1 {offsets = [0, 32], sizes = [8, 32], strides = [1, 1]} : vector<8x64xf32> to vector<8x32xf32>
    %cst_12 = arith.constant dense<0.000000e+00> : vector<8xf32>
    %32 = vector.multi_reduction <add>, %31, %cst_12 [1] : vector<8x32xf32> to vector<8xf32>
    %33 = vector.shape_cast %32 : vector<8xf32> to vector<8x1xf32>
    %cst_13 = arith.constant 3.200000e+01 : f32
    %34 = vector.broadcast %cst_13 : f32 to vector<8x1xf32>
    %35 = arith.divf %33, %34 : vector<8x1xf32>
    %36 = vector.broadcast %35 : vector<8x1xf32> to vector<8x32xf32>
    %37 = arith.subf %31, %36 : vector<8x32xf32>
    %38 = arith.mulf %37, %37 : vector<8x32xf32>
    %cst_14 = arith.constant dense<0.000000e+00> : vector<8xf32>
    %39 = vector.multi_reduction <add>, %38, %cst_14 [1] : vector<8x32xf32> to vector<8xf32>
    %40 = vector.shape_cast %39 : vector<8xf32> to vector<8x1xf32>
    %cst_15 = arith.constant 3.200000e+01 : f32
    %41 = vector.broadcast %cst_15 : f32 to vector<8x1xf32>
    %42 = arith.divf %40, %41 : vector<8x1xf32>
    %43 = vector.broadcast %35 : vector<8x1xf32> to vector<8x32xf32>
    %44 = arith.subf %31, %43 : vector<8x32xf32>
    %cst_16 = arith.constant 9.99999974E-6 : f32
    %45 = vector.broadcast %cst_16 : f32 to vector<8x1xf32>
    %46 = arith.addf %42, %45 : vector<8x1xf32>
    %47 = math.rsqrt %46 : vector<8x1xf32>
    %48 = vector.broadcast %47 : vector<8x1xf32> to vector<8x32xf32>
    %49 = arith.mulf %44, %48 : vector<8x32xf32>
    %50 = vector.extract_strided_slice %3 {offsets = [1, 0], sizes = [1, 32], strides = [1, 1]} : vector<2x32xf32> to vector<1x32xf32>
    %51 = vector.broadcast %50 : vector<1x32xf32> to vector<8x32xf32>
    %52 = arith.mulf %49, %51 : vector<8x32xf32>
    %53 = vector.extract_strided_slice %5 {offsets = [1, 0], sizes = [1, 32], strides = [1, 1]} : vector<2x32xf32> to vector<1x32xf32>
    %54 = vector.broadcast %53 : vector<1x32xf32> to vector<8x32xf32>
    %55 = arith.addf %52, %54 : vector<8x32xf32>
    %56 = tpu.concatenate %30, %55 in 1 : vector<8x32xf32>, vector<8x32xf32> -> vector<8x64xf32>
    %c0_17 = arith.constant 0 : index
    %c0_18 = arith.constant 0 : index
    %c0_19 = arith.constant 0 : index
    %57 = vector.load %arg4[%c0_17, %c0_18, %c0_19] : memref<1x8x64xf32, #tpu.memory_space<vmem>>, vector<1x8x64xf32>
    %58 = vector.shape_cast %57 : vector<1x8x64xf32> to vector<8x64xf32>
    %59 = vector.shape_cast %56 : vector<8x64xf32> to vector<1x8x64xf32>
    tpu.vector_store %arg4[%c0_17, %c0_18, %c0_19], %59 {strides = array<i32>} : memref<1x8x64xf32, #tpu.memory_space<vmem>>, vector<1x8x64xf32>,
    return
  }
  func.func @transform_0(%arg0: i32) -> (i32, i32, i32) {
    %c0_i32 = arith.constant 0 : i32
    %c0_i32_0 = arith.constant 0 : i32
    %c0_i32_1 = arith.constant 0 : i32
    return %arg0, %c0_i32, %c0_i32_0 : i32, i32, i32
  }
  func.func @transform_1(%arg0: i32) -> (i32, i32, i32) {
    %c0_i32 = arith.constant 0 : i32
    %c0_i32_0 = arith.constant 0 : i32
    %c0_i32_1 = arith.constant 0 : i32
    return %arg0, %c0_i32, %c0_i32_0 : i32, i32, i32
  }
  func.func @transform_2(%arg0: i32) -> (i32, i32, i32) {
    %c0_i32 = arith.constant 0 : i32
    %c0_i32_0 = arith.constant 0 : i32
    %c0_i32_1 = arith.constant 0 : i32
    return %arg0, %c0_i32, %c0_i32_0 : i32, i32, i32
  }
  func.func @transform_3(%arg0: i32) -> (i32, i32, i32) {
    %c0_i32 = arith.constant 0 : i32
    %c0_i32_0 = arith.constant 0 : i32
    %c0_i32_1 = arith.constant 0 : i32
    return %arg0, %c0_i32, %c0_i32_0 : i32, i32, i32
  }
}

module attributes {stable_mosaic.version = 11 : i64} {
  func.func @_sea_block_kernel(%arg0: i32, %arg1: memref<1x8x64xf32, #tpu.memory_space<vmem>>, %arg2: memref<1x2x32xf32, #tpu.memory_space<vmem>>, %arg3: memref<1x2x32xf32, #tpu.memory_space<vmem>>, %arg4: memref<1x2x16xf32, #tpu.memory_space<vmem>>, %arg5: memref<1x2x16xf32, #tpu.memory_space<vmem>>, %arg6: memref<1x2x32xf32, #tpu.memory_space<vmem>>, %arg7: memref<1x2x32xf32, #tpu.memory_space<vmem>>, %arg8: memref<1x1x32xf32, #tpu.memory_space<vmem>>, %arg9: memref<2x32x96xf32, #tpu.memory_space<vmem>>, %arg10: memref<2x1x96xf32, #tpu.memory_space<vmem>>, %arg11: memref<2x32x32xf32, #tpu.memory_space<vmem>>, %arg12: memref<2x1x32xf32, #tpu.memory_space<vmem>>, %arg13: memref<2x32x16xf32, #tpu.memory_space<vmem>>, %arg14: memref<2x1x16xf32, #tpu.memory_space<vmem>>, %arg15: memref<2x16x48xf32, #tpu.memory_space<vmem>>, %arg16: memref<2x1x48xf32, #tpu.memory_space<vmem>>, %arg17: memref<2x16x16xf32, #tpu.memory_space<vmem>>, %arg18: memref<2x1x16xf32, #tpu.memory_space<vmem>>, %arg19: memref<2x16x32xf32, #tpu.memory_space<vmem>>, %arg20: memref<2x1x32xf32, #tpu.memory_space<vmem>>, %arg21: memref<2x32x64xf32, #tpu.memory_space<vmem>>, %arg22: memref<2x1x64xf32, #tpu.memory_space<vmem>>, %arg23: memref<2x64x32xf32, #tpu.memory_space<vmem>>, %arg24: memref<2x1x32xf32, #tpu.memory_space<vmem>>, %arg25: memref<2x32x32xf32, #tpu.memory_space<vmem>>, %arg26: memref<2x1x32xf32, #tpu.memory_space<vmem>>, %arg27: memref<1x8x64xf32, #tpu.memory_space<vmem>>) attributes {dimension_semantics = [#tpu.dimension_semantics<parallel>], iteration_bounds = array<i64: 2>, scalar_prefetch = 0 : i64, scratch_operands = 0 : i64, tpu.core_type = #tpu.core_type<tc>, window_params = [{transform_indices = @transform_0, window_bounds = array<i64: 1, 8, 64>}, {transform_indices = @transform_1, window_bounds = array<i64: 1, 2, 32>}, {transform_indices = @transform_2, window_bounds = array<i64: 1, 2, 32>}, {transform_indices = @transform_3, window_bounds = array<i64: 1, 2, 16>}, {transform_indices = @transform_4, window_bounds = array<i64: 1, 2, 16>}, {transform_indices = @transform_5, window_bounds = array<i64: 1, 2, 32>}, {transform_indices = @transform_6, window_bounds = array<i64: 1, 2, 32>}, {transform_indices = @transform_7, window_bounds = array<i64: 1, 1, 32>}, {pipeline_mode = #tpu.pipeline_mode<synchronous>, transform_indices = @transform_8, window_bounds = array<i64: 2, 32, 96>}, {pipeline_mode = #tpu.pipeline_mode<synchronous>, transform_indices = @transform_9, window_bounds = array<i64: 2, 1, 96>}, {pipeline_mode = #tpu.pipeline_mode<synchronous>, transform_indices = @transform_10, window_bounds = array<i64: 2, 32, 32>}, {pipeline_mode = #tpu.pipeline_mode<synchronous>, transform_indices = @transform_11, window_bounds = array<i64: 2, 1, 32>}, {pipeline_mode = #tpu.pipeline_mode<synchronous>, transform_indices = @transform_12, window_bounds = array<i64: 2, 32, 16>}, {pipeline_mode = #tpu.pipeline_mode<synchronous>, transform_indices = @transform_13, window_bounds = array<i64: 2, 1, 16>}, {pipeline_mode = #tpu.pipeline_mode<synchronous>, transform_indices = @transform_14, window_bounds = array<i64: 2, 16, 48>}, {pipeline_mode = #tpu.pipeline_mode<synchronous>, transform_indices = @transform_15, window_bounds = array<i64: 2, 1, 48>}, {pipeline_mode = #tpu.pipeline_mode<synchronous>, transform_indices = @transform_16, window_bounds = array<i64: 2, 16, 16>}, {pipeline_mode = #tpu.pipeline_mode<synchronous>, transform_indices = @transform_17, window_bounds = array<i64: 2, 1, 16>}, {pipeline_mode = #tpu.pipeline_mode<synchronous>, transform_indices = @transform_18, window_bounds = array<i64: 2, 16, 32>}, {pipeline_mode = #tpu.pipeline_mode<synchronous>, transform_indices = @transform_19, window_bounds = array<i64: 2, 1, 32>}, {pipeline_mode = #tpu.pipeline_mode<synchronous>, transform_indices = @transform_20, window_bounds = array<i64: 2, 32, 64>}, {pipeline_mode = #tpu.pipeline_mode<synchronous>, transform_indices = @transform_21, window_bounds = array<i64: 2, 1, 64>}, {pipeline_mode = #tpu.pipeline_mode<synchronous>, transform_indices = @transform_22, window_bounds = array<i64: 2, 64, 32>}, {pipeline_mode = #tpu.pipeline_mode<synchronous>, transform_indices = @transform_23, window_bounds = array<i64: 2, 1, 32>}, {pipeline_mode = #tpu.pipeline_mode<synchronous>, transform_indices = @transform_24, window_bounds = array<i64: 2, 32, 32>}, {pipeline_mode = #tpu.pipeline_mode<synchronous>, transform_indices = @transform_25, window_bounds = array<i64: 2, 1, 32>}, {transform_indices = @transform_26, window_bounds = array<i64: 1, 8, 64>}]} {
    %0 = tpu.iota {dimensions = array<i32: 0>} : vector<8x8xi32>
    %1 = tpu.iota {dimensions = array<i32: 1>} : vector<8x8xi32>
    %2 = arith.cmpi sle, %1, %0 : vector<8x8xi32>
    %cst = arith.constant 0.000000e+00 : f32
    %cst_0 = arith.constant -1.000000e+30 : f32
    %3 = vector.broadcast %cst : f32 to vector<8x8xf32>
    %4 = vector.broadcast %cst_0 : f32 to vector<8x8xf32>
    %5 = arith.select %2, %3, %4 : vector<8x8xi1>, vector<8x8xf32>
    %c0 = arith.constant 0 : index
    %c0_1 = arith.constant 0 : index
    %c0_2 = arith.constant 0 : index
    %6 = vector.load %arg1[%c0, %c0_1, %c0_2] : memref<1x8x64xf32, #tpu.memory_space<vmem>>, vector<1x8x64xf32>
    %7 = vector.shape_cast %6 : vector<1x8x64xf32> to vector<8x64xf32>
    %c0_3 = arith.constant 0 : index
    %c0_4 = arith.constant 0 : index
    %c0_5 = arith.constant 0 : index
    %8 = vector.load %arg2[%c0_3, %c0_4, %c0_5] : memref<1x2x32xf32, #tpu.memory_space<vmem>>, vector<1x2x32xf32>
    %9 = vector.shape_cast %8 : vector<1x2x32xf32> to vector<2x32xf32>
    %c0_6 = arith.constant 0 : index
    %c0_7 = arith.constant 0 : index
    %c0_8 = arith.constant 0 : index
    %10 = vector.load %arg3[%c0_6, %c0_7, %c0_8] : memref<1x2x32xf32, #tpu.memory_space<vmem>>, vector<1x2x32xf32>
    %11 = vector.shape_cast %10 : vector<1x2x32xf32> to vector<2x32xf32>
    %c0_9 = arith.constant 0 : index
    %c0_10 = arith.constant 0 : index
    %c0_11 = arith.constant 0 : index
    %12 = vector.load %arg4[%c0_9, %c0_10, %c0_11] : memref<1x2x16xf32, #tpu.memory_space<vmem>>, vector<1x2x16xf32>
    %13 = vector.shape_cast %12 : vector<1x2x16xf32> to vector<2x16xf32>
    %c0_12 = arith.constant 0 : index
    %c0_13 = arith.constant 0 : index
    %c0_14 = arith.constant 0 : index
    %14 = vector.load %arg5[%c0_12, %c0_13, %c0_14] : memref<1x2x16xf32, #tpu.memory_space<vmem>>, vector<1x2x16xf32>
    %15 = vector.shape_cast %14 : vector<1x2x16xf32> to vector<2x16xf32>
    %c0_15 = arith.constant 0 : index
    %c0_16 = arith.constant 0 : index
    %c0_17 = arith.constant 0 : index
    %16 = vector.load %arg6[%c0_15, %c0_16, %c0_17] : memref<1x2x32xf32, #tpu.memory_space<vmem>>, vector<1x2x32xf32>
    %17 = vector.shape_cast %16 : vector<1x2x32xf32> to vector<2x32xf32>
    %c0_18 = arith.constant 0 : index
    %c0_19 = arith.constant 0 : index
    %c0_20 = arith.constant 0 : index
    %18 = vector.load %arg7[%c0_18, %c0_19, %c0_20] : memref<1x2x32xf32, #tpu.memory_space<vmem>>, vector<1x2x32xf32>
    %19 = vector.shape_cast %18 : vector<1x2x32xf32> to vector<2x32xf32>
    %c0_21 = arith.constant 0 : index
    %c0_22 = arith.constant 0 : index
    %c0_23 = arith.constant 0 : index
    %20 = vector.load %arg8[%c0_21, %c0_22, %c0_23] : memref<1x1x32xf32, #tpu.memory_space<vmem>>, vector<1x1x32xf32>
    %21 = vector.shape_cast %20 : vector<1x1x32xf32> to vector<1x32xf32>
    %22 = vector.extract_strided_slice %7 {offsets = [0, 0], sizes = [8, 32], strides = [1, 1]} : vector<8x64xf32> to vector<8x32xf32>
    %23 = vector.extract_strided_slice %9 {offsets = [0, 0], sizes = [1, 32], strides = [1, 1]} : vector<2x32xf32> to vector<1x32xf32>
    %24 = vector.extract_strided_slice %11 {offsets = [0, 0], sizes = [1, 32], strides = [1, 1]} : vector<2x32xf32> to vector<1x32xf32>
    %cst_24 = arith.constant dense<0.000000e+00> : vector<8xf32>
    %25 = vector.multi_reduction <add>, %22, %cst_24 [1] : vector<8x32xf32> to vector<8xf32>
    %26 = vector.shape_cast %25 : vector<8xf32> to vector<8x1xf32>
    %cst_25 = arith.constant 3.200000e+01 : f32
    %27 = vector.broadcast %cst_25 : f32 to vector<8x1xf32>
    %28 = arith.divf %26, %27 : vector<8x1xf32>
    %29 = vector.broadcast %28 : vector<8x1xf32> to vector<8x32xf32>
    %30 = arith.subf %22, %29 : vector<8x32xf32>
    %31 = arith.mulf %30, %30 : vector<8x32xf32>
    %cst_26 = arith.constant dense<0.000000e+00> : vector<8xf32>
    %32 = vector.multi_reduction <add>, %31, %cst_26 [1] : vector<8x32xf32> to vector<8xf32>
    %33 = vector.shape_cast %32 : vector<8xf32> to vector<8x1xf32>
    %cst_27 = arith.constant 3.200000e+01 : f32
    %34 = vector.broadcast %cst_27 : f32 to vector<8x1xf32>
    %35 = arith.divf %33, %34 : vector<8x1xf32>
    %36 = vector.broadcast %28 : vector<8x1xf32> to vector<8x32xf32>
    %37 = arith.subf %22, %36 : vector<8x32xf32>
    %cst_28 = arith.constant 9.99999974E-6 : f32
    %38 = vector.broadcast %cst_28 : f32 to vector<8x1xf32>
    %39 = arith.addf %35, %38 : vector<8x1xf32>
    %40 = math.rsqrt %39 : vector<8x1xf32>
    %41 = vector.broadcast %40 : vector<8x1xf32> to vector<8x32xf32>
    %42 = arith.mulf %37, %41 : vector<8x32xf32>
    %43 = vector.broadcast %23 : vector<1x32xf32> to vector<8x32xf32>
    %44 = arith.mulf %42, %43 : vector<8x32xf32>
    %45 = vector.broadcast %24 : vector<1x32xf32> to vector<8x32xf32>
    %46 = arith.addf %44, %45 : vector<8x32xf32>
    %47 = arith.truncf %46 : vector<8x32xf32> to vector<8x32xbf16>
    %c0_29 = arith.constant 0 : index
    %c0_30 = arith.constant 0 : index
    %c0_31 = arith.constant 0 : index
    %48 = vector.load %arg9[%c0_29, %c0_30, %c0_31] : memref<2x32x96xf32, #tpu.memory_space<vmem>>, vector<1x32x96xf32>
    %49 = vector.shape_cast %48 : vector<1x32x96xf32> to vector<32x96xf32>
    %50 = arith.truncf %49 : vector<32x96xf32> to vector<32x96xbf16>
    %cst_32 = arith.constant dense<0.000000e+00> : vector<8x96xf32>
    %51 = tpu.matmul %47, %50, %cst_32 {dimension_numbers = #tpu.dot_dimension_numbers<[1], [0], [0], [1], [0, 0, 1, 1], [], []>} : vector<8x32xbf16>, vector<32x96xbf16>, vector<8x96xf32> -> vector<8x96xf32>
    %c0_33 = arith.constant 0 : index
    %c0_34 = arith.constant 0 : index
    %c0_35 = arith.constant 0 : index
    %52 = vector.load %arg10[%c0_33, %c0_34, %c0_35] : memref<2x1x96xf32, #tpu.memory_space<vmem>>, vector<1x1x96xf32>
    %53 = vector.shape_cast %52 : vector<1x1x96xf32> to vector<1x96xf32>
    %54 = vector.broadcast %53 : vector<1x96xf32> to vector<8x96xf32>
    %55 = arith.addf %51, %54 : vector<8x96xf32>
    %56 = vector.extract_strided_slice %55 {offsets = [0, 0], sizes = [8, 32], strides = [1, 1]} : vector<8x96xf32> to vector<8x32xf32>
    %57 = vector.extract_strided_slice %55 {offsets = [0, 32], sizes = [8, 32], strides = [1, 1]} : vector<8x96xf32> to vector<8x32xf32>
    %58 = vector.extract_strided_slice %55 {offsets = [0, 64], sizes = [8, 32], strides = [1, 1]} : vector<8x96xf32> to vector<8x32xf32>
    %59 = vector.extract_strided_slice %56 {offsets = [0, 0], sizes = [8, 8], strides = [1, 1]} : vector<8x32xf32> to vector<8x8xf32>
    %cst_36 = arith.constant 0.353553385 : f32
    %60 = vector.broadcast %cst_36 : f32 to vector<8x8xf32>
    %61 = arith.mulf %59, %60 : vector<8x8xf32>
    %62 = arith.truncf %61 : vector<8x8xf32> to vector<8x8xbf16>
    %63 = vector.extract_strided_slice %57 {offsets = [0, 0], sizes = [8, 8], strides = [1, 1]} : vector<8x32xf32> to vector<8x8xf32>
    %64 = arith.truncf %63 : vector<8x8xf32> to vector<8x8xbf16>
    %65 = vector.extract_strided_slice %58 {offsets = [0, 0], sizes = [8, 8], strides = [1, 1]} : vector<8x32xf32> to vector<8x8xf32>
    %66 = arith.truncf %65 : vector<8x8xf32> to vector<8x8xbf16>
    "tpu.trace_start"() <{level = 10 : i32, message = "td,sd->ts"}> : () -> ()
    %cst_37 = arith.constant dense<0.000000e+00> : vector<8x8xf32>
    %67 = tpu.matmul %62, %64, %cst_37 {dimension_numbers = #tpu.dot_dimension_numbers<[1], [1], [0], [0], [0, 0, 1, 0], [], []>} : vector<8x8xbf16>, vector<8x8xbf16>, vector<8x8xf32> -> vector<8x8xf32>
    "tpu.trace_stop"() : () -> ()
    %68 = arith.addf %67, %5 : vector<8x8xf32>
    %cst_38 = arith.constant dense<0xFF800000> : vector<8xf32>
    %69 = vector.multi_reduction <maximumf>, %68, %cst_38 [1] : vector<8x8xf32> to vector<8xf32>
    %70 = vector.shape_cast %69 : vector<8xf32> to vector<8x1xf32>
    %71 = vector.broadcast %70 : vector<8x1xf32> to vector<8x8xf32>
    %72 = arith.subf %68, %71 : vector<8x8xf32>
    %73 = math.exp %72 : vector<8x8xf32>
    %cst_39 = arith.constant dense<0.000000e+00> : vector<8xf32>
    %74 = vector.multi_reduction <add>, %73, %cst_39 [1] : vector<8x8xf32> to vector<8xf32>
    %75 = vector.shape_cast %74 : vector<8xf32> to vector<8x1xf32>
    %76 = tpu.reciprocal %75 {approx = true} : vector<8x1xf32> -> vector<8x1xf32>
    %77 = vector.broadcast %76 : vector<8x1xf32> to vector<8x8xf32>
    %78 = arith.mulf %73, %77 : vector<8x8xf32>
    %79 = arith.truncf %78 : vector<8x8xf32> to vector<8x8xbf16>
    "tpu.trace_start"() <{level = 10 : i32, message = "ts,sd->td"}> : () -> ()
    %cst_40 = arith.constant dense<0.000000e+00> : vector<8x8xf32>
    %80 = tpu.matmul %79, %66, %cst_40 {dimension_numbers = #tpu.dot_dimension_numbers<[1], [0], [0], [1], [0, 0, 1, 1], [], []>} : vector<8x8xbf16>, vector<8x8xbf16>, vector<8x8xf32> -> vector<8x8xf32>
    "tpu.trace_stop"() : () -> ()
    %81 = vector.extract_strided_slice %56 {offsets = [0, 8], sizes = [8, 8], strides = [1, 1]} : vector<8x32xf32> to vector<8x8xf32>
    %cst_41 = arith.constant 0.353553385 : f32
    %82 = vector.broadcast %cst_41 : f32 to vector<8x8xf32>
    %83 = arith.mulf %81, %82 : vector<8x8xf32>
    %84 = arith.truncf %83 : vector<8x8xf32> to vector<8x8xbf16>
    %85 = vector.extract_strided_slice %57 {offsets = [0, 8], sizes = [8, 8], strides = [1, 1]} : vector<8x32xf32> to vector<8x8xf32>
    %86 = arith.truncf %85 : vector<8x8xf32> to vector<8x8xbf16>
    %87 = vector.extract_strided_slice %58 {offsets = [0, 8], sizes = [8, 8], strides = [1, 1]} : vector<8x32xf32> to vector<8x8xf32>
    %88 = arith.truncf %87 : vector<8x8xf32> to vector<8x8xbf16>
    "tpu.trace_start"() <{level = 10 : i32, message = "td,sd->ts"}> : () -> ()
    %cst_42 = arith.constant dense<0.000000e+00> : vector<8x8xf32>
    %89 = tpu.matmul %84, %86, %cst_42 {dimension_numbers = #tpu.dot_dimension_numbers<[1], [1], [0], [0], [0, 0, 1, 0], [], []>} : vector<8x8xbf16>, vector<8x8xbf16>, vector<8x8xf32> -> vector<8x8xf32>
    "tpu.trace_stop"() : () -> ()
    %90 = arith.addf %89, %5 : vector<8x8xf32>
    %cst_43 = arith.constant dense<0xFF800000> : vector<8xf32>
    %91 = vector.multi_reduction <maximumf>, %90, %cst_43 [1] : vector<8x8xf32> to vector<8xf32>
    %92 = vector.shape_cast %91 : vector<8xf32> to vector<8x1xf32>
    %93 = vector.broadcast %92 : vector<8x1xf32> to vector<8x8xf32>
    %94 = arith.subf %90, %93 : vector<8x8xf32>
    %95 = math.exp %94 : vector<8x8xf32>
    %cst_44 = arith.constant dense<0.000000e+00> : vector<8xf32>
    %96 = vector.multi_reduction <add>, %95, %cst_44 [1] : vector<8x8xf32> to vector<8xf32>
    %97 = vector.shape_cast %96 : vector<8xf32> to vector<8x1xf32>
    %98 = tpu.reciprocal %97 {approx = true} : vector<8x1xf32> -> vector<8x1xf32>
    %99 = vector.broadcast %98 : vector<8x1xf32> to vector<8x8xf32>
    %100 = arith.mulf %95, %99 : vector<8x8xf32>
    %101 = arith.truncf %100 : vector<8x8xf32> to vector<8x8xbf16>
    "tpu.trace_start"() <{level = 10 : i32, message = "ts,sd->td"}> : () -> ()
    %cst_45 = arith.constant dense<0.000000e+00> : vector<8x8xf32>
    %102 = tpu.matmul %101, %88, %cst_45 {dimension_numbers = #tpu.dot_dimension_numbers<[1], [0], [0], [1], [0, 0, 1, 1], [], []>} : vector<8x8xbf16>, vector<8x8xbf16>, vector<8x8xf32> -> vector<8x8xf32>
    "tpu.trace_stop"() : () -> ()
    %103 = vector.extract_strided_slice %56 {offsets = [0, 16], sizes = [8, 8], strides = [1, 1]} : vector<8x32xf32> to vector<8x8xf32>
    %cst_46 = arith.constant 0.353553385 : f32
    %104 = vector.broadcast %cst_46 : f32 to vector<8x8xf32>
    %105 = arith.mulf %103, %104 : vector<8x8xf32>
    %106 = arith.truncf %105 : vector<8x8xf32> to vector<8x8xbf16>
    %107 = vector.extract_strided_slice %57 {offsets = [0, 16], sizes = [8, 8], strides = [1, 1]} : vector<8x32xf32> to vector<8x8xf32>
    %108 = arith.truncf %107 : vector<8x8xf32> to vector<8x8xbf16>
    %109 = vector.extract_strided_slice %58 {offsets = [0, 16], sizes = [8, 8], strides = [1, 1]} : vector<8x32xf32> to vector<8x8xf32>
    %110 = arith.truncf %109 : vector<8x8xf32> to vector<8x8xbf16>
    "tpu.trace_start"() <{level = 10 : i32, message = "td,sd->ts"}> : () -> ()
    %cst_47 = arith.constant dense<0.000000e+00> : vector<8x8xf32>
    %111 = tpu.matmul %106, %108, %cst_47 {dimension_numbers = #tpu.dot_dimension_numbers<[1], [1], [0], [0], [0, 0, 1, 0], [], []>} : vector<8x8xbf16>, vector<8x8xbf16>, vector<8x8xf32> -> vector<8x8xf32>
    "tpu.trace_stop"() : () -> ()
    %112 = arith.addf %111, %5 : vector<8x8xf32>
    %cst_48 = arith.constant dense<0xFF800000> : vector<8xf32>
    %113 = vector.multi_reduction <maximumf>, %112, %cst_48 [1] : vector<8x8xf32> to vector<8xf32>
    %114 = vector.shape_cast %113 : vector<8xf32> to vector<8x1xf32>
    %115 = vector.broadcast %114 : vector<8x1xf32> to vector<8x8xf32>
    %116 = arith.subf %112, %115 : vector<8x8xf32>
    %117 = math.exp %116 : vector<8x8xf32>
    %cst_49 = arith.constant dense<0.000000e+00> : vector<8xf32>
    %118 = vector.multi_reduction <add>, %117, %cst_49 [1] : vector<8x8xf32> to vector<8xf32>
    %119 = vector.shape_cast %118 : vector<8xf32> to vector<8x1xf32>
    %120 = tpu.reciprocal %119 {approx = true} : vector<8x1xf32> -> vector<8x1xf32>
    %121 = vector.broadcast %120 : vector<8x1xf32> to vector<8x8xf32>
    %122 = arith.mulf %117, %121 : vector<8x8xf32>
    %123 = arith.truncf %122 : vector<8x8xf32> to vector<8x8xbf16>
    "tpu.trace_start"() <{level = 10 : i32, message = "ts,sd->td"}> : () -> ()
    %cst_50 = arith.constant dense<0.000000e+00> : vector<8x8xf32>
    %124 = tpu.matmul %123, %110, %cst_50 {dimension_numbers = #tpu.dot_dimension_numbers<[1], [0], [0], [1], [0, 0, 1, 1], [], []>} : vector<8x8xbf16>, vector<8x8xbf16>, vector<8x8xf32> -> vector<8x8xf32>
    "tpu.trace_stop"() : () -> ()
    %125 = vector.extract_strided_slice %56 {offsets = [0, 24], sizes = [8, 8], strides = [1, 1]} : vector<8x32xf32> to vector<8x8xf32>
    %cst_51 = arith.constant 0.353553385 : f32
    %126 = vector.broadcast %cst_51 : f32 to vector<8x8xf32>
    %127 = arith.mulf %125, %126 : vector<8x8xf32>
    %128 = arith.truncf %127 : vector<8x8xf32> to vector<8x8xbf16>
    %129 = vector.extract_strided_slice %57 {offsets = [0, 24], sizes = [8, 8], strides = [1, 1]} : vector<8x32xf32> to vector<8x8xf32>
    %130 = arith.truncf %129 : vector<8x8xf32> to vector<8x8xbf16>
    %131 = vector.extract_strided_slice %58 {offsets = [0, 24], sizes = [8, 8], strides = [1, 1]} : vector<8x32xf32> to vector<8x8xf32>
    %132 = arith.truncf %131 : vector<8x8xf32> to vector<8x8xbf16>
    "tpu.trace_start"() <{level = 10 : i32, message = "td,sd->ts"}> : () -> ()
    %cst_52 = arith.constant dense<0.000000e+00> : vector<8x8xf32>
    %133 = tpu.matmul %128, %130, %cst_52 {dimension_numbers = #tpu.dot_dimension_numbers<[1], [1], [0], [0], [0, 0, 1, 0], [], []>} : vector<8x8xbf16>, vector<8x8xbf16>, vector<8x8xf32> -> vector<8x8xf32>
    "tpu.trace_stop"() : () -> ()
    %134 = arith.addf %133, %5 : vector<8x8xf32>
    %cst_53 = arith.constant dense<0xFF800000> : vector<8xf32>
    %135 = vector.multi_reduction <maximumf>, %134, %cst_53 [1] : vector<8x8xf32> to vector<8xf32>
    %136 = vector.shape_cast %135 : vector<8xf32> to vector<8x1xf32>
    %137 = vector.broadcast %136 : vector<8x1xf32> to vector<8x8xf32>
    %138 = arith.subf %134, %137 : vector<8x8xf32>
    %139 = math.exp %138 : vector<8x8xf32>
    %cst_54 = arith.constant dense<0.000000e+00> : vector<8xf32>
    %140 = vector.multi_reduction <add>, %139, %cst_54 [1] : vector<8x8xf32> to vector<8xf32>
    %141 = vector.shape_cast %140 : vector<8xf32> to vector<8x1xf32>
    %142 = tpu.reciprocal %141 {approx = true} : vector<8x1xf32> -> vector<8x1xf32>
    %143 = vector.broadcast %142 : vector<8x1xf32> to vector<8x8xf32>
    %144 = arith.mulf %139, %143 : vector<8x8xf32>
    %145 = arith.truncf %144 : vector<8x8xf32> to vector<8x8xbf16>
    "tpu.trace_start"() <{level = 10 : i32, message = "ts,sd->td"}> : () -> ()
    %cst_55 = arith.constant dense<0.000000e+00> : vector<8x8xf32>
    %146 = tpu.matmul %145, %132, %cst_55 {dimension_numbers = #tpu.dot_dimension_numbers<[1], [0], [0], [1], [0, 0, 1, 1], [], []>} : vector<8x8xbf16>, vector<8x8xbf16>, vector<8x8xf32> -> vector<8x8xf32>
    "tpu.trace_stop"() : () -> ()
    %147 = tpu.concatenate %80, %102, %124, %146 in 1 : vector<8x8xf32>, vector<8x8xf32>, vector<8x8xf32>, vector<8x8xf32> -> vector<8x32xf32>
    %148 = arith.truncf %147 : vector<8x32xf32> to vector<8x32xbf16>
    %c0_56 = arith.constant 0 : index
    %c0_57 = arith.constant 0 : index
    %c0_58 = arith.constant 0 : index
    %149 = vector.load %arg11[%c0_56, %c0_57, %c0_58] : memref<2x32x32xf32, #tpu.memory_space<vmem>>, vector<1x32x32xf32>
    %150 = vector.shape_cast %149 : vector<1x32x32xf32> to vector<32x32xf32>
    %151 = arith.truncf %150 : vector<32x32xf32> to vector<32x32xbf16>
    %cst_59 = arith.constant dense<0.000000e+00> : vector<8x32xf32>
    %152 = tpu.matmul %148, %151, %cst_59 {dimension_numbers = #tpu.dot_dimension_numbers<[1], [0], [0], [1], [0, 0, 1, 1], [], []>} : vector<8x32xbf16>, vector<32x32xbf16>, vector<8x32xf32> -> vector<8x32xf32>
    %c0_60 = arith.constant 0 : index
    %c0_61 = arith.constant 0 : index
    %c0_62 = arith.constant 0 : index
    %153 = vector.load %arg12[%c0_60, %c0_61, %c0_62] : memref<2x1x32xf32, #tpu.memory_space<vmem>>, vector<1x1x32xf32>
    %154 = vector.shape_cast %153 : vector<1x1x32xf32> to vector<1x32xf32>
    %155 = vector.broadcast %154 : vector<1x32xf32> to vector<8x32xf32>
    %156 = arith.addf %152, %155 : vector<8x32xf32>
    %157 = arith.addf %22, %156 : vector<8x32xf32>
    %158 = vector.extract_strided_slice %7 {offsets = [0, 32], sizes = [8, 32], strides = [1, 1]} : vector<8x64xf32> to vector<8x32xf32>
    %159 = vector.extract_strided_slice %9 {offsets = [1, 0], sizes = [1, 32], strides = [1, 1]} : vector<2x32xf32> to vector<1x32xf32>
    %160 = vector.extract_strided_slice %11 {offsets = [1, 0], sizes = [1, 32], strides = [1, 1]} : vector<2x32xf32> to vector<1x32xf32>
    %cst_63 = arith.constant dense<0.000000e+00> : vector<8xf32>
    %161 = vector.multi_reduction <add>, %158, %cst_63 [1] : vector<8x32xf32> to vector<8xf32>
    %162 = vector.shape_cast %161 : vector<8xf32> to vector<8x1xf32>
    %cst_64 = arith.constant 3.200000e+01 : f32
    %163 = vector.broadcast %cst_64 : f32 to vector<8x1xf32>
    %164 = arith.divf %162, %163 : vector<8x1xf32>
    %165 = vector.broadcast %164 : vector<8x1xf32> to vector<8x32xf32>
    %166 = arith.subf %158, %165 : vector<8x32xf32>
    %167 = arith.mulf %166, %166 : vector<8x32xf32>
    %cst_65 = arith.constant dense<0.000000e+00> : vector<8xf32>
    %168 = vector.multi_reduction <add>, %167, %cst_65 [1] : vector<8x32xf32> to vector<8xf32>
    %169 = vector.shape_cast %168 : vector<8xf32> to vector<8x1xf32>
    %cst_66 = arith.constant 3.200000e+01 : f32
    %170 = vector.broadcast %cst_66 : f32 to vector<8x1xf32>
    %171 = arith.divf %169, %170 : vector<8x1xf32>
    %172 = vector.broadcast %164 : vector<8x1xf32> to vector<8x32xf32>
    %173 = arith.subf %158, %172 : vector<8x32xf32>
    %cst_67 = arith.constant 9.99999974E-6 : f32
    %174 = vector.broadcast %cst_67 : f32 to vector<8x1xf32>
    %175 = arith.addf %171, %174 : vector<8x1xf32>
    %176 = math.rsqrt %175 : vector<8x1xf32>
    %177 = vector.broadcast %176 : vector<8x1xf32> to vector<8x32xf32>
    %178 = arith.mulf %173, %177 : vector<8x32xf32>
    %179 = vector.broadcast %159 : vector<1x32xf32> to vector<8x32xf32>
    %180 = arith.mulf %178, %179 : vector<8x32xf32>
    %181 = vector.broadcast %160 : vector<1x32xf32> to vector<8x32xf32>
    %182 = arith.addf %180, %181 : vector<8x32xf32>
    %183 = arith.truncf %182 : vector<8x32xf32> to vector<8x32xbf16>
    %c1 = arith.constant 1 : index
    %c0_68 = arith.constant 0 : index
    %c0_69 = arith.constant 0 : index
    %184 = vector.load %arg9[%c1, %c0_68, %c0_69] : memref<2x32x96xf32, #tpu.memory_space<vmem>>, vector<1x32x96xf32>
    %185 = vector.shape_cast %184 : vector<1x32x96xf32> to vector<32x96xf32>
    %186 = arith.truncf %185 : vector<32x96xf32> to vector<32x96xbf16>
    %cst_70 = arith.constant dense<0.000000e+00> : vector<8x96xf32>
    %187 = tpu.matmul %183, %186, %cst_70 {dimension_numbers = #tpu.dot_dimension_numbers<[1], [0], [0], [1], [0, 0, 1, 1], [], []>} : vector<8x32xbf16>, vector<32x96xbf16>, vector<8x96xf32> -> vector<8x96xf32>
    %c1_71 = arith.constant 1 : index
    %c0_72 = arith.constant 0 : index
    %c0_73 = arith.constant 0 : index
    %188 = vector.load %arg10[%c1_71, %c0_72, %c0_73] : memref<2x1x96xf32, #tpu.memory_space<vmem>>, vector<1x1x96xf32>
    %189 = vector.shape_cast %188 : vector<1x1x96xf32> to vector<1x96xf32>
    %190 = vector.broadcast %189 : vector<1x96xf32> to vector<8x96xf32>
    %191 = arith.addf %187, %190 : vector<8x96xf32>
    %192 = vector.extract_strided_slice %191 {offsets = [0, 0], sizes = [8, 32], strides = [1, 1]} : vector<8x96xf32> to vector<8x32xf32>
    %193 = vector.extract_strided_slice %191 {offsets = [0, 32], sizes = [8, 32], strides = [1, 1]} : vector<8x96xf32> to vector<8x32xf32>
    %194 = vector.extract_strided_slice %191 {offsets = [0, 64], sizes = [8, 32], strides = [1, 1]} : vector<8x96xf32> to vector<8x32xf32>
    %195 = vector.extract_strided_slice %192 {offsets = [0, 0], sizes = [8, 8], strides = [1, 1]} : vector<8x32xf32> to vector<8x8xf32>
    %cst_74 = arith.constant 0.353553385 : f32
    %196 = vector.broadcast %cst_74 : f32 to vector<8x8xf32>
    %197 = arith.mulf %195, %196 : vector<8x8xf32>
    %198 = arith.truncf %197 : vector<8x8xf32> to vector<8x8xbf16>
    %199 = vector.extract_strided_slice %193 {offsets = [0, 0], sizes = [8, 8], strides = [1, 1]} : vector<8x32xf32> to vector<8x8xf32>
    %200 = arith.truncf %199 : vector<8x8xf32> to vector<8x8xbf16>
    %201 = vector.extract_strided_slice %194 {offsets = [0, 0], sizes = [8, 8], strides = [1, 1]} : vector<8x32xf32> to vector<8x8xf32>
    %202 = arith.truncf %201 : vector<8x8xf32> to vector<8x8xbf16>
    "tpu.trace_start"() <{level = 10 : i32, message = "td,sd->ts"}> : () -> ()
    %cst_75 = arith.constant dense<0.000000e+00> : vector<8x8xf32>
    %203 = tpu.matmul %198, %200, %cst_75 {dimension_numbers = #tpu.dot_dimension_numbers<[1], [1], [0], [0], [0, 0, 1, 0], [], []>} : vector<8x8xbf16>, vector<8x8xbf16>, vector<8x8xf32> -> vector<8x8xf32>
    "tpu.trace_stop"() : () -> ()
    %204 = arith.addf %203, %5 : vector<8x8xf32>
    %cst_76 = arith.constant dense<0xFF800000> : vector<8xf32>
    %205 = vector.multi_reduction <maximumf>, %204, %cst_76 [1] : vector<8x8xf32> to vector<8xf32>
    %206 = vector.shape_cast %205 : vector<8xf32> to vector<8x1xf32>
    %207 = vector.broadcast %206 : vector<8x1xf32> to vector<8x8xf32>
    %208 = arith.subf %204, %207 : vector<8x8xf32>
    %209 = math.exp %208 : vector<8x8xf32>
    %cst_77 = arith.constant dense<0.000000e+00> : vector<8xf32>
    %210 = vector.multi_reduction <add>, %209, %cst_77 [1] : vector<8x8xf32> to vector<8xf32>
    %211 = vector.shape_cast %210 : vector<8xf32> to vector<8x1xf32>
    %212 = tpu.reciprocal %211 {approx = true} : vector<8x1xf32> -> vector<8x1xf32>
    %213 = vector.broadcast %212 : vector<8x1xf32> to vector<8x8xf32>
    %214 = arith.mulf %209, %213 : vector<8x8xf32>
    %215 = arith.truncf %214 : vector<8x8xf32> to vector<8x8xbf16>
    "tpu.trace_start"() <{level = 10 : i32, message = "ts,sd->td"}> : () -> ()
    %cst_78 = arith.constant dense<0.000000e+00> : vector<8x8xf32>
    %216 = tpu.matmul %215, %202, %cst_78 {dimension_numbers = #tpu.dot_dimension_numbers<[1], [0], [0], [1], [0, 0, 1, 1], [], []>} : vector<8x8xbf16>, vector<8x8xbf16>, vector<8x8xf32> -> vector<8x8xf32>
    "tpu.trace_stop"() : () -> ()
    %217 = vector.extract_strided_slice %192 {offsets = [0, 8], sizes = [8, 8], strides = [1, 1]} : vector<8x32xf32> to vector<8x8xf32>
    %cst_79 = arith.constant 0.353553385 : f32
    %218 = vector.broadcast %cst_79 : f32 to vector<8x8xf32>
    %219 = arith.mulf %217, %218 : vector<8x8xf32>
    %220 = arith.truncf %219 : vector<8x8xf32> to vector<8x8xbf16>
    %221 = vector.extract_strided_slice %193 {offsets = [0, 8], sizes = [8, 8], strides = [1, 1]} : vector<8x32xf32> to vector<8x8xf32>
    %222 = arith.truncf %221 : vector<8x8xf32> to vector<8x8xbf16>
    %223 = vector.extract_strided_slice %194 {offsets = [0, 8], sizes = [8, 8], strides = [1, 1]} : vector<8x32xf32> to vector<8x8xf32>
    %224 = arith.truncf %223 : vector<8x8xf32> to vector<8x8xbf16>
    "tpu.trace_start"() <{level = 10 : i32, message = "td,sd->ts"}> : () -> ()
    %cst_80 = arith.constant dense<0.000000e+00> : vector<8x8xf32>
    %225 = tpu.matmul %220, %222, %cst_80 {dimension_numbers = #tpu.dot_dimension_numbers<[1], [1], [0], [0], [0, 0, 1, 0], [], []>} : vector<8x8xbf16>, vector<8x8xbf16>, vector<8x8xf32> -> vector<8x8xf32>
    "tpu.trace_stop"() : () -> ()
    %226 = arith.addf %225, %5 : vector<8x8xf32>
    %cst_81 = arith.constant dense<0xFF800000> : vector<8xf32>
    %227 = vector.multi_reduction <maximumf>, %226, %cst_81 [1] : vector<8x8xf32> to vector<8xf32>
    %228 = vector.shape_cast %227 : vector<8xf32> to vector<8x1xf32>
    %229 = vector.broadcast %228 : vector<8x1xf32> to vector<8x8xf32>
    %230 = arith.subf %226, %229 : vector<8x8xf32>
    %231 = math.exp %230 : vector<8x8xf32>
    %cst_82 = arith.constant dense<0.000000e+00> : vector<8xf32>
    %232 = vector.multi_reduction <add>, %231, %cst_82 [1] : vector<8x8xf32> to vector<8xf32>
    %233 = vector.shape_cast %232 : vector<8xf32> to vector<8x1xf32>
    %234 = tpu.reciprocal %233 {approx = true} : vector<8x1xf32> -> vector<8x1xf32>
    %235 = vector.broadcast %234 : vector<8x1xf32> to vector<8x8xf32>
    %236 = arith.mulf %231, %235 : vector<8x8xf32>
    %237 = arith.truncf %236 : vector<8x8xf32> to vector<8x8xbf16>
    "tpu.trace_start"() <{level = 10 : i32, message = "ts,sd->td"}> : () -> ()
    %cst_83 = arith.constant dense<0.000000e+00> : vector<8x8xf32>
    %238 = tpu.matmul %237, %224, %cst_83 {dimension_numbers = #tpu.dot_dimension_numbers<[1], [0], [0], [1], [0, 0, 1, 1], [], []>} : vector<8x8xbf16>, vector<8x8xbf16>, vector<8x8xf32> -> vector<8x8xf32>
    "tpu.trace_stop"() : () -> ()
    %239 = vector.extract_strided_slice %192 {offsets = [0, 16], sizes = [8, 8], strides = [1, 1]} : vector<8x32xf32> to vector<8x8xf32>
    %cst_84 = arith.constant 0.353553385 : f32
    %240 = vector.broadcast %cst_84 : f32 to vector<8x8xf32>
    %241 = arith.mulf %239, %240 : vector<8x8xf32>
    %242 = arith.truncf %241 : vector<8x8xf32> to vector<8x8xbf16>
    %243 = vector.extract_strided_slice %193 {offsets = [0, 16], sizes = [8, 8], strides = [1, 1]} : vector<8x32xf32> to vector<8x8xf32>
    %244 = arith.truncf %243 : vector<8x8xf32> to vector<8x8xbf16>
    %245 = vector.extract_strided_slice %194 {offsets = [0, 16], sizes = [8, 8], strides = [1, 1]} : vector<8x32xf32> to vector<8x8xf32>
    %246 = arith.truncf %245 : vector<8x8xf32> to vector<8x8xbf16>
    "tpu.trace_start"() <{level = 10 : i32, message = "td,sd->ts"}> : () -> ()
    %cst_85 = arith.constant dense<0.000000e+00> : vector<8x8xf32>
    %247 = tpu.matmul %242, %244, %cst_85 {dimension_numbers = #tpu.dot_dimension_numbers<[1], [1], [0], [0], [0, 0, 1, 0], [], []>} : vector<8x8xbf16>, vector<8x8xbf16>, vector<8x8xf32> -> vector<8x8xf32>
    "tpu.trace_stop"() : () -> ()
    %248 = arith.addf %247, %5 : vector<8x8xf32>
    %cst_86 = arith.constant dense<0xFF800000> : vector<8xf32>
    %249 = vector.multi_reduction <maximumf>, %248, %cst_86 [1] : vector<8x8xf32> to vector<8xf32>
    %250 = vector.shape_cast %249 : vector<8xf32> to vector<8x1xf32>
    %251 = vector.broadcast %250 : vector<8x1xf32> to vector<8x8xf32>
    %252 = arith.subf %248, %251 : vector<8x8xf32>
    %253 = math.exp %252 : vector<8x8xf32>
    %cst_87 = arith.constant dense<0.000000e+00> : vector<8xf32>
    %254 = vector.multi_reduction <add>, %253, %cst_87 [1] : vector<8x8xf32> to vector<8xf32>
    %255 = vector.shape_cast %254 : vector<8xf32> to vector<8x1xf32>
    %256 = tpu.reciprocal %255 {approx = true} : vector<8x1xf32> -> vector<8x1xf32>
    %257 = vector.broadcast %256 : vector<8x1xf32> to vector<8x8xf32>
    %258 = arith.mulf %253, %257 : vector<8x8xf32>
    %259 = arith.truncf %258 : vector<8x8xf32> to vector<8x8xbf16>
    "tpu.trace_start"() <{level = 10 : i32, message = "ts,sd->td"}> : () -> ()
    %cst_88 = arith.constant dense<0.000000e+00> : vector<8x8xf32>
    %260 = tpu.matmul %259, %246, %cst_88 {dimension_numbers = #tpu.dot_dimension_numbers<[1], [0], [0], [1], [0, 0, 1, 1], [], []>} : vector<8x8xbf16>, vector<8x8xbf16>, vector<8x8xf32> -> vector<8x8xf32>
    "tpu.trace_stop"() : () -> ()
    %261 = vector.extract_strided_slice %192 {offsets = [0, 24], sizes = [8, 8], strides = [1, 1]} : vector<8x32xf32> to vector<8x8xf32>
    %cst_89 = arith.constant 0.353553385 : f32
    %262 = vector.broadcast %cst_89 : f32 to vector<8x8xf32>
    %263 = arith.mulf %261, %262 : vector<8x8xf32>
    %264 = arith.truncf %263 : vector<8x8xf32> to vector<8x8xbf16>
    %265 = vector.extract_strided_slice %193 {offsets = [0, 24], sizes = [8, 8], strides = [1, 1]} : vector<8x32xf32> to vector<8x8xf32>
    %266 = arith.truncf %265 : vector<8x8xf32> to vector<8x8xbf16>
    %267 = vector.extract_strided_slice %194 {offsets = [0, 24], sizes = [8, 8], strides = [1, 1]} : vector<8x32xf32> to vector<8x8xf32>
    %268 = arith.truncf %267 : vector<8x8xf32> to vector<8x8xbf16>
    "tpu.trace_start"() <{level = 10 : i32, message = "td,sd->ts"}> : () -> ()
    %cst_90 = arith.constant dense<0.000000e+00> : vector<8x8xf32>
    %269 = tpu.matmul %264, %266, %cst_90 {dimension_numbers = #tpu.dot_dimension_numbers<[1], [1], [0], [0], [0, 0, 1, 0], [], []>} : vector<8x8xbf16>, vector<8x8xbf16>, vector<8x8xf32> -> vector<8x8xf32>
    "tpu.trace_stop"() : () -> ()
    %270 = arith.addf %269, %5 : vector<8x8xf32>
    %cst_91 = arith.constant dense<0xFF800000> : vector<8xf32>
    %271 = vector.multi_reduction <maximumf>, %270, %cst_91 [1] : vector<8x8xf32> to vector<8xf32>
    %272 = vector.shape_cast %271 : vector<8xf32> to vector<8x1xf32>
    %273 = vector.broadcast %272 : vector<8x1xf32> to vector<8x8xf32>
    %274 = arith.subf %270, %273 : vector<8x8xf32>
    %275 = math.exp %274 : vector<8x8xf32>
    %cst_92 = arith.constant dense<0.000000e+00> : vector<8xf32>
    %276 = vector.multi_reduction <add>, %275, %cst_92 [1] : vector<8x8xf32> to vector<8xf32>
    %277 = vector.shape_cast %276 : vector<8xf32> to vector<8x1xf32>
    %278 = tpu.reciprocal %277 {approx = true} : vector<8x1xf32> -> vector<8x1xf32>
    %279 = vector.broadcast %278 : vector<8x1xf32> to vector<8x8xf32>
    %280 = arith.mulf %275, %279 : vector<8x8xf32>
    %281 = arith.truncf %280 : vector<8x8xf32> to vector<8x8xbf16>
    "tpu.trace_start"() <{level = 10 : i32, message = "ts,sd->td"}> : () -> ()
    %cst_93 = arith.constant dense<0.000000e+00> : vector<8x8xf32>
    %282 = tpu.matmul %281, %268, %cst_93 {dimension_numbers = #tpu.dot_dimension_numbers<[1], [0], [0], [1], [0, 0, 1, 1], [], []>} : vector<8x8xbf16>, vector<8x8xbf16>, vector<8x8xf32> -> vector<8x8xf32>
    "tpu.trace_stop"() : () -> ()
    %283 = tpu.concatenate %216, %238, %260, %282 in 1 : vector<8x8xf32>, vector<8x8xf32>, vector<8x8xf32>, vector<8x8xf32> -> vector<8x32xf32>
    %284 = arith.truncf %283 : vector<8x32xf32> to vector<8x32xbf16>
    %c1_94 = arith.constant 1 : index
    %c0_95 = arith.constant 0 : index
    %c0_96 = arith.constant 0 : index
    %285 = vector.load %arg11[%c1_94, %c0_95, %c0_96] : memref<2x32x32xf32, #tpu.memory_space<vmem>>, vector<1x32x32xf32>
    %286 = vector.shape_cast %285 : vector<1x32x32xf32> to vector<32x32xf32>
    %287 = arith.truncf %286 : vector<32x32xf32> to vector<32x32xbf16>
    %cst_97 = arith.constant dense<0.000000e+00> : vector<8x32xf32>
    %288 = tpu.matmul %284, %287, %cst_97 {dimension_numbers = #tpu.dot_dimension_numbers<[1], [0], [0], [1], [0, 0, 1, 1], [], []>} : vector<8x32xbf16>, vector<32x32xbf16>, vector<8x32xf32> -> vector<8x32xf32>
    %c1_98 = arith.constant 1 : index
    %c0_99 = arith.constant 0 : index
    %c0_100 = arith.constant 0 : index
    %289 = vector.load %arg12[%c1_98, %c0_99, %c0_100] : memref<2x1x32xf32, #tpu.memory_space<vmem>>, vector<1x1x32xf32>
    %290 = vector.shape_cast %289 : vector<1x1x32xf32> to vector<1x32xf32>
    %291 = vector.broadcast %290 : vector<1x32xf32> to vector<8x32xf32>
    %292 = arith.addf %288, %291 : vector<8x32xf32>
    %293 = arith.addf %158, %292 : vector<8x32xf32>
    %294 = arith.truncf %157 : vector<8x32xf32> to vector<8x32xbf16>
    %c0_101 = arith.constant 0 : index
    %c0_102 = arith.constant 0 : index
    %c0_103 = arith.constant 0 : index
    %295 = vector.load %arg13[%c0_101, %c0_102, %c0_103] : memref<2x32x16xf32, #tpu.memory_space<vmem>>, vector<1x32x16xf32>
    %296 = vector.shape_cast %295 : vector<1x32x16xf32> to vector<32x16xf32>
    %297 = arith.truncf %296 : vector<32x16xf32> to vector<32x16xbf16>
    %cst_104 = arith.constant dense<0.000000e+00> : vector<8x16xf32>
    %298 = tpu.matmul %294, %297, %cst_104 {dimension_numbers = #tpu.dot_dimension_numbers<[1], [0], [0], [1], [0, 0, 1, 1], [], []>} : vector<8x32xbf16>, vector<32x16xbf16>, vector<8x16xf32> -> vector<8x16xf32>
    %c0_105 = arith.constant 0 : index
    %c0_106 = arith.constant 0 : index
    %c0_107 = arith.constant 0 : index
    %299 = vector.load %arg14[%c0_105, %c0_106, %c0_107] : memref<2x1x16xf32, #tpu.memory_space<vmem>>, vector<1x1x16xf32>
    %300 = vector.shape_cast %299 : vector<1x1x16xf32> to vector<1x16xf32>
    %301 = vector.broadcast %300 : vector<1x16xf32> to vector<8x16xf32>
    %302 = arith.addf %298, %301 : vector<8x16xf32>
    %303 = vector.extract_strided_slice %13 {offsets = [0, 0], sizes = [1, 16], strides = [1, 1]} : vector<2x16xf32> to vector<1x16xf32>
    %304 = vector.extract_strided_slice %15 {offsets = [0, 0], sizes = [1, 16], strides = [1, 1]} : vector<2x16xf32> to vector<1x16xf32>
    %cst_108 = arith.constant dense<0.000000e+00> : vector<8xf32>
    %305 = vector.multi_reduction <add>, %302, %cst_108 [1] : vector<8x16xf32> to vector<8xf32>
    %306 = vector.shape_cast %305 : vector<8xf32> to vector<8x1xf32>
    %cst_109 = arith.constant 1.600000e+01 : f32
    %307 = vector.broadcast %cst_109 : f32 to vector<8x1xf32>
    %308 = arith.divf %306, %307 : vector<8x1xf32>
    %309 = vector.broadcast %308 : vector<8x1xf32> to vector<8x16xf32>
    %310 = arith.subf %302, %309 : vector<8x16xf32>
    %311 = arith.mulf %310, %310 : vector<8x16xf32>
    %cst_110 = arith.constant dense<0.000000e+00> : vector<8xf32>
    %312 = vector.multi_reduction <add>, %311, %cst_110 [1] : vector<8x16xf32> to vector<8xf32>
    %313 = vector.shape_cast %312 : vector<8xf32> to vector<8x1xf32>
    %cst_111 = arith.constant 1.600000e+01 : f32
    %314 = vector.broadcast %cst_111 : f32 to vector<8x1xf32>
    %315 = arith.divf %313, %314 : vector<8x1xf32>
    %316 = vector.broadcast %308 : vector<8x1xf32> to vector<8x16xf32>
    %317 = arith.subf %302, %316 : vector<8x16xf32>
    %cst_112 = arith.constant 9.99999974E-6 : f32
    %318 = vector.broadcast %cst_112 : f32 to vector<8x1xf32>
    %319 = arith.addf %315, %318 : vector<8x1xf32>
    %320 = math.rsqrt %319 : vector<8x1xf32>
    %321 = vector.broadcast %320 : vector<8x1xf32> to vector<8x16xf32>
    %322 = arith.mulf %317, %321 : vector<8x16xf32>
    %323 = vector.broadcast %303 : vector<1x16xf32> to vector<8x16xf32>
    %324 = arith.mulf %322, %323 : vector<8x16xf32>
    %325 = vector.broadcast %304 : vector<1x16xf32> to vector<8x16xf32>
    %326 = arith.addf %324, %325 : vector<8x16xf32>
    %327 = arith.truncf %293 : vector<8x32xf32> to vector<8x32xbf16>
    %c1_113 = arith.constant 1 : index
    %c0_114 = arith.constant 0 : index
    %c0_115 = arith.constant 0 : index
    %328 = vector.load %arg13[%c1_113, %c0_114, %c0_115] : memref<2x32x16xf32, #tpu.memory_space<vmem>>, vector<1x32x16xf32>
    %329 = vector.shape_cast %328 : vector<1x32x16xf32> to vector<32x16xf32>
    %330 = arith.truncf %329 : vector<32x16xf32> to vector<32x16xbf16>
    %cst_116 = arith.constant dense<0.000000e+00> : vector<8x16xf32>
    %331 = tpu.matmul %327, %330, %cst_116 {dimension_numbers = #tpu.dot_dimension_numbers<[1], [0], [0], [1], [0, 0, 1, 1], [], []>} : vector<8x32xbf16>, vector<32x16xbf16>, vector<8x16xf32> -> vector<8x16xf32>
    %c1_117 = arith.constant 1 : index
    %c0_118 = arith.constant 0 : index
    %c0_119 = arith.constant 0 : index
    %332 = vector.load %arg14[%c1_117, %c0_118, %c0_119] : memref<2x1x16xf32, #tpu.memory_space<vmem>>, vector<1x1x16xf32>
    %333 = vector.shape_cast %332 : vector<1x1x16xf32> to vector<1x16xf32>
    %334 = vector.broadcast %333 : vector<1x16xf32> to vector<8x16xf32>
    %335 = arith.addf %331, %334 : vector<8x16xf32>
    %336 = vector.extract_strided_slice %13 {offsets = [1, 0], sizes = [1, 16], strides = [1, 1]} : vector<2x16xf32> to vector<1x16xf32>
    %337 = vector.extract_strided_slice %15 {offsets = [1, 0], sizes = [1, 16], strides = [1, 1]} : vector<2x16xf32> to vector<1x16xf32>
    %cst_120 = arith.constant dense<0.000000e+00> : vector<8xf32>
    %338 = vector.multi_reduction <add>, %335, %cst_120 [1] : vector<8x16xf32> to vector<8xf32>
    %339 = vector.shape_cast %338 : vector<8xf32> to vector<8x1xf32>
    %cst_121 = arith.constant 1.600000e+01 : f32
    %340 = vector.broadcast %cst_121 : f32 to vector<8x1xf32>
    %341 = arith.divf %339, %340 : vector<8x1xf32>
    %342 = vector.broadcast %341 : vector<8x1xf32> to vector<8x16xf32>
    %343 = arith.subf %335, %342 : vector<8x16xf32>
    %344 = arith.mulf %343, %343 : vector<8x16xf32>
    %cst_122 = arith.constant dense<0.000000e+00> : vector<8xf32>
    %345 = vector.multi_reduction <add>, %344, %cst_122 [1] : vector<8x16xf32> to vector<8xf32>
    %346 = vector.shape_cast %345 : vector<8xf32> to vector<8x1xf32>
    %cst_123 = arith.constant 1.600000e+01 : f32
    %347 = vector.broadcast %cst_123 : f32 to vector<8x1xf32>
    %348 = arith.divf %346, %347 : vector<8x1xf32>
    %349 = vector.broadcast %341 : vector<8x1xf32> to vector<8x16xf32>
    %350 = arith.subf %335, %349 : vector<8x16xf32>
    %cst_124 = arith.constant 9.99999974E-6 : f32
    %351 = vector.broadcast %cst_124 : f32 to vector<8x1xf32>
    %352 = arith.addf %348, %351 : vector<8x1xf32>
    %353 = math.rsqrt %352 : vector<8x1xf32>
    %354 = vector.broadcast %353 : vector<8x1xf32> to vector<8x16xf32>
    %355 = arith.mulf %350, %354 : vector<8x16xf32>
    %356 = vector.broadcast %336 : vector<1x16xf32> to vector<8x16xf32>
    %357 = arith.mulf %355, %356 : vector<8x16xf32>
    %358 = vector.broadcast %337 : vector<1x16xf32> to vector<8x16xf32>
    %359 = arith.addf %357, %358 : vector<8x16xf32>
    %cst_125 = arith.constant 0.000000e+00 : f32
    %360 = vector.broadcast %cst_125 : f32 to vector<8x32xf32>
    %361 = arith.truncf %326 : vector<8x16xf32> to vector<8x16xbf16>
    %362 = arith.truncf %359 : vector<8x16xf32> to vector<8x16xbf16>
    %c0_126 = arith.constant 0 : index
    %c0_127 = arith.constant 0 : index
    %c0_128 = arith.constant 0 : index
    %363 = vector.load %arg15[%c0_126, %c0_127, %c0_128] : memref<2x16x48xf32, #tpu.memory_space<vmem>>, vector<1x16x48xf32>
    %364 = vector.shape_cast %363 : vector<1x16x48xf32> to vector<16x48xf32>
    %c0_129 = arith.constant 0 : index
    %c0_130 = arith.constant 0 : index
    %c0_131 = arith.constant 0 : index
    %365 = vector.load %arg16[%c0_129, %c0_130, %c0_131] : memref<2x1x48xf32, #tpu.memory_space<vmem>>, vector<1x1x48xf32>
    %366 = vector.shape_cast %365 : vector<1x1x48xf32> to vector<1x48xf32>
    %367 = vector.extract_strided_slice %364 {offsets = [0, 0], sizes = [16, 16], strides = [1, 1]} : vector<16x48xf32> to vector<16x16xf32>
    %368 = arith.truncf %367 : vector<16x16xf32> to vector<16x16xbf16>
    %cst_132 = arith.constant dense<0.000000e+00> : vector<8x16xf32>
    %369 = tpu.matmul %361, %368, %cst_132 {dimension_numbers = #tpu.dot_dimension_numbers<[1], [0], [0], [1], [0, 0, 1, 1], [], []>} : vector<8x16xbf16>, vector<16x16xbf16>, vector<8x16xf32> -> vector<8x16xf32>
    %370 = vector.extract_strided_slice %366 {offsets = [0, 0], sizes = [1, 16], strides = [1, 1]} : vector<1x48xf32> to vector<1x16xf32>
    %371 = vector.broadcast %370 : vector<1x16xf32> to vector<8x16xf32>
    %372 = arith.addf %369, %371 : vector<8x16xf32>
    %373 = vector.extract_strided_slice %364 {offsets = [0, 16], sizes = [16, 32], strides = [1, 1]} : vector<16x48xf32> to vector<16x32xf32>
    %374 = arith.truncf %373 : vector<16x32xf32> to vector<16x32xbf16>
    %cst_133 = arith.constant dense<0.000000e+00> : vector<8x32xf32>
    %375 = tpu.matmul %362, %374, %cst_133 {dimension_numbers = #tpu.dot_dimension_numbers<[1], [0], [0], [1], [0, 0, 1, 1], [], []>} : vector<8x16xbf16>, vector<16x32xbf16>, vector<8x32xf32> -> vector<8x32xf32>
    %376 = vector.extract_strided_slice %366 {offsets = [0, 16], sizes = [1, 32], strides = [1, 1]} : vector<1x48xf32> to vector<1x32xf32>
    %377 = vector.broadcast %376 : vector<1x32xf32> to vector<8x32xf32>
    %378 = arith.addf %375, %377 : vector<8x32xf32>
    %379 = vector.extract_strided_slice %378 {offsets = [0, 0], sizes = [8, 16], strides = [1, 1]} : vector<8x32xf32> to vector<8x16xf32>
    %380 = vector.extract_strided_slice %378 {offsets = [0, 16], sizes = [8, 16], strides = [1, 1]} : vector<8x32xf32> to vector<8x16xf32>
    %381 = vector.extract_strided_slice %372 {offsets = [0, 0], sizes = [8, 4], strides = [1, 1]} : vector<8x16xf32> to vector<8x4xf32>
    %cst_134 = arith.constant 5.000000e-01 : f32
    %382 = vector.broadcast %cst_134 : f32 to vector<8x4xf32>
    %383 = arith.mulf %381, %382 : vector<8x4xf32>
    %384 = arith.truncf %383 : vector<8x4xf32> to vector<8x4xbf16>
    %385 = vector.extract_strided_slice %379 {offsets = [0, 0], sizes = [8, 4], strides = [1, 1]} : vector<8x16xf32> to vector<8x4xf32>
    %386 = arith.truncf %385 : vector<8x4xf32> to vector<8x4xbf16>
    %387 = vector.extract_strided_slice %380 {offsets = [0, 0], sizes = [8, 4], strides = [1, 1]} : vector<8x16xf32> to vector<8x4xf32>
    %388 = arith.truncf %387 : vector<8x4xf32> to vector<8x4xbf16>
    "tpu.trace_start"() <{level = 10 : i32, message = "td,sd->ts"}> : () -> ()
    %cst_135 = arith.constant dense<0.000000e+00> : vector<8x8xf32>
    %389 = tpu.matmul %384, %386, %cst_135 {dimension_numbers = #tpu.dot_dimension_numbers<[1], [1], [0], [0], [0, 0, 1, 0], [], []>} : vector<8x4xbf16>, vector<8x4xbf16>, vector<8x8xf32> -> vector<8x8xf32>
    "tpu.trace_stop"() : () -> ()
    %390 = arith.addf %389, %5 : vector<8x8xf32>
    %cst_136 = arith.constant dense<0xFF800000> : vector<8xf32>
    %391 = vector.multi_reduction <maximumf>, %390, %cst_136 [1] : vector<8x8xf32> to vector<8xf32>
    %392 = vector.shape_cast %391 : vector<8xf32> to vector<8x1xf32>
    %393 = vector.broadcast %392 : vector<8x1xf32> to vector<8x8xf32>
    %394 = arith.subf %390, %393 : vector<8x8xf32>
    %395 = math.exp %394 : vector<8x8xf32>
    %cst_137 = arith.constant dense<0.000000e+00> : vector<8xf32>
    %396 = vector.multi_reduction <add>, %395, %cst_137 [1] : vector<8x8xf32> to vector<8xf32>
    %397 = vector.shape_cast %396 : vector<8xf32> to vector<8x1xf32>
    %398 = tpu.reciprocal %397 {approx = true} : vector<8x1xf32> -> vector<8x1xf32>
    %399 = vector.broadcast %398 : vector<8x1xf32> to vector<8x8xf32>
    %400 = arith.mulf %395, %399 : vector<8x8xf32>
    %401 = arith.truncf %400 : vector<8x8xf32> to vector<8x8xbf16>
    "tpu.trace_start"() <{level = 10 : i32, message = "ts,sd->td"}> : () -> ()
    %cst_138 = arith.constant dense<0.000000e+00> : vector<8x4xf32>
    %402 = tpu.matmul %401, %388, %cst_138 {dimension_numbers = #tpu.dot_dimension_numbers<[1], [0], [0], [1], [0, 0, 1, 1], [], []>} : vector<8x8xbf16>, vector<8x4xbf16>, vector<8x4xf32> -> vector<8x4xf32>
    "tpu.trace_stop"() : () -> ()
    %403 = vector.extract_strided_slice %372 {offsets = [0, 4], sizes = [8, 4], strides = [1, 1]} : vector<8x16xf32> to vector<8x4xf32>
    %cst_139 = arith.constant 5.000000e-01 : f32
    %404 = vector.broadcast %cst_139 : f32 to vector<8x4xf32>
    %405 = arith.mulf %403, %404 : vector<8x4xf32>
    %406 = arith.truncf %405 : vector<8x4xf32> to vector<8x4xbf16>
    %407 = vector.extract_strided_slice %379 {offsets = [0, 4], sizes = [8, 4], strides = [1, 1]} : vector<8x16xf32> to vector<8x4xf32>
    %408 = arith.truncf %407 : vector<8x4xf32> to vector<8x4xbf16>
    %409 = vector.extract_strided_slice %380 {offsets = [0, 4], sizes = [8, 4], strides = [1, 1]} : vector<8x16xf32> to vector<8x4xf32>
    %410 = arith.truncf %409 : vector<8x4xf32> to vector<8x4xbf16>
    "tpu.trace_start"() <{level = 10 : i32, message = "td,sd->ts"}> : () -> ()
    %cst_140 = arith.constant dense<0.000000e+00> : vector<8x8xf32>
    %411 = tpu.matmul %406, %408, %cst_140 {dimension_numbers = #tpu.dot_dimension_numbers<[1], [1], [0], [0], [0, 0, 1, 0], [], []>} : vector<8x4xbf16>, vector<8x4xbf16>, vector<8x8xf32> -> vector<8x8xf32>
    "tpu.trace_stop"() : () -> ()
    %412 = arith.addf %411, %5 : vector<8x8xf32>
    %cst_141 = arith.constant dense<0xFF800000> : vector<8xf32>
    %413 = vector.multi_reduction <maximumf>, %412, %cst_141 [1] : vector<8x8xf32> to vector<8xf32>
    %414 = vector.shape_cast %413 : vector<8xf32> to vector<8x1xf32>
    %415 = vector.broadcast %414 : vector<8x1xf32> to vector<8x8xf32>
    %416 = arith.subf %412, %415 : vector<8x8xf32>
    %417 = math.exp %416 : vector<8x8xf32>
    %cst_142 = arith.constant dense<0.000000e+00> : vector<8xf32>
    %418 = vector.multi_reduction <add>, %417, %cst_142 [1] : vector<8x8xf32> to vector<8xf32>
    %419 = vector.shape_cast %418 : vector<8xf32> to vector<8x1xf32>
    %420 = tpu.reciprocal %419 {approx = true} : vector<8x1xf32> -> vector<8x1xf32>
    %421 = vector.broadcast %420 : vector<8x1xf32> to vector<8x8xf32>
    %422 = arith.mulf %417, %421 : vector<8x8xf32>
    %423 = arith.truncf %422 : vector<8x8xf32> to vector<8x8xbf16>
    "tpu.trace_start"() <{level = 10 : i32, message = "ts,sd->td"}> : () -> ()
    %cst_143 = arith.constant dense<0.000000e+00> : vector<8x4xf32>
    %424 = tpu.matmul %423, %410, %cst_143 {dimension_numbers = #tpu.dot_dimension_numbers<[1], [0], [0], [1], [0, 0, 1, 1], [], []>} : vector<8x8xbf16>, vector<8x4xbf16>, vector<8x4xf32> -> vector<8x4xf32>
    "tpu.trace_stop"() : () -> ()
    %425 = vector.extract_strided_slice %372 {offsets = [0, 8], sizes = [8, 4], strides = [1, 1]} : vector<8x16xf32> to vector<8x4xf32>
    %cst_144 = arith.constant 5.000000e-01 : f32
    %426 = vector.broadcast %cst_144 : f32 to vector<8x4xf32>
    %427 = arith.mulf %425, %426 : vector<8x4xf32>
    %428 = arith.truncf %427 : vector<8x4xf32> to vector<8x4xbf16>
    %429 = vector.extract_strided_slice %379 {offsets = [0, 8], sizes = [8, 4], strides = [1, 1]} : vector<8x16xf32> to vector<8x4xf32>
    %430 = arith.truncf %429 : vector<8x4xf32> to vector<8x4xbf16>
    %431 = vector.extract_strided_slice %380 {offsets = [0, 8], sizes = [8, 4], strides = [1, 1]} : vector<8x16xf32> to vector<8x4xf32>
    %432 = arith.truncf %431 : vector<8x4xf32> to vector<8x4xbf16>
    "tpu.trace_start"() <{level = 10 : i32, message = "td,sd->ts"}> : () -> ()
    %cst_145 = arith.constant dense<0.000000e+00> : vector<8x8xf32>
    %433 = tpu.matmul %428, %430, %cst_145 {dimension_numbers = #tpu.dot_dimension_numbers<[1], [1], [0], [0], [0, 0, 1, 0], [], []>} : vector<8x4xbf16>, vector<8x4xbf16>, vector<8x8xf32> -> vector<8x8xf32>
    "tpu.trace_stop"() : () -> ()
    %434 = arith.addf %433, %5 : vector<8x8xf32>
    %cst_146 = arith.constant dense<0xFF800000> : vector<8xf32>
    %435 = vector.multi_reduction <maximumf>, %434, %cst_146 [1] : vector<8x8xf32> to vector<8xf32>
    %436 = vector.shape_cast %435 : vector<8xf32> to vector<8x1xf32>
    %437 = vector.broadcast %436 : vector<8x1xf32> to vector<8x8xf32>
    %438 = arith.subf %434, %437 : vector<8x8xf32>
    %439 = math.exp %438 : vector<8x8xf32>
    %cst_147 = arith.constant dense<0.000000e+00> : vector<8xf32>
    %440 = vector.multi_reduction <add>, %439, %cst_147 [1] : vector<8x8xf32> to vector<8xf32>
    %441 = vector.shape_cast %440 : vector<8xf32> to vector<8x1xf32>
    %442 = tpu.reciprocal %441 {approx = true} : vector<8x1xf32> -> vector<8x1xf32>
    %443 = vector.broadcast %442 : vector<8x1xf32> to vector<8x8xf32>
    %444 = arith.mulf %439, %443 : vector<8x8xf32>
    %445 = arith.truncf %444 : vector<8x8xf32> to vector<8x8xbf16>
    "tpu.trace_start"() <{level = 10 : i32, message = "ts,sd->td"}> : () -> ()
    %cst_148 = arith.constant dense<0.000000e+00> : vector<8x4xf32>
    %446 = tpu.matmul %445, %432, %cst_148 {dimension_numbers = #tpu.dot_dimension_numbers<[1], [0], [0], [1], [0, 0, 1, 1], [], []>} : vector<8x8xbf16>, vector<8x4xbf16>, vector<8x4xf32> -> vector<8x4xf32>
    "tpu.trace_stop"() : () -> ()
    %447 = vector.extract_strided_slice %372 {offsets = [0, 12], sizes = [8, 4], strides = [1, 1]} : vector<8x16xf32> to vector<8x4xf32>
    %cst_149 = arith.constant 5.000000e-01 : f32
    %448 = vector.broadcast %cst_149 : f32 to vector<8x4xf32>
    %449 = arith.mulf %447, %448 : vector<8x4xf32>
    %450 = arith.truncf %449 : vector<8x4xf32> to vector<8x4xbf16>
    %451 = vector.extract_strided_slice %379 {offsets = [0, 12], sizes = [8, 4], strides = [1, 1]} : vector<8x16xf32> to vector<8x4xf32>
    %452 = arith.truncf %451 : vector<8x4xf32> to vector<8x4xbf16>
    %453 = vector.extract_strided_slice %380 {offsets = [0, 12], sizes = [8, 4], strides = [1, 1]} : vector<8x16xf32> to vector<8x4xf32>
    %454 = arith.truncf %453 : vector<8x4xf32> to vector<8x4xbf16>
    "tpu.trace_start"() <{level = 10 : i32, message = "td,sd->ts"}> : () -> ()
    %cst_150 = arith.constant dense<0.000000e+00> : vector<8x8xf32>
    %455 = tpu.matmul %450, %452, %cst_150 {dimension_numbers = #tpu.dot_dimension_numbers<[1], [1], [0], [0], [0, 0, 1, 0], [], []>} : vector<8x4xbf16>, vector<8x4xbf16>, vector<8x8xf32> -> vector<8x8xf32>
    "tpu.trace_stop"() : () -> ()
    %456 = arith.addf %455, %5 : vector<8x8xf32>
    %cst_151 = arith.constant dense<0xFF800000> : vector<8xf32>
    %457 = vector.multi_reduction <maximumf>, %456, %cst_151 [1] : vector<8x8xf32> to vector<8xf32>
    %458 = vector.shape_cast %457 : vector<8xf32> to vector<8x1xf32>
    %459 = vector.broadcast %458 : vector<8x1xf32> to vector<8x8xf32>
    %460 = arith.subf %456, %459 : vector<8x8xf32>
    %461 = math.exp %460 : vector<8x8xf32>
    %cst_152 = arith.constant dense<0.000000e+00> : vector<8xf32>
    %462 = vector.multi_reduction <add>, %461, %cst_152 [1] : vector<8x8xf32> to vector<8xf32>
    %463 = vector.shape_cast %462 : vector<8xf32> to vector<8x1xf32>
    %464 = tpu.reciprocal %463 {approx = true} : vector<8x1xf32> -> vector<8x1xf32>
    %465 = vector.broadcast %464 : vector<8x1xf32> to vector<8x8xf32>
    %466 = arith.mulf %461, %465 : vector<8x8xf32>
    %467 = arith.truncf %466 : vector<8x8xf32> to vector<8x8xbf16>
    "tpu.trace_start"() <{level = 10 : i32, message = "ts,sd->td"}> : () -> ()
    %cst_153 = arith.constant dense<0.000000e+00> : vector<8x4xf32>
    %468 = tpu.matmul %467, %454, %cst_153 {dimension_numbers = #tpu.dot_dimension_numbers<[1], [0], [0], [1], [0, 0, 1, 1], [], []>} : vector<8x8xbf16>, vector<8x4xbf16>, vector<8x4xf32> -> vector<8x4xf32>
    "tpu.trace_stop"() : () -> ()
    %469 = tpu.concatenate %402, %424, %446, %468 in 1 : vector<8x4xf32>, vector<8x4xf32>, vector<8x4xf32>, vector<8x4xf32> -> vector<8x16xf32>
    %470 = arith.truncf %469 : vector<8x16xf32> to vector<8x16xbf16>
    %c0_154 = arith.constant 0 : index
    %c0_155 = arith.constant 0 : index
    %c0_156 = arith.constant 0 : index
    %471 = vector.load %arg17[%c0_154, %c0_155, %c0_156] : memref<2x16x16xf32, #tpu.memory_space<vmem>>, vector<1x16x16xf32>
    %472 = vector.shape_cast %471 : vector<1x16x16xf32> to vector<16x16xf32>
    %473 = arith.truncf %472 : vector<16x16xf32> to vector<16x16xbf16>
    %cst_157 = arith.constant dense<0.000000e+00> : vector<8x16xf32>
    %474 = tpu.matmul %470, %473, %cst_157 {dimension_numbers = #tpu.dot_dimension_numbers<[1], [0], [0], [1], [0, 0, 1, 1], [], []>} : vector<8x16xbf16>, vector<16x16xbf16>, vector<8x16xf32> -> vector<8x16xf32>
    %c0_158 = arith.constant 0 : index
    %c0_159 = arith.constant 0 : index
    %c0_160 = arith.constant 0 : index
    %475 = vector.load %arg18[%c0_158, %c0_159, %c0_160] : memref<2x1x16xf32, #tpu.memory_space<vmem>>, vector<1x1x16xf32>
    %476 = vector.shape_cast %475 : vector<1x1x16xf32> to vector<1x16xf32>
    %477 = vector.broadcast %476 : vector<1x16xf32> to vector<8x16xf32>
    %478 = arith.addf %474, %477 : vector<8x16xf32>
    %479 = arith.mulf %478, %478 : vector<8x16xf32>
    %480 = arith.mulf %478, %479 : vector<8x16xf32>
    %cst_161 = arith.constant 4.471500e-02 : f32
    %481 = vector.broadcast %cst_161 : f32 to vector<8x16xf32>
    %482 = arith.mulf %481, %480 : vector<8x16xf32>
    %483 = arith.addf %478, %482 : vector<8x16xf32>
    %cst_162 = arith.constant 0.797884583 : f32
    %484 = vector.broadcast %cst_162 : f32 to vector<8x16xf32>
    %485 = arith.mulf %484, %483 : vector<8x16xf32>
    %486 = math.tanh %485 : vector<8x16xf32>
    %cst_163 = arith.constant 1.000000e+00 : f32
    %487 = vector.broadcast %cst_163 : f32 to vector<8x16xf32>
    %488 = arith.addf %487, %486 : vector<8x16xf32>
    %cst_164 = arith.constant 5.000000e-01 : f32
    %489 = vector.broadcast %cst_164 : f32 to vector<8x16xf32>
    %490 = arith.mulf %489, %488 : vector<8x16xf32>
    %491 = arith.mulf %478, %490 : vector<8x16xf32>
    %492 = arith.truncf %491 : vector<8x16xf32> to vector<8x16xbf16>
    %c0_165 = arith.constant 0 : index
    %c0_166 = arith.constant 0 : index
    %c0_167 = arith.constant 0 : index
    %493 = vector.load %arg19[%c0_165, %c0_166, %c0_167] : memref<2x16x32xf32, #tpu.memory_space<vmem>>, vector<1x16x32xf32>
    %494 = vector.shape_cast %493 : vector<1x16x32xf32> to vector<16x32xf32>
    %495 = arith.truncf %494 : vector<16x32xf32> to vector<16x32xbf16>
    %cst_168 = arith.constant dense<0.000000e+00> : vector<8x32xf32>
    %496 = tpu.matmul %492, %495, %cst_168 {dimension_numbers = #tpu.dot_dimension_numbers<[1], [0], [0], [1], [0, 0, 1, 1], [], []>} : vector<8x16xbf16>, vector<16x32xbf16>, vector<8x32xf32> -> vector<8x32xf32>
    %497 = arith.addf %360, %496 : vector<8x32xf32>
    %c0_169 = arith.constant 0 : index
    %c0_170 = arith.constant 0 : index
    %c0_171 = arith.constant 0 : index
    %498 = vector.load %arg20[%c0_169, %c0_170, %c0_171] : memref<2x1x32xf32, #tpu.memory_space<vmem>>, vector<1x1x32xf32>
    %499 = vector.shape_cast %498 : vector<1x1x32xf32> to vector<1x32xf32>
    %500 = vector.broadcast %499 : vector<1x32xf32> to vector<8x32xf32>
    %501 = arith.addf %497, %500 : vector<8x32xf32>
    %502 = arith.addf %157, %501 : vector<8x32xf32>
    %503 = vector.broadcast %21 : vector<1x32xf32> to vector<8x32xf32>
    %504 = arith.addf %502, %503 : vector<8x32xf32>
    %cst_172 = arith.constant 0.000000e+00 : f32
    %505 = vector.broadcast %cst_172 : f32 to vector<8x32xf32>
    %506 = arith.truncf %359 : vector<8x16xf32> to vector<8x16xbf16>
    %507 = arith.truncf %326 : vector<8x16xf32> to vector<8x16xbf16>
    %c1_173 = arith.constant 1 : index
    %c0_174 = arith.constant 0 : index
    %c0_175 = arith.constant 0 : index
    %508 = vector.load %arg15[%c1_173, %c0_174, %c0_175] : memref<2x16x48xf32, #tpu.memory_space<vmem>>, vector<1x16x48xf32>
    %509 = vector.shape_cast %508 : vector<1x16x48xf32> to vector<16x48xf32>
    %c1_176 = arith.constant 1 : index
    %c0_177 = arith.constant 0 : index
    %c0_178 = arith.constant 0 : index
    %510 = vector.load %arg16[%c1_176, %c0_177, %c0_178] : memref<2x1x48xf32, #tpu.memory_space<vmem>>, vector<1x1x48xf32>
    %511 = vector.shape_cast %510 : vector<1x1x48xf32> to vector<1x48xf32>
    %512 = vector.extract_strided_slice %509 {offsets = [0, 0], sizes = [16, 16], strides = [1, 1]} : vector<16x48xf32> to vector<16x16xf32>
    %513 = arith.truncf %512 : vector<16x16xf32> to vector<16x16xbf16>
    %cst_179 = arith.constant dense<0.000000e+00> : vector<8x16xf32>
    %514 = tpu.matmul %506, %513, %cst_179 {dimension_numbers = #tpu.dot_dimension_numbers<[1], [0], [0], [1], [0, 0, 1, 1], [], []>} : vector<8x16xbf16>, vector<16x16xbf16>, vector<8x16xf32> -> vector<8x16xf32>
    %515 = vector.extract_strided_slice %511 {offsets = [0, 0], sizes = [1, 16], strides = [1, 1]} : vector<1x48xf32> to vector<1x16xf32>
    %516 = vector.broadcast %515 : vector<1x16xf32> to vector<8x16xf32>
    %517 = arith.addf %514, %516 : vector<8x16xf32>
    %518 = vector.extract_strided_slice %509 {offsets = [0, 16], sizes = [16, 32], strides = [1, 1]} : vector<16x48xf32> to vector<16x32xf32>
    %519 = arith.truncf %518 : vector<16x32xf32> to vector<16x32xbf16>
    %cst_180 = arith.constant dense<0.000000e+00> : vector<8x32xf32>
    %520 = tpu.matmul %507, %519, %cst_180 {dimension_numbers = #tpu.dot_dimension_numbers<[1], [0], [0], [1], [0, 0, 1, 1], [], []>} : vector<8x16xbf16>, vector<16x32xbf16>, vector<8x32xf32> -> vector<8x32xf32>
    %521 = vector.extract_strided_slice %511 {offsets = [0, 16], sizes = [1, 32], strides = [1, 1]} : vector<1x48xf32> to vector<1x32xf32>
    %522 = vector.broadcast %521 : vector<1x32xf32> to vector<8x32xf32>
    %523 = arith.addf %520, %522 : vector<8x32xf32>
    %524 = vector.extract_strided_slice %523 {offsets = [0, 0], sizes = [8, 16], strides = [1, 1]} : vector<8x32xf32> to vector<8x16xf32>
    %525 = vector.extract_strided_slice %523 {offsets = [0, 16], sizes = [8, 16], strides = [1, 1]} : vector<8x32xf32> to vector<8x16xf32>
    %526 = vector.extract_strided_slice %517 {offsets = [0, 0], sizes = [8, 4], strides = [1, 1]} : vector<8x16xf32> to vector<8x4xf32>
    %cst_181 = arith.constant 5.000000e-01 : f32
    %527 = vector.broadcast %cst_181 : f32 to vector<8x4xf32>
    %528 = arith.mulf %526, %527 : vector<8x4xf32>
    %529 = arith.truncf %528 : vector<8x4xf32> to vector<8x4xbf16>
    %530 = vector.extract_strided_slice %524 {offsets = [0, 0], sizes = [8, 4], strides = [1, 1]} : vector<8x16xf32> to vector<8x4xf32>
    %531 = arith.truncf %530 : vector<8x4xf32> to vector<8x4xbf16>
    %532 = vector.extract_strided_slice %525 {offsets = [0, 0], sizes = [8, 4], strides = [1, 1]} : vector<8x16xf32> to vector<8x4xf32>
    %533 = arith.truncf %532 : vector<8x4xf32> to vector<8x4xbf16>
    "tpu.trace_start"() <{level = 10 : i32, message = "td,sd->ts"}> : () -> ()
    %cst_182 = arith.constant dense<0.000000e+00> : vector<8x8xf32>
    %534 = tpu.matmul %529, %531, %cst_182 {dimension_numbers = #tpu.dot_dimension_numbers<[1], [1], [0], [0], [0, 0, 1, 0], [], []>} : vector<8x4xbf16>, vector<8x4xbf16>, vector<8x8xf32> -> vector<8x8xf32>
    "tpu.trace_stop"() : () -> ()
    %535 = arith.addf %534, %5 : vector<8x8xf32>
    %cst_183 = arith.constant dense<0xFF800000> : vector<8xf32>
    %536 = vector.multi_reduction <maximumf>, %535, %cst_183 [1] : vector<8x8xf32> to vector<8xf32>
    %537 = vector.shape_cast %536 : vector<8xf32> to vector<8x1xf32>
    %538 = vector.broadcast %537 : vector<8x1xf32> to vector<8x8xf32>
    %539 = arith.subf %535, %538 : vector<8x8xf32>
    %540 = math.exp %539 : vector<8x8xf32>
    %cst_184 = arith.constant dense<0.000000e+00> : vector<8xf32>
    %541 = vector.multi_reduction <add>, %540, %cst_184 [1] : vector<8x8xf32> to vector<8xf32>
    %542 = vector.shape_cast %541 : vector<8xf32> to vector<8x1xf32>
    %543 = tpu.reciprocal %542 {approx = true} : vector<8x1xf32> -> vector<8x1xf32>
    %544 = vector.broadcast %543 : vector<8x1xf32> to vector<8x8xf32>
    %545 = arith.mulf %540, %544 : vector<8x8xf32>
    %546 = arith.truncf %545 : vector<8x8xf32> to vector<8x8xbf16>
    "tpu.trace_start"() <{level = 10 : i32, message = "ts,sd->td"}> : () -> ()
    %cst_185 = arith.constant dense<0.000000e+00> : vector<8x4xf32>
    %547 = tpu.matmul %546, %533, %cst_185 {dimension_numbers = #tpu.dot_dimension_numbers<[1], [0], [0], [1], [0, 0, 1, 1], [], []>} : vector<8x8xbf16>, vector<8x4xbf16>, vector<8x4xf32> -> vector<8x4xf32>
    "tpu.trace_stop"() : () -> ()
    %548 = vector.extract_strided_slice %517 {offsets = [0, 4], sizes = [8, 4], strides = [1, 1]} : vector<8x16xf32> to vector<8x4xf32>
    %cst_186 = arith.constant 5.000000e-01 : f32
    %549 = vector.broadcast %cst_186 : f32 to vector<8x4xf32>
    %550 = arith.mulf %548, %549 : vector<8x4xf32>
    %551 = arith.truncf %550 : vector<8x4xf32> to vector<8x4xbf16>
    %552 = vector.extract_strided_slice %524 {offsets = [0, 4], sizes = [8, 4], strides = [1, 1]} : vector<8x16xf32> to vector<8x4xf32>
    %553 = arith.truncf %552 : vector<8x4xf32> to vector<8x4xbf16>
    %554 = vector.extract_strided_slice %525 {offsets = [0, 4], sizes = [8, 4], strides = [1, 1]} : vector<8x16xf32> to vector<8x4xf32>
    %555 = arith.truncf %554 : vector<8x4xf32> to vector<8x4xbf16>
    "tpu.trace_start"() <{level = 10 : i32, message = "td,sd->ts"}> : () -> ()
    %cst_187 = arith.constant dense<0.000000e+00> : vector<8x8xf32>
    %556 = tpu.matmul %551, %553, %cst_187 {dimension_numbers = #tpu.dot_dimension_numbers<[1], [1], [0], [0], [0, 0, 1, 0], [], []>} : vector<8x4xbf16>, vector<8x4xbf16>, vector<8x8xf32> -> vector<8x8xf32>
    "tpu.trace_stop"() : () -> ()
    %557 = arith.addf %556, %5 : vector<8x8xf32>
    %cst_188 = arith.constant dense<0xFF800000> : vector<8xf32>
    %558 = vector.multi_reduction <maximumf>, %557, %cst_188 [1] : vector<8x8xf32> to vector<8xf32>
    %559 = vector.shape_cast %558 : vector<8xf32> to vector<8x1xf32>
    %560 = vector.broadcast %559 : vector<8x1xf32> to vector<8x8xf32>
    %561 = arith.subf %557, %560 : vector<8x8xf32>
    %562 = math.exp %561 : vector<8x8xf32>
    %cst_189 = arith.constant dense<0.000000e+00> : vector<8xf32>
    %563 = vector.multi_reduction <add>, %562, %cst_189 [1] : vector<8x8xf32> to vector<8xf32>
    %564 = vector.shape_cast %563 : vector<8xf32> to vector<8x1xf32>
    %565 = tpu.reciprocal %564 {approx = true} : vector<8x1xf32> -> vector<8x1xf32>
    %566 = vector.broadcast %565 : vector<8x1xf32> to vector<8x8xf32>
    %567 = arith.mulf %562, %566 : vector<8x8xf32>
    %568 = arith.truncf %567 : vector<8x8xf32> to vector<8x8xbf16>
    "tpu.trace_start"() <{level = 10 : i32, message = "ts,sd->td"}> : () -> ()
    %cst_190 = arith.constant dense<0.000000e+00> : vector<8x4xf32>
    %569 = tpu.matmul %568, %555, %cst_190 {dimension_numbers = #tpu.dot_dimension_numbers<[1], [0], [0], [1], [0, 0, 1, 1], [], []>} : vector<8x8xbf16>, vector<8x4xbf16>, vector<8x4xf32> -> vector<8x4xf32>
    "tpu.trace_stop"() : () -> ()
    %570 = vector.extract_strided_slice %517 {offsets = [0, 8], sizes = [8, 4], strides = [1, 1]} : vector<8x16xf32> to vector<8x4xf32>
    %cst_191 = arith.constant 5.000000e-01 : f32
    %571 = vector.broadcast %cst_191 : f32 to vector<8x4xf32>
    %572 = arith.mulf %570, %571 : vector<8x4xf32>
    %573 = arith.truncf %572 : vector<8x4xf32> to vector<8x4xbf16>
    %574 = vector.extract_strided_slice %524 {offsets = [0, 8], sizes = [8, 4], strides = [1, 1]} : vector<8x16xf32> to vector<8x4xf32>
    %575 = arith.truncf %574 : vector<8x4xf32> to vector<8x4xbf16>
    %576 = vector.extract_strided_slice %525 {offsets = [0, 8], sizes = [8, 4], strides = [1, 1]} : vector<8x16xf32> to vector<8x4xf32>
    %577 = arith.truncf %576 : vector<8x4xf32> to vector<8x4xbf16>
    "tpu.trace_start"() <{level = 10 : i32, message = "td,sd->ts"}> : () -> ()
    %cst_192 = arith.constant dense<0.000000e+00> : vector<8x8xf32>
    %578 = tpu.matmul %573, %575, %cst_192 {dimension_numbers = #tpu.dot_dimension_numbers<[1], [1], [0], [0], [0, 0, 1, 0], [], []>} : vector<8x4xbf16>, vector<8x4xbf16>, vector<8x8xf32> -> vector<8x8xf32>
    "tpu.trace_stop"() : () -> ()
    %579 = arith.addf %578, %5 : vector<8x8xf32>
    %cst_193 = arith.constant dense<0xFF800000> : vector<8xf32>
    %580 = vector.multi_reduction <maximumf>, %579, %cst_193 [1] : vector<8x8xf32> to vector<8xf32>
    %581 = vector.shape_cast %580 : vector<8xf32> to vector<8x1xf32>
    %582 = vector.broadcast %581 : vector<8x1xf32> to vector<8x8xf32>
    %583 = arith.subf %579, %582 : vector<8x8xf32>
    %584 = math.exp %583 : vector<8x8xf32>
    %cst_194 = arith.constant dense<0.000000e+00> : vector<8xf32>
    %585 = vector.multi_reduction <add>, %584, %cst_194 [1] : vector<8x8xf32> to vector<8xf32>
    %586 = vector.shape_cast %585 : vector<8xf32> to vector<8x1xf32>
    %587 = tpu.reciprocal %586 {approx = true} : vector<8x1xf32> -> vector<8x1xf32>
    %588 = vector.broadcast %587 : vector<8x1xf32> to vector<8x8xf32>
    %589 = arith.mulf %584, %588 : vector<8x8xf32>
    %590 = arith.truncf %589 : vector<8x8xf32> to vector<8x8xbf16>
    "tpu.trace_start"() <{level = 10 : i32, message = "ts,sd->td"}> : () -> ()
    %cst_195 = arith.constant dense<0.000000e+00> : vector<8x4xf32>
    %591 = tpu.matmul %590, %577, %cst_195 {dimension_numbers = #tpu.dot_dimension_numbers<[1], [0], [0], [1], [0, 0, 1, 1], [], []>} : vector<8x8xbf16>, vector<8x4xbf16>, vector<8x4xf32> -> vector<8x4xf32>
    "tpu.trace_stop"() : () -> ()
    %592 = vector.extract_strided_slice %517 {offsets = [0, 12], sizes = [8, 4], strides = [1, 1]} : vector<8x16xf32> to vector<8x4xf32>
    %cst_196 = arith.constant 5.000000e-01 : f32
    %593 = vector.broadcast %cst_196 : f32 to vector<8x4xf32>
    %594 = arith.mulf %592, %593 : vector<8x4xf32>
    %595 = arith.truncf %594 : vector<8x4xf32> to vector<8x4xbf16>
    %596 = vector.extract_strided_slice %524 {offsets = [0, 12], sizes = [8, 4], strides = [1, 1]} : vector<8x16xf32> to vector<8x4xf32>
    %597 = arith.truncf %596 : vector<8x4xf32> to vector<8x4xbf16>
    %598 = vector.extract_strided_slice %525 {offsets = [0, 12], sizes = [8, 4], strides = [1, 1]} : vector<8x16xf32> to vector<8x4xf32>
    %599 = arith.truncf %598 : vector<8x4xf32> to vector<8x4xbf16>
    "tpu.trace_start"() <{level = 10 : i32, message = "td,sd->ts"}> : () -> ()
    %cst_197 = arith.constant dense<0.000000e+00> : vector<8x8xf32>
    %600 = tpu.matmul %595, %597, %cst_197 {dimension_numbers = #tpu.dot_dimension_numbers<[1], [1], [0], [0], [0, 0, 1, 0], [], []>} : vector<8x4xbf16>, vector<8x4xbf16>, vector<8x8xf32> -> vector<8x8xf32>
    "tpu.trace_stop"() : () -> ()
    %601 = arith.addf %600, %5 : vector<8x8xf32>
    %cst_198 = arith.constant dense<0xFF800000> : vector<8xf32>
    %602 = vector.multi_reduction <maximumf>, %601, %cst_198 [1] : vector<8x8xf32> to vector<8xf32>
    %603 = vector.shape_cast %602 : vector<8xf32> to vector<8x1xf32>
    %604 = vector.broadcast %603 : vector<8x1xf32> to vector<8x8xf32>
    %605 = arith.subf %601, %604 : vector<8x8xf32>
    %606 = math.exp %605 : vector<8x8xf32>
    %cst_199 = arith.constant dense<0.000000e+00> : vector<8xf32>
    %607 = vector.multi_reduction <add>, %606, %cst_199 [1] : vector<8x8xf32> to vector<8xf32>
    %608 = vector.shape_cast %607 : vector<8xf32> to vector<8x1xf32>
    %609 = tpu.reciprocal %608 {approx = true} : vector<8x1xf32> -> vector<8x1xf32>
    %610 = vector.broadcast %609 : vector<8x1xf32> to vector<8x8xf32>
    %611 = arith.mulf %606, %610 : vector<8x8xf32>
    %612 = arith.truncf %611 : vector<8x8xf32> to vector<8x8xbf16>
    "tpu.trace_start"() <{level = 10 : i32, message = "ts,sd->td"}> : () -> ()
    %cst_200 = arith.constant dense<0.000000e+00> : vector<8x4xf32>
    %613 = tpu.matmul %612, %599, %cst_200 {dimension_numbers = #tpu.dot_dimension_numbers<[1], [0], [0], [1], [0, 0, 1, 1], [], []>} : vector<8x8xbf16>, vector<8x4xbf16>, vector<8x4xf32> -> vector<8x4xf32>
    "tpu.trace_stop"() : () -> ()
    %614 = tpu.concatenate %547, %569, %591, %613 in 1 : vector<8x4xf32>, vector<8x4xf32>, vector<8x4xf32>, vector<8x4xf32> -> vector<8x16xf32>
    %615 = arith.truncf %614 : vector<8x16xf32> to vector<8x16xbf16>
    %c1_201 = arith.constant 1 : index
    %c0_202 = arith.constant 0 : index
    %c0_203 = arith.constant 0 : index
    %616 = vector.load %arg17[%c1_201, %c0_202, %c0_203] : memref<2x16x16xf32, #tpu.memory_space<vmem>>, vector<1x16x16xf32>
    %617 = vector.shape_cast %616 : vector<1x16x16xf32> to vector<16x16xf32>
    %618 = arith.truncf %617 : vector<16x16xf32> to vector<16x16xbf16>
    %cst_204 = arith.constant dense<0.000000e+00> : vector<8x16xf32>
    %619 = tpu.matmul %615, %618, %cst_204 {dimension_numbers = #tpu.dot_dimension_numbers<[1], [0], [0], [1], [0, 0, 1, 1], [], []>} : vector<8x16xbf16>, vector<16x16xbf16>, vector<8x16xf32> -> vector<8x16xf32>
    %c1_205 = arith.constant 1 : index
    %c0_206 = arith.constant 0 : index
    %c0_207 = arith.constant 0 : index
    %620 = vector.load %arg18[%c1_205, %c0_206, %c0_207] : memref<2x1x16xf32, #tpu.memory_space<vmem>>, vector<1x1x16xf32>
    %621 = vector.shape_cast %620 : vector<1x1x16xf32> to vector<1x16xf32>
    %622 = vector.broadcast %621 : vector<1x16xf32> to vector<8x16xf32>
    %623 = arith.addf %619, %622 : vector<8x16xf32>
    %624 = arith.mulf %623, %623 : vector<8x16xf32>
    %625 = arith.mulf %623, %624 : vector<8x16xf32>
    %cst_208 = arith.constant 4.471500e-02 : f32
    %626 = vector.broadcast %cst_208 : f32 to vector<8x16xf32>
    %627 = arith.mulf %626, %625 : vector<8x16xf32>
    %628 = arith.addf %623, %627 : vector<8x16xf32>
    %cst_209 = arith.constant 0.797884583 : f32
    %629 = vector.broadcast %cst_209 : f32 to vector<8x16xf32>
    %630 = arith.mulf %629, %628 : vector<8x16xf32>
    %631 = math.tanh %630 : vector<8x16xf32>
    %cst_210 = arith.constant 1.000000e+00 : f32
    %632 = vector.broadcast %cst_210 : f32 to vector<8x16xf32>
    %633 = arith.addf %632, %631 : vector<8x16xf32>
    %cst_211 = arith.constant 5.000000e-01 : f32
    %634 = vector.broadcast %cst_211 : f32 to vector<8x16xf32>
    %635 = arith.mulf %634, %633 : vector<8x16xf32>
    %636 = arith.mulf %623, %635 : vector<8x16xf32>
    %637 = arith.truncf %636 : vector<8x16xf32> to vector<8x16xbf16>
    %c1_212 = arith.constant 1 : index
    %c0_213 = arith.constant 0 : index
    %c0_214 = arith.constant 0 : index
    %638 = vector.load %arg19[%c1_212, %c0_213, %c0_214] : memref<2x16x32xf32, #tpu.memory_space<vmem>>, vector<1x16x32xf32>
    %639 = vector.shape_cast %638 : vector<1x16x32xf32> to vector<16x32xf32>
    %640 = arith.truncf %639 : vector<16x32xf32> to vector<16x32xbf16>
    %cst_215 = arith.constant dense<0.000000e+00> : vector<8x32xf32>
    %641 = tpu.matmul %637, %640, %cst_215 {dimension_numbers = #tpu.dot_dimension_numbers<[1], [0], [0], [1], [0, 0, 1, 1], [], []>} : vector<8x16xbf16>, vector<16x32xbf16>, vector<8x32xf32> -> vector<8x32xf32>
    %642 = arith.addf %505, %641 : vector<8x32xf32>
    %c1_216 = arith.constant 1 : index
    %c0_217 = arith.constant 0 : index
    %c0_218 = arith.constant 0 : index
    %643 = vector.load %arg20[%c1_216, %c0_217, %c0_218] : memref<2x1x32xf32, #tpu.memory_space<vmem>>, vector<1x1x32xf32>
    %644 = vector.shape_cast %643 : vector<1x1x32xf32> to vector<1x32xf32>
    %645 = vector.broadcast %644 : vector<1x32xf32> to vector<8x32xf32>
    %646 = arith.addf %642, %645 : vector<8x32xf32>
    %647 = arith.addf %293, %646 : vector<8x32xf32>
    %648 = vector.broadcast %21 : vector<1x32xf32> to vector<8x32xf32>
    %649 = arith.addf %647, %648 : vector<8x32xf32>
    %650 = vector.extract_strided_slice %17 {offsets = [0, 0], sizes = [1, 32], strides = [1, 1]} : vector<2x32xf32> to vector<1x32xf32>
    %651 = vector.extract_strided_slice %19 {offsets = [0, 0], sizes = [1, 32], strides = [1, 1]} : vector<2x32xf32> to vector<1x32xf32>
    %cst_219 = arith.constant dense<0.000000e+00> : vector<8xf32>
    %652 = vector.multi_reduction <add>, %504, %cst_219 [1] : vector<8x32xf32> to vector<8xf32>
    %653 = vector.shape_cast %652 : vector<8xf32> to vector<8x1xf32>
    %cst_220 = arith.constant 3.200000e+01 : f32
    %654 = vector.broadcast %cst_220 : f32 to vector<8x1xf32>
    %655 = arith.divf %653, %654 : vector<8x1xf32>
    %656 = vector.broadcast %655 : vector<8x1xf32> to vector<8x32xf32>
    %657 = arith.subf %504, %656 : vector<8x32xf32>
    %658 = arith.mulf %657, %657 : vector<8x32xf32>
    %cst_221 = arith.constant dense<0.000000e+00> : vector<8xf32>
    %659 = vector.multi_reduction <add>, %658, %cst_221 [1] : vector<8x32xf32> to vector<8xf32>
    %660 = vector.shape_cast %659 : vector<8xf32> to vector<8x1xf32>
    %cst_222 = arith.constant 3.200000e+01 : f32
    %661 = vector.broadcast %cst_222 : f32 to vector<8x1xf32>
    %662 = arith.divf %660, %661 : vector<8x1xf32>
    %663 = vector.broadcast %655 : vector<8x1xf32> to vector<8x32xf32>
    %664 = arith.subf %504, %663 : vector<8x32xf32>
    %cst_223 = arith.constant 9.99999974E-6 : f32
    %665 = vector.broadcast %cst_223 : f32 to vector<8x1xf32>
    %666 = arith.addf %662, %665 : vector<8x1xf32>
    %667 = math.rsqrt %666 : vector<8x1xf32>
    %668 = vector.broadcast %667 : vector<8x1xf32> to vector<8x32xf32>
    %669 = arith.mulf %664, %668 : vector<8x32xf32>
    %670 = vector.broadcast %650 : vector<1x32xf32> to vector<8x32xf32>
    %671 = arith.mulf %669, %670 : vector<8x32xf32>
    %672 = vector.broadcast %651 : vector<1x32xf32> to vector<8x32xf32>
    %673 = arith.addf %671, %672 : vector<8x32xf32>
    %674 = arith.truncf %673 : vector<8x32xf32> to vector<8x32xbf16>
    %c0_224 = arith.constant 0 : index
    %c0_225 = arith.constant 0 : index
    %c0_226 = arith.constant 0 : index
    %675 = vector.load %arg21[%c0_224, %c0_225, %c0_226] : memref<2x32x64xf32, #tpu.memory_space<vmem>>, vector<1x32x64xf32>
    %676 = vector.shape_cast %675 : vector<1x32x64xf32> to vector<32x64xf32>
    %677 = arith.truncf %676 : vector<32x64xf32> to vector<32x64xbf16>
    %cst_227 = arith.constant dense<0.000000e+00> : vector<8x64xf32>
    %678 = tpu.matmul %674, %677, %cst_227 {dimension_numbers = #tpu.dot_dimension_numbers<[1], [0], [0], [1], [0, 0, 1, 1], [], []>} : vector<8x32xbf16>, vector<32x64xbf16>, vector<8x64xf32> -> vector<8x64xf32>
    %c0_228 = arith.constant 0 : index
    %c0_229 = arith.constant 0 : index
    %c0_230 = arith.constant 0 : index
    %679 = vector.load %arg22[%c0_228, %c0_229, %c0_230] : memref<2x1x64xf32, #tpu.memory_space<vmem>>, vector<1x1x64xf32>
    %680 = vector.shape_cast %679 : vector<1x1x64xf32> to vector<1x64xf32>
    %681 = vector.broadcast %680 : vector<1x64xf32> to vector<8x64xf32>
    %682 = arith.addf %678, %681 : vector<8x64xf32>
    %683 = arith.mulf %682, %682 : vector<8x64xf32>
    %684 = arith.mulf %682, %683 : vector<8x64xf32>
    %cst_231 = arith.constant 4.471500e-02 : f32
    %685 = vector.broadcast %cst_231 : f32 to vector<8x64xf32>
    %686 = arith.mulf %685, %684 : vector<8x64xf32>
    %687 = arith.addf %682, %686 : vector<8x64xf32>
    %cst_232 = arith.constant 0.797884583 : f32
    %688 = vector.broadcast %cst_232 : f32 to vector<8x64xf32>
    %689 = arith.mulf %688, %687 : vector<8x64xf32>
    %690 = math.tanh %689 : vector<8x64xf32>
    %cst_233 = arith.constant 1.000000e+00 : f32
    %691 = vector.broadcast %cst_233 : f32 to vector<8x64xf32>
    %692 = arith.addf %691, %690 : vector<8x64xf32>
    %cst_234 = arith.constant 5.000000e-01 : f32
    %693 = vector.broadcast %cst_234 : f32 to vector<8x64xf32>
    %694 = arith.mulf %693, %692 : vector<8x64xf32>
    %695 = arith.mulf %682, %694 : vector<8x64xf32>
    %696 = arith.truncf %695 : vector<8x64xf32> to vector<8x64xbf16>
    %c0_235 = arith.constant 0 : index
    %c0_236 = arith.constant 0 : index
    %c0_237 = arith.constant 0 : index
    %697 = vector.load %arg23[%c0_235, %c0_236, %c0_237] : memref<2x64x32xf32, #tpu.memory_space<vmem>>, vector<1x64x32xf32>
    %698 = vector.shape_cast %697 : vector<1x64x32xf32> to vector<64x32xf32>
    %699 = arith.truncf %698 : vector<64x32xf32> to vector<64x32xbf16>
    %cst_238 = arith.constant dense<0.000000e+00> : vector<8x32xf32>
    %700 = tpu.matmul %696, %699, %cst_238 {dimension_numbers = #tpu.dot_dimension_numbers<[1], [0], [0], [1], [0, 0, 1, 1], [], []>} : vector<8x64xbf16>, vector<64x32xbf16>, vector<8x32xf32> -> vector<8x32xf32>
    %c0_239 = arith.constant 0 : index
    %c0_240 = arith.constant 0 : index
    %c0_241 = arith.constant 0 : index
    %701 = vector.load %arg24[%c0_239, %c0_240, %c0_241] : memref<2x1x32xf32, #tpu.memory_space<vmem>>, vector<1x1x32xf32>
    %702 = vector.shape_cast %701 : vector<1x1x32xf32> to vector<1x32xf32>
    %703 = vector.broadcast %702 : vector<1x32xf32> to vector<8x32xf32>
    %704 = arith.addf %700, %703 : vector<8x32xf32>
    %705 = arith.addf %504, %704 : vector<8x32xf32>
    %706 = arith.truncf %705 : vector<8x32xf32> to vector<8x32xbf16>
    %c0_242 = arith.constant 0 : index
    %c0_243 = arith.constant 0 : index
    %c0_244 = arith.constant 0 : index
    %707 = vector.load %arg25[%c0_242, %c0_243, %c0_244] : memref<2x32x32xf32, #tpu.memory_space<vmem>>, vector<1x32x32xf32>
    %708 = vector.shape_cast %707 : vector<1x32x32xf32> to vector<32x32xf32>
    %709 = arith.truncf %708 : vector<32x32xf32> to vector<32x32xbf16>
    %cst_245 = arith.constant dense<0.000000e+00> : vector<8x32xf32>
    %710 = tpu.matmul %706, %709, %cst_245 {dimension_numbers = #tpu.dot_dimension_numbers<[1], [0], [0], [1], [0, 0, 1, 1], [], []>} : vector<8x32xbf16>, vector<32x32xbf16>, vector<8x32xf32> -> vector<8x32xf32>
    %c0_246 = arith.constant 0 : index
    %c0_247 = arith.constant 0 : index
    %c0_248 = arith.constant 0 : index
    %711 = vector.load %arg26[%c0_246, %c0_247, %c0_248] : memref<2x1x32xf32, #tpu.memory_space<vmem>>, vector<1x1x32xf32>
    %712 = vector.shape_cast %711 : vector<1x1x32xf32> to vector<1x32xf32>
    %713 = vector.broadcast %712 : vector<1x32xf32> to vector<8x32xf32>
    %714 = arith.addf %710, %713 : vector<8x32xf32>
    %715 = vector.extract_strided_slice %17 {offsets = [1, 0], sizes = [1, 32], strides = [1, 1]} : vector<2x32xf32> to vector<1x32xf32>
    %716 = vector.extract_strided_slice %19 {offsets = [1, 0], sizes = [1, 32], strides = [1, 1]} : vector<2x32xf32> to vector<1x32xf32>
    %cst_249 = arith.constant dense<0.000000e+00> : vector<8xf32>
    %717 = vector.multi_reduction <add>, %649, %cst_249 [1] : vector<8x32xf32> to vector<8xf32>
    %718 = vector.shape_cast %717 : vector<8xf32> to vector<8x1xf32>
    %cst_250 = arith.constant 3.200000e+01 : f32
    %719 = vector.broadcast %cst_250 : f32 to vector<8x1xf32>
    %720 = arith.divf %718, %719 : vector<8x1xf32>
    %721 = vector.broadcast %720 : vector<8x1xf32> to vector<8x32xf32>
    %722 = arith.subf %649, %721 : vector<8x32xf32>
    %723 = arith.mulf %722, %722 : vector<8x32xf32>
    %cst_251 = arith.constant dense<0.000000e+00> : vector<8xf32>
    %724 = vector.multi_reduction <add>, %723, %cst_251 [1] : vector<8x32xf32> to vector<8xf32>
    %725 = vector.shape_cast %724 : vector<8xf32> to vector<8x1xf32>
    %cst_252 = arith.constant 3.200000e+01 : f32
    %726 = vector.broadcast %cst_252 : f32 to vector<8x1xf32>
    %727 = arith.divf %725, %726 : vector<8x1xf32>
    %728 = vector.broadcast %720 : vector<8x1xf32> to vector<8x32xf32>
    %729 = arith.subf %649, %728 : vector<8x32xf32>
    %cst_253 = arith.constant 9.99999974E-6 : f32
    %730 = vector.broadcast %cst_253 : f32 to vector<8x1xf32>
    %731 = arith.addf %727, %730 : vector<8x1xf32>
    %732 = math.rsqrt %731 : vector<8x1xf32>
    %733 = vector.broadcast %732 : vector<8x1xf32> to vector<8x32xf32>
    %734 = arith.mulf %729, %733 : vector<8x32xf32>
    %735 = vector.broadcast %715 : vector<1x32xf32> to vector<8x32xf32>
    %736 = arith.mulf %734, %735 : vector<8x32xf32>
    %737 = vector.broadcast %716 : vector<1x32xf32> to vector<8x32xf32>
    %738 = arith.addf %736, %737 : vector<8x32xf32>
    %739 = arith.truncf %738 : vector<8x32xf32> to vector<8x32xbf16>
    %c1_254 = arith.constant 1 : index
    %c0_255 = arith.constant 0 : index
    %c0_256 = arith.constant 0 : index
    %740 = vector.load %arg21[%c1_254, %c0_255, %c0_256] : memref<2x32x64xf32, #tpu.memory_space<vmem>>, vector<1x32x64xf32>
    %741 = vector.shape_cast %740 : vector<1x32x64xf32> to vector<32x64xf32>
    %742 = arith.truncf %741 : vector<32x64xf32> to vector<32x64xbf16>
    %cst_257 = arith.constant dense<0.000000e+00> : vector<8x64xf32>
    %743 = tpu.matmul %739, %742, %cst_257 {dimension_numbers = #tpu.dot_dimension_numbers<[1], [0], [0], [1], [0, 0, 1, 1], [], []>} : vector<8x32xbf16>, vector<32x64xbf16>, vector<8x64xf32> -> vector<8x64xf32>
    %c1_258 = arith.constant 1 : index
    %c0_259 = arith.constant 0 : index
    %c0_260 = arith.constant 0 : index
    %744 = vector.load %arg22[%c1_258, %c0_259, %c0_260] : memref<2x1x64xf32, #tpu.memory_space<vmem>>, vector<1x1x64xf32>
    %745 = vector.shape_cast %744 : vector<1x1x64xf32> to vector<1x64xf32>
    %746 = vector.broadcast %745 : vector<1x64xf32> to vector<8x64xf32>
    %747 = arith.addf %743, %746 : vector<8x64xf32>
    %748 = arith.mulf %747, %747 : vector<8x64xf32>
    %749 = arith.mulf %747, %748 : vector<8x64xf32>
    %cst_261 = arith.constant 4.471500e-02 : f32
    %750 = vector.broadcast %cst_261 : f32 to vector<8x64xf32>
    %751 = arith.mulf %750, %749 : vector<8x64xf32>
    %752 = arith.addf %747, %751 : vector<8x64xf32>
    %cst_262 = arith.constant 0.797884583 : f32
    %753 = vector.broadcast %cst_262 : f32 to vector<8x64xf32>
    %754 = arith.mulf %753, %752 : vector<8x64xf32>
    %755 = math.tanh %754 : vector<8x64xf32>
    %cst_263 = arith.constant 1.000000e+00 : f32
    %756 = vector.broadcast %cst_263 : f32 to vector<8x64xf32>
    %757 = arith.addf %756, %755 : vector<8x64xf32>
    %cst_264 = arith.constant 5.000000e-01 : f32
    %758 = vector.broadcast %cst_264 : f32 to vector<8x64xf32>
    %759 = arith.mulf %758, %757 : vector<8x64xf32>
    %760 = arith.mulf %747, %759 : vector<8x64xf32>
    %761 = arith.truncf %760 : vector<8x64xf32> to vector<8x64xbf16>
    %c1_265 = arith.constant 1 : index
    %c0_266 = arith.constant 0 : index
    %c0_267 = arith.constant 0 : index
    %762 = vector.load %arg23[%c1_265, %c0_266, %c0_267] : memref<2x64x32xf32, #tpu.memory_space<vmem>>, vector<1x64x32xf32>
    %763 = vector.shape_cast %762 : vector<1x64x32xf32> to vector<64x32xf32>
    %764 = arith.truncf %763 : vector<64x32xf32> to vector<64x32xbf16>
    %cst_268 = arith.constant dense<0.000000e+00> : vector<8x32xf32>
    %765 = tpu.matmul %761, %764, %cst_268 {dimension_numbers = #tpu.dot_dimension_numbers<[1], [0], [0], [1], [0, 0, 1, 1], [], []>} : vector<8x64xbf16>, vector<64x32xbf16>, vector<8x32xf32> -> vector<8x32xf32>
    %c1_269 = arith.constant 1 : index
    %c0_270 = arith.constant 0 : index
    %c0_271 = arith.constant 0 : index
    %766 = vector.load %arg24[%c1_269, %c0_270, %c0_271] : memref<2x1x32xf32, #tpu.memory_space<vmem>>, vector<1x1x32xf32>
    %767 = vector.shape_cast %766 : vector<1x1x32xf32> to vector<1x32xf32>
    %768 = vector.broadcast %767 : vector<1x32xf32> to vector<8x32xf32>
    %769 = arith.addf %765, %768 : vector<8x32xf32>
    %770 = arith.addf %649, %769 : vector<8x32xf32>
    %771 = arith.truncf %770 : vector<8x32xf32> to vector<8x32xbf16>
    %c1_272 = arith.constant 1 : index
    %c0_273 = arith.constant 0 : index
    %c0_274 = arith.constant 0 : index
    %772 = vector.load %arg25[%c1_272, %c0_273, %c0_274] : memref<2x32x32xf32, #tpu.memory_space<vmem>>, vector<1x32x32xf32>
    %773 = vector.shape_cast %772 : vector<1x32x32xf32> to vector<32x32xf32>
    %774 = arith.truncf %773 : vector<32x32xf32> to vector<32x32xbf16>
    %cst_275 = arith.constant dense<0.000000e+00> : vector<8x32xf32>
    %775 = tpu.matmul %771, %774, %cst_275 {dimension_numbers = #tpu.dot_dimension_numbers<[1], [0], [0], [1], [0, 0, 1, 1], [], []>} : vector<8x32xbf16>, vector<32x32xbf16>, vector<8x32xf32> -> vector<8x32xf32>
    %c1_276 = arith.constant 1 : index
    %c0_277 = arith.constant 0 : index
    %c0_278 = arith.constant 0 : index
    %776 = vector.load %arg26[%c1_276, %c0_277, %c0_278] : memref<2x1x32xf32, #tpu.memory_space<vmem>>, vector<1x1x32xf32>
    %777 = vector.shape_cast %776 : vector<1x1x32xf32> to vector<1x32xf32>
    %778 = vector.broadcast %777 : vector<1x32xf32> to vector<8x32xf32>
    %779 = arith.addf %775, %778 : vector<8x32xf32>
    %780 = tpu.concatenate %714, %779 in 1 : vector<8x32xf32>, vector<8x32xf32> -> vector<8x64xf32>
    %c0_279 = arith.constant 0 : index
    %c0_280 = arith.constant 0 : index
    %c0_281 = arith.constant 0 : index
    %781 = vector.load %arg27[%c0_279, %c0_280, %c0_281] : memref<1x8x64xf32, #tpu.memory_space<vmem>>, vector<1x8x64xf32>
    %782 = vector.shape_cast %781 : vector<1x8x64xf32> to vector<8x64xf32>
    %783 = vector.shape_cast %780 : vector<8x64xf32> to vector<1x8x64xf32>
    tpu.vector_store %arg27[%c0_279, %c0_280, %c0_281], %783 {strides = array<i32>} : memref<1x8x64xf32, #tpu.memory_space<vmem>>, vector<1x8x64xf32>,
    return
  }
  func.func @transform_0(%arg0: i32) -> (i32, i32, i32) {
    %c0_i32 = arith.constant 0 : i32
    %c0_i32_0 = arith.constant 0 : i32
    %c0_i32_1 = arith.constant 0 : i32
    return %arg0, %c0_i32, %c0_i32_0 : i32, i32, i32
  }
  func.func @transform_1(%arg0: i32) -> (i32, i32, i32) {
    %c0_i32 = arith.constant 0 : i32
    %c0_i32_0 = arith.constant 0 : i32
    %c0_i32_1 = arith.constant 0 : i32
    return %arg0, %c0_i32, %c0_i32_0 : i32, i32, i32
  }
  func.func @transform_2(%arg0: i32) -> (i32, i32, i32) {
    %c0_i32 = arith.constant 0 : i32
    %c0_i32_0 = arith.constant 0 : i32
    %c0_i32_1 = arith.constant 0 : i32
    return %arg0, %c0_i32, %c0_i32_0 : i32, i32, i32
  }
  func.func @transform_3(%arg0: i32) -> (i32, i32, i32) {
    %c0_i32 = arith.constant 0 : i32
    %c0_i32_0 = arith.constant 0 : i32
    %c0_i32_1 = arith.constant 0 : i32
    return %arg0, %c0_i32, %c0_i32_0 : i32, i32, i32
  }
  func.func @transform_4(%arg0: i32) -> (i32, i32, i32) {
    %c0_i32 = arith.constant 0 : i32
    %c0_i32_0 = arith.constant 0 : i32
    %c0_i32_1 = arith.constant 0 : i32
    return %arg0, %c0_i32, %c0_i32_0 : i32, i32, i32
  }
  func.func @transform_5(%arg0: i32) -> (i32, i32, i32) {
    %c0_i32 = arith.constant 0 : i32
    %c0_i32_0 = arith.constant 0 : i32
    %c0_i32_1 = arith.constant 0 : i32
    return %arg0, %c0_i32, %c0_i32_0 : i32, i32, i32
  }
  func.func @transform_6(%arg0: i32) -> (i32, i32, i32) {
    %c0_i32 = arith.constant 0 : i32
    %c0_i32_0 = arith.constant 0 : i32
    %c0_i32_1 = arith.constant 0 : i32
    return %arg0, %c0_i32, %c0_i32_0 : i32, i32, i32
  }
  func.func @transform_7(%arg0: i32) -> (i32, i32, i32) {
    %c0_i32 = arith.constant 0 : i32
    %c0_i32_0 = arith.constant 0 : i32
    %c0_i32_1 = arith.constant 0 : i32
    return %arg0, %c0_i32, %c0_i32_0 : i32, i32, i32
  }
  func.func @transform_8(%arg0: i32) -> (i32, i32, i32) {
    %c0_i32 = arith.constant 0 : i32
    %c0_i32_0 = arith.constant 0 : i32
    %c0_i32_1 = arith.constant 0 : i32
    %c0_i32_2 = arith.constant 0 : i32
    return %c0_i32, %c0_i32_0, %c0_i32_1 : i32, i32, i32
  }
  func.func @transform_9(%arg0: i32) -> (i32, i32, i32) {
    %c0_i32 = arith.constant 0 : i32
    %c0_i32_0 = arith.constant 0 : i32
    %c0_i32_1 = arith.constant 0 : i32
    %c0_i32_2 = arith.constant 0 : i32
    return %c0_i32, %c0_i32_0, %c0_i32_1 : i32, i32, i32
  }
  func.func @transform_10(%arg0: i32) -> (i32, i32, i32) {
    %c0_i32 = arith.constant 0 : i32
    %c0_i32_0 = arith.constant 0 : i32
    %c0_i32_1 = arith.constant 0 : i32
    %c0_i32_2 = arith.constant 0 : i32
    return %c0_i32, %c0_i32_0, %c0_i32_1 : i32, i32, i32
  }
  func.func @transform_11(%arg0: i32) -> (i32, i32, i32) {
    %c0_i32 = arith.constant 0 : i32
    %c0_i32_0 = arith.constant 0 : i32
    %c0_i32_1 = arith.constant 0 : i32
    %c0_i32_2 = arith.constant 0 : i32
    return %c0_i32, %c0_i32_0, %c0_i32_1 : i32, i32, i32
  }
  func.func @transform_12(%arg0: i32) -> (i32, i32, i32) {
    %c0_i32 = arith.constant 0 : i32
    %c0_i32_0 = arith.constant 0 : i32
    %c0_i32_1 = arith.constant 0 : i32
    %c0_i32_2 = arith.constant 0 : i32
    return %c0_i32, %c0_i32_0, %c0_i32_1 : i32, i32, i32
  }
  func.func @transform_13(%arg0: i32) -> (i32, i32, i32) {
    %c0_i32 = arith.constant 0 : i32
    %c0_i32_0 = arith.constant 0 : i32
    %c0_i32_1 = arith.constant 0 : i32
    %c0_i32_2 = arith.constant 0 : i32
    return %c0_i32, %c0_i32_0, %c0_i32_1 : i32, i32, i32
  }
  func.func @transform_14(%arg0: i32) -> (i32, i32, i32) {
    %c0_i32 = arith.constant 0 : i32
    %c0_i32_0 = arith.constant 0 : i32
    %c0_i32_1 = arith.constant 0 : i32
    %c0_i32_2 = arith.constant 0 : i32
    return %c0_i32, %c0_i32_0, %c0_i32_1 : i32, i32, i32
  }
  func.func @transform_15(%arg0: i32) -> (i32, i32, i32) {
    %c0_i32 = arith.constant 0 : i32
    %c0_i32_0 = arith.constant 0 : i32
    %c0_i32_1 = arith.constant 0 : i32
    %c0_i32_2 = arith.constant 0 : i32
    return %c0_i32, %c0_i32_0, %c0_i32_1 : i32, i32, i32
  }
  func.func @transform_16(%arg0: i32) -> (i32, i32, i32) {
    %c0_i32 = arith.constant 0 : i32
    %c0_i32_0 = arith.constant 0 : i32
    %c0_i32_1 = arith.constant 0 : i32
    %c0_i32_2 = arith.constant 0 : i32
    return %c0_i32, %c0_i32_0, %c0_i32_1 : i32, i32, i32
  }
  func.func @transform_17(%arg0: i32) -> (i32, i32, i32) {
    %c0_i32 = arith.constant 0 : i32
    %c0_i32_0 = arith.constant 0 : i32
    %c0_i32_1 = arith.constant 0 : i32
    %c0_i32_2 = arith.constant 0 : i32
    return %c0_i32, %c0_i32_0, %c0_i32_1 : i32, i32, i32
  }
  func.func @transform_18(%arg0: i32) -> (i32, i32, i32) {
    %c0_i32 = arith.constant 0 : i32
    %c0_i32_0 = arith.constant 0 : i32
    %c0_i32_1 = arith.constant 0 : i32
    %c0_i32_2 = arith.constant 0 : i32
    return %c0_i32, %c0_i32_0, %c0_i32_1 : i32, i32, i32
  }
  func.func @transform_19(%arg0: i32) -> (i32, i32, i32) {
    %c0_i32 = arith.constant 0 : i32
    %c0_i32_0 = arith.constant 0 : i32
    %c0_i32_1 = arith.constant 0 : i32
    %c0_i32_2 = arith.constant 0 : i32
    return %c0_i32, %c0_i32_0, %c0_i32_1 : i32, i32, i32
  }
  func.func @transform_20(%arg0: i32) -> (i32, i32, i32) {
    %c0_i32 = arith.constant 0 : i32
    %c0_i32_0 = arith.constant 0 : i32
    %c0_i32_1 = arith.constant 0 : i32
    %c0_i32_2 = arith.constant 0 : i32
    return %c0_i32, %c0_i32_0, %c0_i32_1 : i32, i32, i32
  }
  func.func @transform_21(%arg0: i32) -> (i32, i32, i32) {
    %c0_i32 = arith.constant 0 : i32
    %c0_i32_0 = arith.constant 0 : i32
    %c0_i32_1 = arith.constant 0 : i32
    %c0_i32_2 = arith.constant 0 : i32
    return %c0_i32, %c0_i32_0, %c0_i32_1 : i32, i32, i32
  }
  func.func @transform_22(%arg0: i32) -> (i32, i32, i32) {
    %c0_i32 = arith.constant 0 : i32
    %c0_i32_0 = arith.constant 0 : i32
    %c0_i32_1 = arith.constant 0 : i32
    %c0_i32_2 = arith.constant 0 : i32
    return %c0_i32, %c0_i32_0, %c0_i32_1 : i32, i32, i32
  }
  func.func @transform_23(%arg0: i32) -> (i32, i32, i32) {
    %c0_i32 = arith.constant 0 : i32
    %c0_i32_0 = arith.constant 0 : i32
    %c0_i32_1 = arith.constant 0 : i32
    %c0_i32_2 = arith.constant 0 : i32
    return %c0_i32, %c0_i32_0, %c0_i32_1 : i32, i32, i32
  }
  func.func @transform_24(%arg0: i32) -> (i32, i32, i32) {
    %c0_i32 = arith.constant 0 : i32
    %c0_i32_0 = arith.constant 0 : i32
    %c0_i32_1 = arith.constant 0 : i32
    %c0_i32_2 = arith.constant 0 : i32
    return %c0_i32, %c0_i32_0, %c0_i32_1 : i32, i32, i32
  }
  func.func @transform_25(%arg0: i32) -> (i32, i32, i32) {
    %c0_i32 = arith.constant 0 : i32
    %c0_i32_0 = arith.constant 0 : i32
    %c0_i32_1 = arith.constant 0 : i32
    %c0_i32_2 = arith.constant 0 : i32
    return %c0_i32, %c0_i32_0, %c0_i32_1 : i32, i32, i32
  }
  func.func @transform_26(%arg0: i32) -> (i32, i32, i32) {
    %c0_i32 = arith.constant 0 : i32
    %c0_i32_0 = arith.constant 0 : i32
    %c0_i32_1 = arith.constant 0 : i32
    return %arg0, %c0_i32, %c0_i32_0 : i32, i32, i32
  }
}

</mosaic_0001>

<llo_original>
// kernel: temporal_model_forward.3
$region0: #{temporal_model_forward.3}
  #allocation0 [shape = 'u32[]', space=smem, size = 0x4, offset = 0x4, fixed_abs, tag = 'smem constant byte address 0x4 - core index']
  #allocation1 [shape = 'u32[72,128]{1,0:T(1,128)}', space=vmem, size = 0x9000, scoped, tag = 'internal scratch']
  %s0 = inlined_call_operand.vmem [shape: f32[2,8,64], index: 0, kind: input, shape index: {}]
  %s1 = inlined_call_operand.vmem [shape: f32[2,2,32], index: 1, kind: input, shape index: {}]
  %s2 = inlined_call_operand.vmem [shape: f32[2,2,32], index: 2, kind: input, shape index: {}]
  %s3 = inlined_call_operand.vmem [shape: f32[2,8,64], index: 3, kind: output, shape index: {}]
  %s4 = sld [smem:[#allocation0]]
  $region45: #{temporal_model_forward.3} parent=0
    _
  %s6 = ssub.s32 1, %s4
  %s7 = scalar_select 0, %s6, %s4
  loop: start=0, step=1, limit=4
  $region2: #{temporal_model_forward.3} parent=0 // loop_pre_header
    _
  $region3: #{temporal_model_forward.3} parent=0 // loop_header
    %s9 = sphi 0, %s13
    %p10 = scmp.ge.s32.totalorder %s9, 4
    %s19 = sphi 0, %s21
    %s22 = sphi 0, %s19
    %s23 = sphi 0, %s22
    %s39 = sphi 0, %s23
    %s45 = sphi 0, %s47
    %s48 = sphi 0, %s45
    %s49 = sphi 0, %s48
    %s65 = sphi 0, %s49
    %s71 = sphi 0, %s73
    %s74 = sphi 0, %s71
    %s75 = sphi 0, %s74
    %s91 = sphi 0, %s75
    %s97 = sphi 0, %s99
    %s100 = sphi 0, %s97
    %s101 = sphi 0, %s100
    %s117 = sphi 0, %s101
  $region4: #{temporal_model_forward.3} parent=0 // loop_header_branch
    %12 = sbr.rel (%p10) target = $region8
  $region5: #{temporal_model_forward.3} parent=0 // loop_body
    %s14 = ssub.s32 %s9, 1
    %s15 = ssub.s32 %s9, 2
    %s16 = sadd.s32 %s9, 1
    %s17 = ssub.s32 %s9, %s16
    %p18 = scmp.eq.s32.totalorder %s17, 0
    %s20 = sadd.s32 %s19, 1
    %s21 = scalar_select %p18, %s19, %s20
    %p24 = pneg %p18
    %p25 = scmp.eq.s32.totalorder %s9, 1
    %p26 = por %p24, %p25
    %p27 = scmp.ne.s32.totalorder %s19, %s22
    %p28 = scmp.eq.s32.totalorder %s9, 0
    %p29 = por %p27, %p28
    %p30 = scmp.ne.s32.totalorder %s19, %s22
    %p31 = scmp.eq.s32.totalorder %s14, 1
    %p32 = por %p30, %p31
    %p33 = scmp.ne.s32.totalorder %s22, %s23
    %p34 = scmp.eq.s32.totalorder %s14, 0
    %p35 = por %p33, %p34
    %p36 = scmp.ne.s32.totalorder %s22, %s23
    %p37 = scmp.eq.s32.totalorder %s15, 1
    %p38 = por %p36, %p37
    %p40 = scmp.ne.s32.totalorder %s23, %s39
    %p41 = scmp.eq.s32.totalorder %s15, 0
    %p42 = por %p40, %p41
    %s43 = ssub.s32 %s9, %s16
    %p44 = scmp.eq.s32.totalorder %s43, 0
    %s46 = sadd.s32 %s45, 1
    %s47 = scalar_select %p44, %s45, %s46
    %p50 = pneg %p44
    %p51 = scmp.eq.s32.totalorder %s9, 1
    %p52 = por %p50, %p51
    %p53 = scmp.ne.s32.totalorder %s45, %s48
    %p54 = scmp.eq.s32.totalorder %s9, 0
    %p55 = por %p53, %p54
    %p56 = scmp.ne.s32.totalorder %s45, %s48
    %p57 = scmp.eq.s32.totalorder %s14, 1
    %p58 = por %p56, %p57
    %p59 = scmp.ne.s32.totalorder %s48, %s49
    %p60 = scmp.eq.s32.totalorder %s14, 0
    %p61 = por %p59, %p60
    %p62 = scmp.ne.s32.totalorder %s48, %s49
    %p63 = scmp.eq.s32.totalorder %s15, 1
    %p64 = por %p62, %p63
    %p66 = scmp.ne.s32.totalorder %s49, %s65
    %p67 = scmp.eq.s32.totalorder %s15, 0
    %p68 = por %p66, %p67
    %s69 = ssub.s32 %s9, %s16
    %p70 = scmp.eq.s32.totalorder %s69, 0
    %s72 = sadd.s32 %s71, 1
    %s73 = scalar_select %p70, %s71, %s72
    %p76 = pneg %p70
    %p77 = scmp.eq.s32.totalorder %s9, 1
    %p78 = por %p76, %p77
    %p79 = scmp.ne.s32.totalorder %s71, %s74
    %p80 = scmp.eq.s32.totalorder %s9, 0
    %p81 = por %p79, %p80
    %p82 = scmp.ne.s32.totalorder %s71, %s74
    %p83 = scmp.eq.s32.totalorder %s14, 1
    %p84 = por %p82, %p83
    %p85 = scmp.ne.s32.totalorder %s74, %s75
    %p86 = scmp.eq.s32.totalorder %s14, 0
    %p87 = por %p85, %p86
    %p88 = scmp.ne.s32.totalorder %s74, %s75
    %p89 = scmp.eq.s32.totalorder %s15, 1
    %p90 = por %p88, %p89
    %p92 = scmp.ne.s32.totalorder %s75, %s91
    %p93 = scmp.eq.s32.totalorder %s15, 0
    %p94 = por %p92, %p93
    %s95 = ssub.s32 %s9, %s16
    %p96 = scmp.eq.s32.totalorder %s95, 0
    %s98 = sadd.s32 %s97, 1
    %s99 = scalar_select %p96, %s97, %s98
    %p102 = pneg %p96
    %p103 = scmp.eq.s32.totalorder %s9, 1
    %p104 = por %p102, %p103
    %p105 = scmp.ne.s32.totalorder %s97, %s100
    %p106 = scmp.eq.s32.totalorder %s9, 0
    %p107 = por %p105, %p106
    %p108 = scmp.ne.s32.totalorder %s97, %s100
    %p109 = scmp.eq.s32.totalorder %s14, 1
    %p110 = por %p108, %p109
    %p111 = scmp.ne.s32.totalorder %s100, %s101
    %p112 = scmp.eq.s32.totalorder %s14, 0
    %p113 = por %p111, %p112
    %p114 = scmp.ne.s32.totalorder %s100, %s101
    %p115 = scmp.eq.s32.totalorder %s15, 1
    %p116 = por %p114, %p115
    %p118 = scmp.ne.s32.totalorder %s101, %s117
    %p119 = scmp.eq.s32.totalorder %s15, 0
    %p120 = por %p118, %p119
    %p121 = scmp.le.s32.totalorder 1, %s9
    %p122 = scmp.lt.s32.totalorder %s9, 3
    %p123 = pnand %p121, %p122
    %p124 = pneg %p123
    // Predicated region
    $region9: #{temporal_model_forward.3} parent=5 // pred_check
      _
    $region10: #{temporal_model_forward.3} parent=5 // pred_check_branch
      %126 = sbr.rel (%p123) target = $region12
    $region11: #{temporal_model_forward.3} parent=5 // pred_region
      %s127 = ssub.s32 %s9, 1
    $region12: #{temporal_model_forward.3} parent=5 // pred_fallthru
      _
    %p128 = scmp.lt.s32.totalorder %s9, 2
    // Predicated region
    $region13: #{temporal_model_forward.3} parent=5 // pred_check
      %p129 = pneg %p128
    $region14: #{temporal_model_forward.3} parent=5 // pred_check_branch
      %131 = sbr.rel (%p129) target = $region16
    $region15: #{temporal_model_forward.3} parent=5 // pred_region
      // Predicated region
      $region17: #{temporal_model_forward.3} parent=15 // pred_check
        %p132 = pneg %p29
      $region18: #{temporal_model_forward.3} parent=15 // pred_check_branch
        %134 = sbr.rel (%p132) target = $region20
      $region19: #{temporal_model_forward.3} parent=15 // pred_region
        %p135 = scmp.lt.s32.totalorder %s9, 1
        %s136 = scalar_select %p135, %s9, 1
        %s137 = smul.addr %s136, 8
        %s138 = scalar_lea.vmem %s0, %s137
      $region20: #{temporal_model_forward.3} parent=15 // pred_fallthru
        _
      // Predicated region
      $region21: #{temporal_model_forward.3} parent=15 // pred_check
        %p139 = pneg %p55
      $region22: #{temporal_model_forward.3} parent=15 // pred_check_branch
        %141 = sbr.rel (%p139) target = $region24
      $region23: #{temporal_model_forward.3} parent=15 // pred_region
        %p142 = scmp.lt.s32.totalorder %s9, 1
        %s143 = scalar_select %p142, %s9, 1
        %s144 = smul.addr %s143, 2
        %s145 = scalar_lea.vmem %s1, %s144
      $region24: #{temporal_model_forward.3} parent=15 // pred_fallthru
        _
      // Predicated region
      $region25: #{temporal_model_forward.3} parent=15 // pred_check
        %p146 = pneg %p81
      $region26: #{temporal_model_forward.3} parent=15 // pred_check_branch
        %148 = sbr.rel (%p146) target = $region28
      $region27: #{temporal_model_forward.3} parent=15 // pred_region
        %p149 = scmp.lt.s32.totalorder %s9, 1
        %s150 = scalar_select %p149, %s9, 1
        %s151 = smul.addr %s150, 2
        %s152 = scalar_lea.vmem %s2, %s151
      $region28: #{temporal_model_forward.3} parent=15 // pred_fallthru
        _
    $region16: #{temporal_model_forward.3} parent=5 // pred_fallthru
      _
    %p153 = scmp.le.s32.totalorder 1, %s9
    %p154 = scmp.lt.s32.totalorder %s9, 3
    %p155 = pnand %p153, %p154
    %p156 = pneg %p155
    // Predicated region
    $region29: #{temporal_model_forward.3} parent=5 // pred_check
      _
    $region30: #{temporal_model_forward.3} parent=5 // pred_check_branch
      %158 = sbr.rel (%p155) target = $region32
    $region31: #{temporal_model_forward.3} parent=5 // pred_region
      %s159 = ssub.s32 %s9, 1
      %p160 = scmp.lt.s32.totalorder %s14, 1
      %s161 = scalar_select %p160, %s14, 1
      %s162 = smul.addr %s161, 8
      %s163 = scalar_lea.vmem %s0, %s162
      %p164 = pneg %p35
      %p165 = pneg %p32
      %p166 = scmp.lt.s32.totalorder %s14, 1
      %s167 = scalar_select %p166, %s14, 1
      %s168 = smul.addr %s167, 2
      %s169 = scalar_lea.vmem %s1, %s168
      %p170 = pneg %p61
      %p171 = pneg %p58
      %p172 = scmp.lt.s32.totalorder %s14, 1
      %s173 = scalar_select %p172, %s14, 1
      %s174 = smul.addr %s173, 2
      %s175 = scalar_lea.vmem %s2, %s174
      %p176 = pneg %p87
      %p177 = pneg %p84
      %p178 = pneg %p113
      %p179 = pneg %p110
      %p180 = scmp.lt.s32.totalorder %s14, 1
      %s181 = scalar_select %p180, %s14, 1
      %s182 = smul.addr %s181, 8
      %s183 = scalar_lea.vmem %s3, %s182
      %p184 = scmp.lt.s32.totalorder %s14, 1
      %s185 = scalar_select %p184, %s14, 1
      %s186 = smul.addr %s185, 8
      %s187 = scalar_lea.vmem %s0, %s186
      %p188 = scmp.lt.s32.totalorder %s14, 1
      %s189 = scalar_select %p188, %s14, 1
      %s190 = smul.addr %s189, 2
      %s191 = scalar_lea.vmem %s1, %s190
      %p192 = scmp.lt.s32.totalorder %s14, 1
      %s193 = scalar_select %p192, %s14, 1
      %s194 = smul.addr %s193, 2
      %s195 = scalar_lea.vmem %s2, %s194
      %p196 = scmp.lt.s32.totalorder %s14, 1
      %s197 = scalar_select %p196, %s14, 1
      %s198 = smul.addr %s197, 8
      %s199 = scalar_lea.vmem %s3, %s198
      %v200 = vld [vmem:[%s187] sm:$0xff]
      %v201 = vld [vmem:[%s191] sm:$0x3]
      %v202 = vld [vmem:[%s195] sm:$0x3]
      %vm203 = vcmask 261120
      %v204 = vsel %vm203, %v200, 0.0
      %205 = vadd.xlane.f32.xlu0 %v204
      %v206 = vpop.xlane.xlu0 %205
      %v207 = vrcp.pop 32.0
      %v208 = vmul.f32 32.0, %v207
      %v209 = vsub.f32 1.0, %v208
      %v210 = vmul.f32 %v207, %v209
      %v211 = vadd.f32 %v207, %v210
      %vm212 = vweird.f32 %v207
      %v213 = vsel %vm212, %v207, %v211
      %v214 = vmul.f32 %v206, %v213
      %v215 = vsub.f32 %v200, %v214
      %v216 = vmul.f32 %v215, %v215
      %v217 = vsel %vm203, %v216, 0.0
      %218 = vadd.xlane.f32.xlu0 %v217
      %v219 = vpop.xlane.xlu0 %218
      %v220 = vmul.f32 %v219, %v213
      %v221 = vadd.f32 %v220, 1e-05
      %v222 = vrsqrt.pop %v221
      %v223 = vmul.f32 %v222, %v221
      %v224 = vmul.f32 %v223, %v222
      %v225 = vmul.f32 0.5, %v224
      %v226 = vsub.f32 1.5, %v225
      %v227 = vmul.f32 %v222, %v226
      %vm228 = vweird.f32 %v221
      %vm229 = vweird.f32 %v222
      %vm230 = vmor %vm228, %vm229
      %v231 = vsel %vm230, %v222, %v227
      %v232 = vmul.f32 %v215, %v231
      %v233 = vperm.slane %v201, 0
      %v234 = vmul.f32 %v232, %v233
      %v235 = vperm.slane %v202, 0
      %v236 = vadd.f32 %v234, %v235
      %238 = vrot.lane.b32.xlu0 %v200, 96
      %v239 = vpop.permute.xlu0 %238
      %v241 = vsel %vm203, %v239, 0.0
      %242 = vadd.xlane.f32.xlu0 %v241
      %v243 = vpop.xlane.xlu0 %242
      %v244 = vmul.f32 %v243, %v213
      %v245 = vsub.f32 %v200, %v244
      %v246 = vmul.f32 %v245, %v245
      %248 = vrot.lane.b32.xlu0 %v246, 96
      %v249 = vpop.permute.xlu0 %248
      %v251 = vsel %vm203, %v249, 0.0
      %252 = vadd.xlane.f32.xlu0 %v251
      %v253 = vpop.xlane.xlu0 %252
      %v254 = vmul.f32 %v253, %v213
      %v255 = vadd.f32 %v254, 1e-05
      %v256 = vrsqrt.pop %v255
      %v257 = vmul.f32 %v256, %v255
      %v258 = vmul.f32 %v257, %v256
      %v259 = vmul.f32 0.5, %v258
      %v260 = vsub.f32 1.5, %v259
      %v261 = vmul.f32 %v256, %v260
      %vm262 = vweird.f32 %v255
      %vm263 = vweird.f32 %v256
      %vm264 = vmor %vm262, %vm263
      %v265 = vsel %vm264, %v256, %v261
      %v266 = vmul.f32 %v245, %v265
      %v267 = vperm.slane %v201, 1
      %269 = vrot.lane.b32.xlu0 %v267, 32
      %v270 = vpop.permute.xlu0 %269
      %v272 = vmul.f32 %v266, %v270
      %v273 = vperm.slane %v202, 1
      %275 = vrot.lane.b32.xlu0 %v273, 32
      %v276 = vpop.permute.xlu0 %275
      %v278 = vadd.f32 %v272, %v276
      %v279 = vsel %vm203, %v236, %v278
      %vm280 = vcmask 523264
      %281 = vst.msk [vmem:[%s199] sm:$0xff] %vm280, %v279
      %p282 = scmp.lt.s32.totalorder %s14, 1
      %s283 = scalar_select %p282, %s14, 1
      %s284 = smul.addr %s283, 8
      %s285 = scalar_lea.vmem %s3, %s284
      // Predicated region
      $region33: #{temporal_model_forward.3} parent=31 // pred_check
        %p286 = pneg %p110
      $region34: #{temporal_model_forward.3} parent=31 // pred_check_branch
        %288 = sbr.rel (%p286) target = $region36
      $region35: #{temporal_model_forward.3} parent=31 // pred_region
        _
      $region36: #{temporal_model_forward.3} parent=31 // pred_fallthru
        _
    $region32: #{temporal_model_forward.3} parent=5 // pred_fallthru
      _
    %p289 = scmp.le.s32.totalorder 2, %s9
    // Predicated region
    $region37: #{temporal_model_forward.3} parent=5 // pred_check
      %p290 = pneg %p289
    $region38: #{temporal_model_forward.3} parent=5 // pred_check_branch
      %292 = sbr.rel (%p290) target = $region40
    $region39: #{temporal_model_forward.3} parent=5 // pred_region
      %s293 = ssub.s32 %s9, 2
      // Predicated region
      $region41: #{temporal_model_forward.3} parent=39 // pred_check
        %p294 = pneg %p116
      $region42: #{temporal_model_forward.3} parent=39 // pred_check_branch
        %296 = sbr.rel (%p294) target = $region44
      $region43: #{temporal_model_forward.3} parent=39 // pred_region
        %p297 = scmp.lt.s32.totalorder %s15, 1
        %s298 = scalar_select %p297, %s15, 1
        %s299 = smul.addr %s298, 8
        %s300 = scalar_lea.vmem %s3, %s299
      $region44: #{temporal_model_forward.3} parent=39 // pred_fallthru
        _
    $region40: #{temporal_model_forward.3} parent=5 // pred_fallthru
      _
  $region6: #{temporal_model_forward.3} parent=0 // loop_footer
    %s13 = sadd.s32 1, %s9
  $region7: #{temporal_model_forward.3} parent=0 // loop_footer_branch
    %8 = sbr.rel target = $region3
  $region8: #{temporal_model_forward.3} parent=0 // loop_exit
    _

// kernel: temporal_model_forward.2
$region0: #{temporal_model_forward.2}
  #allocation0 [shape = 'u32[]', space=smem, size = 0x4, offset = 0x4, fixed_abs, tag = 'smem constant byte address 0x4 - core index']
  #allocation1 [shape = 'u32[72,128]{1,0:T(1,128)}', space=vmem, size = 0x9000, scoped, tag = 'internal scratch']
  %s0 = inlined_call_operand.vmem [shape: f32[2,8,64], index: 0, kind: input, shape index: {}]
  %s1 = inlined_call_operand.vmem [shape: f32[2,2,32], index: 1, kind: input, shape index: {}]
  %s2 = inlined_call_operand.vmem [shape: f32[2,2,32], index: 2, kind: input, shape index: {}]
  %s3 = inlined_call_operand.vmem [shape: f32[2,2,16], index: 3, kind: input, shape index: {}]
  %s4 = inlined_call_operand.vmem [shape: f32[2,2,16], index: 4, kind: input, shape index: {}]
  %s5 = inlined_call_operand.vmem [shape: f32[2,2,32], index: 5, kind: input, shape index: {}]
  %s6 = inlined_call_operand.vmem [shape: f32[2,2,32], index: 6, kind: input, shape index: {}]
  %s7 = inlined_call_operand.vmem [shape: f32[2,1,32], index: 7, kind: input, shape index: {}]
  %s8 = inlined_call_operand.vmem [shape: f32[2,32,96], index: 8, kind: input, shape index: {}]
  %s9 = inlined_call_operand.vmem [shape: f32[2,1,96], index: 9, kind: input, shape index: {}]
  %s10 = inlined_call_operand.vmem [shape: f32[2,32,32], index: 10, kind: input, shape index: {}]
  %s11 = inlined_call_operand.vmem [shape: f32[2,1,32], index: 11, kind: input, shape index: {}]
  %s12 = inlined_call_operand.vmem [shape: f32[2,32,16], index: 12, kind: input, shape index: {}]
  %s13 = inlined_call_operand.vmem [shape: f32[2,1,16], index: 13, kind: input, shape index: {}]
  %s14 = inlined_call_operand.vmem [shape: f32[2,16,48], index: 14, kind: input, shape index: {}]
  %s15 = inlined_call_operand.vmem [shape: f32[2,1,48], index: 15, kind: input, shape index: {}]
  %s16 = inlined_call_operand.hbm [shape: f32[2,16,16], index: 16, kind: input, shape index: {}]
  %s17 = inlined_call_operand.vmem [shape: f32[2,1,16], index: 17, kind: input, shape index: {}]
  %s18 = inlined_call_operand.hbm [shape: f32[2,16,32], index: 18, kind: input, shape index: {}]
  %s19 = inlined_call_operand.vmem [shape: f32[2,1,32], index: 19, kind: input, shape index: {}]
  %s20 = inlined_call_operand.vmem [shape: f32[2,32,64], index: 20, kind: input, shape index: {}]
  %s21 = inlined_call_operand.vmem [shape: f32[2,1,64], index: 21, kind: input, shape index: {}]
  %s22 = inlined_call_operand.vmem [shape: f32[2,64,32], index: 22, kind: input, shape index: {}]
  %s23 = inlined_call_operand.vmem [shape: f32[2,1,32], index: 23, kind: input, shape index: {}]
  %s24 = inlined_call_operand.vmem [shape: f32[2,32,32], index: 24, kind: input, shape index: {}]
  %s25 = inlined_call_operand.vmem [shape: f32[2,1,32], index: 25, kind: input, shape index: {}]
  %s26 = inlined_call_operand.vmem [shape: f32[2,8,64], index: 26, kind: output, shape index: {}]
  %s27 = sld [smem:[#allocation0]]
  $region145: #{temporal_model_forward.2} parent=0
    _
  %s29 = ssub.s32 1, %s27
  %s30 = scalar_select 0, %s29, %s27
  $region1: #{temporal_model_forward.2} parent=0
    #allocation2 [shape = 'u8[16384]{0}', space=vmem, size = 0x4000, scoped, tag = 'input window, operand 16, single buffered']
    #allocation3 [shape = 's32[2]{0}', space=sflag, size = 0x8, scoped, tag = 'scoped memory for temporal_model_forward.2']
    #allocation4 [shape = 'u8[16384]{0}', space=vmem, size = 0x4000, scoped, tag = 'input window, operand 18, single buffered']
    #allocation5 [shape = 's32[1]{0}', space=sflag, size = 0x4, scoped, tag = 'scoped memory for temporal_model_forward.2']
    %31 = vsyncpa [#allocation3], 0
    %32 = vsyncpa [#allocation5], 0
    loop: start=0, step=1, limit=4
    $region2: #{temporal_model_forward.2} parent=1 // loop_pre_header
      _
    $region3: #{temporal_model_forward.2} parent=1 // loop_header
      %s34 = sphi 0, %s38
      %p35 = scmp.ge.s32.totalorder %s34, 4
      %s44 = sphi 0, %s46
      %s47 = sphi 0, %s44
      %s48 = sphi 0, %s47
      %s64 = sphi 0, %s48
      %s70 = sphi 0, %s72
      %s73 = sphi 0, %s70
      %s74 = sphi 0, %s73
      %s90 = sphi 0, %s74
      %s96 = sphi 0, %s98
      %s99 = sphi 0, %s96
      %s100 = sphi 0, %s99
      %s116 = sphi 0, %s100
      %s122 = sphi 0, %s124
      %s125 = sphi 0, %s122
      %s126 = sphi 0, %s125
      %s142 = sphi 0, %s126
      %s148 = sphi 0, %s150
      %s151 = sphi 0, %s148
      %s152 = sphi 0, %s151
      %s168 = sphi 0, %s152
      %s174 = sphi 0, %s176
      %s177 = sphi 0, %s174
      %s178 = sphi 0, %s177
      %s194 = sphi 0, %s178
      %s200 = sphi 0, %s202
      %s203 = sphi 0, %s200
      %s204 = sphi 0, %s203
      %s220 = sphi 0, %s204
      %s226 = sphi 0, %s228
      %s229 = sphi 0, %s226
      %s230 = sphi 0, %s229
      %s246 = sphi 0, %s230
      %s250 = sphi 0, %s250
      %s252 = sphi 0, %s250
      %s253 = sphi 0, %s252
      %s267 = sphi 0, %s253
      %s271 = sphi 0, %s271
      %s273 = sphi 0, %s271
      %s274 = sphi 0, %s273
      %s288 = sphi 0, %s274
      %s292 = sphi 0, %s292
      %s294 = sphi 0, %s292
      %s295 = sphi 0, %s294
      %s309 = sphi 0, %s295
      %s313 = sphi 0, %s313
      %s315 = sphi 0, %s313
      %s316 = sphi 0, %s315
      %s330 = sphi 0, %s316
      %s334 = sphi 0, %s334
      %s336 = sphi 0, %s334
      %s337 = sphi 0, %s336
      %s351 = sphi 0, %s337
      %s355 = sphi 0, %s355
      %s357 = sphi 0, %s355
      %s358 = sphi 0, %s357
      %s372 = sphi 0, %s358
      %s376 = sphi 0, %s376
      %s378 = sphi 0, %s376
      %s379 = sphi 0, %s378
      %s393 = sphi 0, %s379
      %s397 = sphi 0, %s397
      %s399 = sphi 0, %s397
      %s400 = sphi 0, %s399
      %s414 = sphi 0, %s400
      %s418 = sphi 0, %s418
      %s420 = sphi 0, %s418
      %s421 = sphi 0, %s420
      %s435 = sphi 0, %s421
      %s439 = sphi 0, %s439
      %s441 = sphi 0, %s439
      %s442 = sphi 0, %s441
      %s456 = sphi 0, %s442
      %s460 = sphi 0, %s460
      %s462 = sphi 0, %s460
      %s463 = sphi 0, %s462
      %s477 = sphi 0, %s463
      %s481 = sphi 0, %s481
      %s483 = sphi 0, %s481
      %s484 = sphi 0, %s483
      %s498 = sphi 0, %s484
      %s502 = sphi 0, %s502
      %s504 = sphi 0, %s502
      %s505 = sphi 0, %s504
      %s519 = sphi 0, %s505
      %s523 = sphi 0, %s523
      %s525 = sphi 0, %s523
      %s526 = sphi 0, %s525
      %s540 = sphi 0, %s526
      %s544 = sphi 0, %s544
      %s546 = sphi 0, %s544
      %s547 = sphi 0, %s546
      %s561 = sphi 0, %s547
      %s565 = sphi 0, %s565
      %s567 = sphi 0, %s565
      %s568 = sphi 0, %s567
      %s582 = sphi 0, %s568
      %s586 = sphi 0, %s586
      %s588 = sphi 0, %s586
      %s589 = sphi 0, %s588
      %s603 = sphi 0, %s589
      %s607 = sphi 0, %s607
      %s609 = sphi 0, %s607
      %s610 = sphi 0, %s609
      %s624 = sphi 0, %s610
      %s630 = sphi 0, %s632
      %s633 = sphi 0, %s630
      %s634 = sphi 0, %s633
      %s650 = sphi 0, %s634
    $region4: #{temporal_model_forward.2} parent=1 // loop_header_branch
      %37 = sbr.rel (%p35) target = $region8
    $region5: #{temporal_model_forward.2} parent=1 // loop_body
      %s39 = ssub.s32 %s34, 1
      %s40 = ssub.s32 %s34, 2
      %s41 = sadd.s32 %s34, 1
      %s42 = ssub.s32 %s34, %s41
      %p43 = scmp.eq.s32.totalorder %s42, 0
      %s45 = sadd.s32 %s44, 1
      %s46 = scalar_select %p43, %s44, %s45
      %p49 = pneg %p43
      %p50 = scmp.eq.s32.totalorder %s34, 1
      %p51 = por %p49, %p50
      %p52 = scmp.ne.s32.totalorder %s44, %s47
      %p53 = scmp.eq.s32.totalorder %s34, 0
      %p54 = por %p52, %p53
      %p55 = scmp.ne.s32.totalorder %s44, %s47
      %p56 = scmp.eq.s32.totalorder %s39, 1
      %p57 = por %p55, %p56
      %p58 = scmp.ne.s32.totalorder %s47, %s48
      %p59 = scmp.eq.s32.totalorder %s39, 0
      %p60 = por %p58, %p59
      %p61 = scmp.ne.s32.totalorder %s47, %s48
      %p62 = scmp.eq.s32.totalorder %s40, 1
      %p63 = por %p61, %p62
      %p65 = scmp.ne.s32.totalorder %s48, %s64
      %p66 = scmp.eq.s32.totalorder %s40, 0
      %p67 = por %p65, %p66
      %s68 = ssub.s32 %s34, %s41
      %p69 = scmp.eq.s32.totalorder %s68, 0
      %s71 = sadd.s32 %s70, 1
      %s72 = scalar_select %p69, %s70, %s71
      %p75 = pneg %p69
      %p76 = scmp.eq.s32.totalorder %s34, 1
      %p77 = por %p75, %p76
      %p78 = scmp.ne.s32.totalorder %s70, %s73
      %p79 = scmp.eq.s32.totalorder %s34, 0
      %p80 = por %p78, %p79
      %p81 = scmp.ne.s32.totalorder %s70, %s73
      %p82 = scmp.eq.s32.totalorder %s39, 1
      %p83 = por %p81, %p82
      %p84 = scmp.ne.s32.totalorder %s73, %s74
      %p85 = scmp.eq.s32.totalorder %s39, 0
      %p86 = por %p84, %p85
      %p87 = scmp.ne.s32.totalorder %s73, %s74
      %p88 = scmp.eq.s32.totalorder %s40, 1
      %p89 = por %p87, %p88
      %p91 = scmp.ne.s32.totalorder %s74, %s90
      %p92 = scmp.eq.s32.totalorder %s40, 0
      %p93 = por %p91, %p92
      %s94 = ssub.s32 %s34, %s41
      %p95 = scmp.eq.s32.totalorder %s94, 0
      %s97 = sadd.s32 %s96, 1
      %s98 = scalar_select %p95, %s96, %s97
      %p101 = pneg %p95
      %p102 = scmp.eq.s32.totalorder %s34, 1
      %p103 = por %p101, %p102
      %p104 = scmp.ne.s32.totalorder %s96, %s99
      %p105 = scmp.eq.s32.totalorder %s34, 0
      %p106 = por %p104, %p105
      %p107 = scmp.ne.s32.totalorder %s96, %s99
      %p108 = scmp.eq.s32.totalorder %s39, 1
      %p109 = por %p107, %p108
      %p110 = scmp.ne.s32.totalorder %s99, %s100
      %p111 = scmp.eq.s32.totalorder %s39, 0
      %p112 = por %p110, %p111
      %p113 = scmp.ne.s32.totalorder %s99, %s100
      %p114 = scmp.eq.s32.totalorder %s40, 1
      %p115 = por %p113, %p114
      %p117 = scmp.ne.s32.totalorder %s100, %s116
      %p118 = scmp.eq.s32.totalorder %s40, 0
      %p119 = por %p117, %p118
      %s120 = ssub.s32 %s34, %s41
      %p121 = scmp.eq.s32.totalorder %s120, 0
      %s123 = sadd.s32 %s122, 1
      %s124 = scalar_select %p121, %s122, %s123
      %p127 = pneg %p121
      %p128 = scmp.eq.s32.totalorder %s34, 1
      %p129 = por %p127, %p128
      %p130 = scmp.ne.s32.totalorder %s122, %s125
      %p131 = scmp.eq.s32.totalorder %s34, 0
      %p132 = por %p130, %p131
      %p133 = scmp.ne.s32.totalorder %s122, %s125
      %p134 = scmp.eq.s32.totalorder %s39, 1
      %p135 = por %p133, %p134
      %p136 = scmp.ne.s32.totalorder %s125, %s126
      %p137 = scmp.eq.s32.totalorder %s39, 0
      %p138 = por %p136, %p137
      %p139 = scmp.ne.s32.totalorder %s125, %s126
      %p140 = scmp.eq.s32.totalorder %s40, 1
      %p141 = por %p139, %p140
      %p143 = scmp.ne.s32.totalorder %s126, %s142
      %p144 = scmp.eq.s32.totalorder %s40, 0
      %p145 = por %p143, %p144
      %s146 = ssub.s32 %s34, %s41
      %p147 = scmp.eq.s32.totalorder %s146, 0
      %s149 = sadd.s32 %s148, 1
      %s150 = scalar_select %p147, %s148, %s149
      %p153 = pneg %p147
      %p154 = scmp.eq.s32.totalorder %s34, 1
      %p155 = por %p153, %p154
      %p156 = scmp.ne.s32.totalorder %s148, %s151
      %p157 = scmp.eq.s32.totalorder %s34, 0
      %p158 = por %p156, %p157
      %p159 = scmp.ne.s32.totalorder %s148, %s151
      %p160 = scmp.eq.s32.totalorder %s39, 1
      %p161 = por %p159, %p160
      %p162 = scmp.ne.s32.totalorder %s151, %s152
      %p163 = scmp.eq.s32.totalorder %s39, 0
      %p164 = por %p162, %p163
      %p165 = scmp.ne.s32.totalorder %s151, %s152
      %p166 = scmp.eq.s32.totalorder %s40, 1
      %p167 = por %p165, %p166
      %p169 = scmp.ne.s32.totalorder %s152, %s168
      %p170 = scmp.eq.s32.totalorder %s40, 0
      %p171 = por %p169, %p170
      %s172 = ssub.s32 %s34, %s41
      %p173 = scmp.eq.s32.totalorder %s172, 0
      %s175 = sadd.s32 %s174, 1
      %s176 = scalar_select %p173, %s174, %s175
      %p179 = pneg %p173
      %p180 = scmp.eq.s32.totalorder %s34, 1
      %p181 = por %p179, %p180
      %p182 = scmp.ne.s32.totalorder %s174, %s177
      %p183 = scmp.eq.s32.totalorder %s34, 0
      %p184 = por %p182, %p183
      %p185 = scmp.ne.s32.totalorder %s174, %s177
      %p186 = scmp.eq.s32.totalorder %s39, 1
      %p187 = por %p185, %p186
      %p188 = scmp.ne.s32.totalorder %s177, %s178
      %p189 = scmp.eq.s32.totalorder %s39, 0
      %p190 = por %p188, %p189
      %p191 = scmp.ne.s32.totalorder %s177, %s178
      %p192 = scmp.eq.s32.totalorder %s40, 1
      %p193 = por %p191, %p192
      %p195 = scmp.ne.s32.totalorder %s178, %s194
      %p196 = scmp.eq.s32.totalorder %s40, 0
      %p197 = por %p195, %p196
      %s198 = ssub.s32 %s34, %s41
      %p199 = scmp.eq.s32.totalorder %s198, 0
      %s201 = sadd.s32 %s200, 1
      %s202 = scalar_select %p199, %s200, %s201
      %p205 = pneg %p199
      %p206 = scmp.eq.s32.totalorder %s34, 1
      %p207 = por %p205, %p206
      %p208 = scmp.ne.s32.totalorder %s200, %s203
      %p209 = scmp.eq.s32.totalorder %s34, 0
      %p210 = por %p208, %p209
      %p211 = scmp.ne.s32.totalorder %s200, %s203
      %p212 = scmp.eq.s32.totalorder %s39, 1
      %p213 = por %p211, %p212
      %p214 = scmp.ne.s32.totalorder %s203, %s204
      %p215 = scmp.eq.s32.totalorder %s39, 0
      %p216 = por %p214, %p215
      %p217 = scmp.ne.s32.totalorder %s203, %s204
      %p218 = scmp.eq.s32.totalorder %s40, 1
      %p219 = por %p217, %p218
      %p221 = scmp.ne.s32.totalorder %s204, %s220
      %p222 = scmp.eq.s32.totalorder %s40, 0
      %p223 = por %p221, %p222
      %s224 = ssub.s32 %s34, %s41
      %p225 = scmp.eq.s32.totalorder %s224, 0
      %s227 = sadd.s32 %s226, 1
      %s228 = scalar_select %p225, %s226, %s227
      %p231 = pneg %p225
      %p232 = scmp.eq.s32.totalorder %s34, 1
      %p233 = por %p231, %p232
      %p234 = scmp.ne.s32.totalorder %s226, %s229
      %p235 = scmp.eq.s32.totalorder %s34, 0
      %p236 = por %p234, %p235
      %p237 = scmp.ne.s32.totalorder %s226, %s229
      %p238 = scmp.eq.s32.totalorder %s39, 1
      %p239 = por %p237, %p238
      %p240 = scmp.ne.s32.totalorder %s229, %s230
      %p241 = scmp.eq.s32.totalorder %s39, 0
      %p242 = por %p240, %p241
      %p243 = scmp.ne.s32.totalorder %s229, %s230
      %p244 = scmp.eq.s32.totalorder %s40, 1
      %p245 = por %p243, %p244
      %p247 = scmp.ne.s32.totalorder %s230, %s246
      %p248 = scmp.eq.s32.totalorder %s40, 0
      %p249 = por %p247, %p248
      %s251 = sadd.s32 %s250, 1
      %p254 = scmp.eq.s32.totalorder %s34, 1
      %p255 = scmp.ne.s32.totalorder %s250, %s252
      %p256 = scmp.eq.s32.totalorder %s34, 0
      %p257 = por %p255, %p256
      %p258 = scmp.ne.s32.totalorder %s250, %s252
      %p259 = scmp.eq.s32.totalorder %s39, 1
      %p260 = por %p258, %p259
      %p261 = scmp.ne.s32.totalorder %s252, %s253
      %p262 = scmp.eq.s32.totalorder %s39, 0
      %p263 = por %p261, %p262
      %p264 = scmp.ne.s32.totalorder %s252, %s253
      %p265 = scmp.eq.s32.totalorder %s40, 1
      %p266 = por %p264, %p265
      %p268 = scmp.ne.s32.totalorder %s253, %s267
      %p269 = scmp.eq.s32.totalorder %s40, 0
      %p270 = por %p268, %p269
      %s272 = sadd.s32 %s271, 1
      %p275 = scmp.eq.s32.totalorder %s34, 1
      %p276 = scmp.ne.s32.totalorder %s271, %s273
      %p277 = scmp.eq.s32.totalorder %s34, 0
      %p278 = por %p276, %p277
      %p279 = scmp.ne.s32.totalorder %s271, %s273
      %p280 = scmp.eq.s32.totalorder %s39, 1
      %p281 = por %p279, %p280
      %p282 = scmp.ne.s32.totalorder %s273, %s274
      %p283 = scmp.eq.s32.totalorder %s39, 0
      %p284 = por %p282, %p283
      %p285 = scmp.ne.s32.totalorder %s273, %s274
      %p286 = scmp.eq.s32.totalorder %s40, 1
      %p287 = por %p285, %p286
      %p289 = scmp.ne.s32.totalorder %s274, %s288
      %p290 = scmp.eq.s32.totalorder %s40, 0
      %p291 = por %p289, %p290
      %s293 = sadd.s32 %s292, 1
      %p296 = scmp.eq.s32.totalorder %s34, 1
      %p297 = scmp.ne.s32.totalorder %s292, %s294
      %p298 = scmp.eq.s32.totalorder %s34, 0
      %p299 = por %p297, %p298
      %p300 = scmp.ne.s32.totalorder %s292, %s294
      %p301 = scmp.eq.s32.totalorder %s39, 1
      %p302 = por %p300, %p301
      %p303 = scmp.ne.s32.totalorder %s294, %s295
      %p304 = scmp.eq.s32.totalorder %s39, 0
      %p305 = por %p303, %p304
      %p306 = scmp.ne.s32.totalorder %s294, %s295
      %p307 = scmp.eq.s32.totalorder %s40, 1
      %p308 = por %p306, %p307
      %p310 = scmp.ne.s32.totalorder %s295, %s309
      %p311 = scmp.eq.s32.totalorder %s40, 0
      %p312 = por %p310, %p311
      %s314 = sadd.s32 %s313, 1
      %p317 = scmp.eq.s32.totalorder %s34, 1
      %p318 = scmp.ne.s32.totalorder %s313, %s315
      %p319 = scmp.eq.s32.totalorder %s34, 0
      %p320 = por %p318, %p319
      %p321 = scmp.ne.s32.totalorder %s313, %s315
      %p322 = scmp.eq.s32.totalorder %s39, 1
      %p323 = por %p321, %p322
      %p324 = scmp.ne.s32.totalorder %s315, %s316
      %p325 = scmp.eq.s32.totalorder %s39, 0
      %p326 = por %p324, %p325
      %p327 = scmp.ne.s32.totalorder %s315, %s316
      %p328 = scmp.eq.s32.totalorder %s40, 1
      %p329 = por %p327, %p328
      %p331 = scmp.ne.s32.totalorder %s316, %s330
      %p332 = scmp.eq.s32.totalorder %s40, 0
      %p333 = por %p331, %p332
      %s335 = sadd.s32 %s334, 1
      %p338 = scmp.eq.s32.totalorder %s34, 1
      %p339 = scmp.ne.s32.totalorder %s334, %s336
      %p340 = scmp.eq.s32.totalorder %s34, 0
      %p341 = por %p339, %p340
      %p342 = scmp.ne.s32.totalorder %s334, %s336
      %p343 = scmp.eq.s32.totalorder %s39, 1
      %p344 = por %p342, %p343
      %p345 = scmp.ne.s32.totalorder %s336, %s337
      %p346 = scmp.eq.s32.totalorder %s39, 0
      %p347 = por %p345, %p346
      %p348 = scmp.ne.s32.totalorder %s336, %s337
      %p349 = scmp.eq.s32.totalorder %s40, 1
      %p350 = por %p348, %p349
      %p352 = scmp.ne.s32.totalorder %s337, %s351
      %p353 = scmp.eq.s32.totalorder %s40, 0
      %p354 = por %p352, %p353
      %s356 = sadd.s32 %s355, 1
      %p359 = scmp.eq.s32.totalorder %s34, 1
      %p360 = scmp.ne.s32.totalorder %s355, %s357
      %p361 = scmp.eq.s32.totalorder %s34, 0
      %p362 = por %p360, %p361
      %p363 = scmp.ne.s32.totalorder %s355, %s357
      %p364 = scmp.eq.s32.totalorder %s39, 1
      %p365 = por %p363, %p364
      %p366 = scmp.ne.s32.totalorder %s357, %s358
      %p367 = scmp.eq.s32.totalorder %s39, 0
      %p368 = por %p366, %p367
      %p369 = scmp.ne.s32.totalorder %s357, %s358
      %p370 = scmp.eq.s32.totalorder %s40, 1
      %p371 = por %p369, %p370
      %p373 = scmp.ne.s32.totalorder %s358, %s372
      %p374 = scmp.eq.s32.totalorder %s40, 0
      %p375 = por %p373, %p374
      %s377 = sadd.s32 %s376, 1
      %p380 = scmp.eq.s32.totalorder %s34, 1
      %p381 = scmp.ne.s32.totalorder %s376, %s378
      %p382 = scmp.eq.s32.totalorder %s34, 0
      %p383 = por %p381, %p382
      %p384 = scmp.ne.s32.totalorder %s376, %s378
      %p385 = scmp.eq.s32.totalorder %s39, 1
      %p386 = por %p384, %p385
      %p387 = scmp.ne.s32.totalorder %s378, %s379
      %p388 = scmp.eq.s32.totalorder %s39, 0
      %p389 = por %p387, %p388
      %p390 = scmp.ne.s32.totalorder %s378, %s379
      %p391 = scmp.eq.s32.totalorder %s40, 1
      %p392 = por %p390, %p391
      %p394 = scmp.ne.s32.totalorder %s379, %s393
      %p395 = scmp.eq.s32.totalorder %s40, 0
      %p396 = por %p394, %p395
      %s398 = sadd.s32 %s397, 1
      %p401 = scmp.eq.s32.totalorder %s34, 1
      %p402 = scmp.ne.s32.totalorder %s397, %s399
      %p403 = scmp.eq.s32.totalorder %s34, 0
      %p404 = por %p402, %p403
      %p405 = scmp.ne.s32.totalorder %s397, %s399
      %p406 = scmp.eq.s32.totalorder %s39, 1
      %p407 = por %p405, %p406
      %p408 = scmp.ne.s32.totalorder %s399, %s400
      %p409 = scmp.eq.s32.totalorder %s39, 0
      %p410 = por %p408, %p409
      %p411 = scmp.ne.s32.totalorder %s399, %s400
      %p412 = scmp.eq.s32.totalorder %s40, 1
      %p413 = por %p411, %p412
      %p415 = scmp.ne.s32.totalorder %s400, %s414
      %p416 = scmp.eq.s32.totalorder %s40, 0
      %p417 = por %p415, %p416
      %s419 = sadd.s32 %s418, 1
      %p422 = scmp.eq.s32.totalorder %s34, 1
      %p423 = scmp.ne.s32.totalorder %s418, %s420
      %p424 = scmp.eq.s32.totalorder %s34, 0
      %p425 = por %p423, %p424
      %p426 = scmp.ne.s32.totalorder %s418, %s420
      %p427 = scmp.eq.s32.totalorder %s39, 1
      %p428 = por %p426, %p427
      %p429 = scmp.ne.s32.totalorder %s420, %s421
      %p430 = scmp.eq.s32.totalorder %s39, 0
      %p431 = por %p429, %p430
      %p432 = scmp.ne.s32.totalorder %s420, %s421
      %p433 = scmp.eq.s32.totalorder %s40, 1
      %p434 = por %p432, %p433
      %p436 = scmp.ne.s32.totalorder %s421, %s435
      %p437 = scmp.eq.s32.totalorder %s40, 0
      %p438 = por %p436, %p437
      %s440 = sadd.s32 %s439, 1
      %p443 = scmp.eq.s32.totalorder %s34, 1
      %p444 = scmp.ne.s32.totalorder %s439, %s441
      %p445 = scmp.eq.s32.totalorder %s34, 0
      %p446 = por %p444, %p445
      %p447 = scmp.ne.s32.totalorder %s439, %s441
      %p448 = scmp.eq.s32.totalorder %s39, 1
      %p449 = por %p447, %p448
      %p450 = scmp.ne.s32.totalorder %s441, %s442
      %p451 = scmp.eq.s32.totalorder %s39, 0
      %p452 = por %p450, %p451
      %p453 = scmp.ne.s32.totalorder %s441, %s442
      %p454 = scmp.eq.s32.totalorder %s40, 1
      %p455 = por %p453, %p454
      %p457 = scmp.ne.s32.totalorder %s442, %s456
      %p458 = scmp.eq.s32.totalorder %s40, 0
      %p459 = por %p457, %p458
      %s461 = sadd.s32 %s460, 1
      %p464 = scmp.eq.s32.totalorder %s34, 1
      %p465 = scmp.ne.s32.totalorder %s460, %s462
      %p466 = scmp.eq.s32.totalorder %s34, 0
      %p467 = por %p465, %p466
      %p468 = scmp.ne.s32.totalorder %s460, %s462
      %p469 = scmp.eq.s32.totalorder %s39, 1
      %p470 = por %p468, %p469
      %p471 = scmp.ne.s32.totalorder %s462, %s463
      %p472 = scmp.eq.s32.totalorder %s39, 0
      %p473 = por %p471, %p472
      %p474 = scmp.ne.s32.totalorder %s462, %s463
      %p475 = scmp.eq.s32.totalorder %s40, 1
      %p476 = por %p474, %p475
      %p478 = scmp.ne.s32.totalorder %s463, %s477
      %p479 = scmp.eq.s32.totalorder %s40, 0
      %p480 = por %p478, %p479
      %s482 = sadd.s32 %s481, 1
      %p485 = scmp.eq.s32.totalorder %s34, 1
      %p486 = scmp.ne.s32.totalorder %s481, %s483
      %p487 = scmp.eq.s32.totalorder %s34, 0
      %p488 = por %p486, %p487
      %p489 = scmp.ne.s32.totalorder %s481, %s483
      %p490 = scmp.eq.s32.totalorder %s39, 1
      %p491 = por %p489, %p490
      %p492 = scmp.ne.s32.totalorder %s483, %s484
      %p493 = scmp.eq.s32.totalorder %s39, 0
      %p494 = por %p492, %p493
      %p495 = scmp.ne.s32.totalorder %s483, %s484
      %p496 = scmp.eq.s32.totalorder %s40, 1
      %p497 = por %p495, %p496
      %p499 = scmp.ne.s32.totalorder %s484, %s498
      %p500 = scmp.eq.s32.totalorder %s40, 0
      %p501 = por %p499, %p500
      %s503 = sadd.s32 %s502, 1
      %p506 = scmp.eq.s32.totalorder %s34, 1
      %p507 = scmp.ne.s32.totalorder %s502, %s504
      %p508 = scmp.eq.s32.totalorder %s34, 0
      %p509 = por %p507, %p508
      %p510 = scmp.ne.s32.totalorder %s502, %s504
      %p511 = scmp.eq.s32.totalorder %s39, 1
      %p512 = por %p510, %p511
      %p513 = scmp.ne.s32.totalorder %s504, %s505
      %p514 = scmp.eq.s32.totalorder %s39, 0
      %p515 = por %p513, %p514
      %p516 = scmp.ne.s32.totalorder %s504, %s505
      %p517 = scmp.eq.s32.totalorder %s40, 1
      %p518 = por %p516, %p517
      %p520 = scmp.ne.s32.totalorder %s505, %s519
      %p521 = scmp.eq.s32.totalorder %s40, 0
      %p522 = por %p520, %p521
      %s524 = sadd.s32 %s523, 1
      %p527 = scmp.eq.s32.totalorder %s34, 1
      %p528 = scmp.ne.s32.totalorder %s523, %s525
      %p529 = scmp.eq.s32.totalorder %s34, 0
      %p530 = por %p528, %p529
      %p531 = scmp.ne.s32.totalorder %s523, %s525
      %p532 = scmp.eq.s32.totalorder %s39, 1
      %p533 = por %p531, %p532
      %p534 = scmp.ne.s32.totalorder %s525, %s526
      %p535 = scmp.eq.s32.totalorder %s39, 0
      %p536 = por %p534, %p535
      %p537 = scmp.ne.s32.totalorder %s525, %s526
      %p538 = scmp.eq.s32.totalorder %s40, 1
      %p539 = por %p537, %p538
      %p541 = scmp.ne.s32.totalorder %s526, %s540
      %p542 = scmp.eq.s32.totalorder %s40, 0
      %p543 = por %p541, %p542
      %s545 = sadd.s32 %s544, 1
      %p548 = scmp.eq.s32.totalorder %s34, 1
      %p549 = scmp.ne.s32.totalorder %s544, %s546
      %p550 = scmp.eq.s32.totalorder %s34, 0
      %p551 = por %p549, %p550
      %p552 = scmp.ne.s32.totalorder %s544, %s546
      %p553 = scmp.eq.s32.totalorder %s39, 1
      %p554 = por %p552, %p553
      %p555 = scmp.ne.s32.totalorder %s546, %s547
      %p556 = scmp.eq.s32.totalorder %s39, 0
      %p557 = por %p555, %p556
      %p558 = scmp.ne.s32.totalorder %s546, %s547
      %p559 = scmp.eq.s32.totalorder %s40, 1
      %p560 = por %p558, %p559
      %p562 = scmp.ne.s32.totalorder %s547, %s561
      %p563 = scmp.eq.s32.totalorder %s40, 0
      %p564 = por %p562, %p563
      %s566 = sadd.s32 %s565, 1
      %p569 = scmp.eq.s32.totalorder %s34, 1
      %p570 = scmp.ne.s32.totalorder %s565, %s567
      %p571 = scmp.eq.s32.totalorder %s34, 0
      %p572 = por %p570, %p571
      %p573 = scmp.ne.s32.totalorder %s565, %s567
      %p574 = scmp.eq.s32.totalorder %s39, 1
      %p575 = por %p573, %p574
      %p576 = scmp.ne.s32.totalorder %s567, %s568
      %p577 = scmp.eq.s32.totalorder %s39, 0
      %p578 = por %p576, %p577
      %p579 = scmp.ne.s32.totalorder %s567, %s568
      %p580 = scmp.eq.s32.totalorder %s40, 1
      %p581 = por %p579, %p580
      %p583 = scmp.ne.s32.totalorder %s568, %s582
      %p584 = scmp.eq.s32.totalorder %s40, 0
      %p585 = por %p583, %p584
      %s587 = sadd.s32 %s586, 1
      %p590 = scmp.eq.s32.totalorder %s34, 1
      %p591 = scmp.ne.s32.totalorder %s586, %s588
      %p592 = scmp.eq.s32.totalorder %s34, 0
      %p593 = por %p591, %p592
      %p594 = scmp.ne.s32.totalorder %s586, %s588
      %p595 = scmp.eq.s32.totalorder %s39, 1
      %p596 = por %p594, %p595
      %p597 = scmp.ne.s32.totalorder %s588, %s589
      %p598 = scmp.eq.s32.totalorder %s39, 0
      %p599 = por %p597, %p598
      %p600 = scmp.ne.s32.totalorder %s588, %s589
      %p601 = scmp.eq.s32.totalorder %s40, 1
      %p602 = por %p600, %p601
      %p604 = scmp.ne.s32.totalorder %s589, %s603
      %p605 = scmp.eq.s32.totalorder %s40, 0
      %p606 = por %p604, %p605
      %s608 = sadd.s32 %s607, 1
      %p611 = scmp.eq.s32.totalorder %s34, 1
      %p612 = scmp.ne.s32.totalorder %s607, %s609
      %p613 = scmp.eq.s32.totalorder %s34, 0
      %p614 = por %p612, %p613
      %p615 = scmp.ne.s32.totalorder %s607, %s609
      %p616 = scmp.eq.s32.totalorder %s39, 1
      %p617 = por %p615, %p616
      %p618 = scmp.ne.s32.totalorder %s609, %s610
      %p619 = scmp.eq.s32.totalorder %s39, 0
      %p620 = por %p618, %p619
      %p621 = scmp.ne.s32.totalorder %s609, %s610
      %p622 = scmp.eq.s32.totalorder %s40, 1
      %p623 = por %p621, %p622
      %p625 = scmp.ne.s32.totalorder %s610, %s624
      %p626 = scmp.eq.s32.totalorder %s40, 0
      %p627 = por %p625, %p626
      %s628 = ssub.s32 %s34, %s41
      %p629 = scmp.eq.s32.totalorder %s628, 0
      %s631 = sadd.s32 %s630, 1
      %s632 = scalar_select %p629, %s630, %s631
      %p635 = pneg %p629
      %p636 = scmp.eq.s32.totalorder %s34, 1
      %p637 = por %p635, %p636
      %p638 = scmp.ne.s32.totalorder %s630, %s633
      %p639 = scmp.eq.s32.totalorder %s34, 0
      %p640 = por %p638, %p639
      %p641 = scmp.ne.s32.totalorder %s630, %s633
      %p642 = scmp.eq.s32.totalorder %s39, 1
      %p643 = por %p641, %p642
      %p644 = scmp.ne.s32.totalorder %s633, %s634
      %p645 = scmp.eq.s32.totalorder %s39, 0
      %p646 = por %p644, %p645
      %p647 = scmp.ne.s32.totalorder %s633, %s634
      %p648 = scmp.eq.s32.totalorder %s40, 1
      %p649 = por %p647, %p648
      %p651 = scmp.ne.s32.totalorder %s634, %s650
      %p652 = scmp.eq.s32.totalorder %s40, 0
      %p653 = por %p651, %p652
      %p654 = scmp.le.s32.totalorder 1, %s34
      %p655 = scmp.lt.s32.totalorder %s34, 3
      %p656 = pnand %p654, %p655
      %p657 = pneg %p656
      // Predicated region
      $region9: #{temporal_model_forward.2} parent=5 // pred_check
        _
      $region10: #{temporal_model_forward.2} parent=5 // pred_check_branch
        %659 = sbr.rel (%p656) target = $region12
      $region11: #{temporal_model_forward.2} parent=5 // pred_region
        %s660 = ssub.s32 %s34, 1
        // Predicated region
        $region13: #{temporal_model_forward.2} parent=11 // pred_check
          %p661 = pneg %p263
        $region14: #{temporal_model_forward.2} parent=11 // pred_check_branch
          %663 = sbr.rel (%p661) target = $region16
        $region15: #{temporal_model_forward.2} parent=11 // pred_region
          _
        $region16: #{temporal_model_forward.2} parent=11 // pred_fallthru
          _
        // Predicated region
        $region17: #{temporal_model_forward.2} parent=11 // pred_check
          %p664 = pneg %p284
        $region18: #{temporal_model_forward.2} parent=11 // pred_check_branch
          %666 = sbr.rel (%p664) target = $region20
        $region19: #{temporal_model_forward.2} parent=11 // pred_region
          _
        $region20: #{temporal_model_forward.2} parent=11 // pred_fallthru
          _
        // Predicated region
        $region21: #{temporal_model_forward.2} parent=11 // pred_check
          %p667 = pneg %p305
        $region22: #{temporal_model_forward.2} parent=11 // pred_check_branch
          %669 = sbr.rel (%p667) target = $region24
        $region23: #{temporal_model_forward.2} parent=11 // pred_region
          _
        $region24: #{temporal_model_forward.2} parent=11 // pred_fallthru
          _
        // Predicated region
        $region25: #{temporal_model_forward.2} parent=11 // pred_check
          %p670 = pneg %p326
        $region26: #{temporal_model_forward.2} parent=11 // pred_check_branch
          %672 = sbr.rel (%p670) target = $region28
        $region27: #{temporal_model_forward.2} parent=11 // pred_region
          _
        $region28: #{temporal_model_forward.2} parent=11 // pred_fallthru
          _
        // Predicated region
        $region29: #{temporal_model_forward.2} parent=11 // pred_check
          %p673 = pneg %p347
        $region30: #{temporal_model_forward.2} parent=11 // pred_check_branch
          %675 = sbr.rel (%p673) target = $region32
        $region31: #{temporal_model_forward.2} parent=11 // pred_region
          _
        $region32: #{temporal_model_forward.2} parent=11 // pred_fallthru
          _
        // Predicated region
        $region33: #{temporal_model_forward.2} parent=11 // pred_check
          %p676 = pneg %p368
        $region34: #{temporal_model_forward.2} parent=11 // pred_check_branch
          %678 = sbr.rel (%p676) target = $region36
        $region35: #{temporal_model_forward.2} parent=11 // pred_region
          _
        $region36: #{temporal_model_forward.2} parent=11 // pred_fallthru
          _
        // Predicated region
        $region37: #{temporal_model_forward.2} parent=11 // pred_check
          %p679 = pneg %p389
        $region38: #{temporal_model_forward.2} parent=11 // pred_check_branch
          %681 = sbr.rel (%p679) target = $region40
        $region39: #{temporal_model_forward.2} parent=11 // pred_region
          _
        $region40: #{temporal_model_forward.2} parent=11 // pred_fallthru
          _
        // Predicated region
        $region41: #{temporal_model_forward.2} parent=11 // pred_check
          %p682 = pneg %p410
        $region42: #{temporal_model_forward.2} parent=11 // pred_check_branch
          %684 = sbr.rel (%p682) target = $region44
        $region43: #{temporal_model_forward.2} parent=11 // pred_region
          _
        $region44: #{temporal_model_forward.2} parent=11 // pred_fallthru
          _
        // Predicated region
        $region45: #{temporal_model_forward.2} parent=11 // pred_check
          %p685 = pneg %p431
        $region46: #{temporal_model_forward.2} parent=11 // pred_check_branch
          %687 = sbr.rel (%p685) target = $region48
        $region47: #{temporal_model_forward.2} parent=11 // pred_region
          %689 = vsyncadd [#allocation3], 0
          %s690 = sshll.u32 %s16, 4
          %s691 = int_to_ptr.hbm [resolvable:$true] %s690
          %s692 = sshll.u32 [#allocation2], 4
          %s693 = int_to_ptr.vmem [resolvable:$true] %s692
          %698 = dma.hbm_to_vmem [thread:$0]  %s691, 512, %s693, [#allocation3], 128, 128, 8
        $region48: #{temporal_model_forward.2} parent=11 // pred_fallthru
          _
        // Predicated region
        $region49: #{temporal_model_forward.2} parent=11 // pred_check
          %p699 = pneg %p452
        $region50: #{temporal_model_forward.2} parent=11 // pred_check_branch
          %701 = sbr.rel (%p699) target = $region52
        $region51: #{temporal_model_forward.2} parent=11 // pred_region
          _
        $region52: #{temporal_model_forward.2} parent=11 // pred_fallthru
          _
        // Predicated region
        $region53: #{temporal_model_forward.2} parent=11 // pred_check
          %p702 = pneg %p473
        $region54: #{temporal_model_forward.2} parent=11 // pred_check_branch
          %704 = sbr.rel (%p702) target = $region56
        $region55: #{temporal_model_forward.2} parent=11 // pred_region
          %706 = vsyncadd [#allocation5], 0
          %s707 = sshll.u32 %s18, 4
          %s708 = int_to_ptr.hbm [resolvable:$true] %s707
          %s709 = sshll.u32 [#allocation4], 4
          %s710 = int_to_ptr.vmem [resolvable:$true] %s709
          %715 = dma.hbm_to_vmem [thread:$0]  %s708, 512, %s710, [#allocation5], 128, 128, 8
        $region56: #{temporal_model_forward.2} parent=11 // pred_fallthru
          _
        // Predicated region
        $region57: #{temporal_model_forward.2} parent=11 // pred_check
          %p716 = pneg %p494
        $region58: #{temporal_model_forward.2} parent=11 // pred_check_branch
          %718 = sbr.rel (%p716) target = $region60
        $region59: #{temporal_model_forward.2} parent=11 // pred_region
          _
        $region60: #{temporal_model_forward.2} parent=11 // pred_fallthru
          _
        // Predicated region
        $region61: #{temporal_model_forward.2} parent=11 // pred_check
          %p719 = pneg %p515
        $region62: #{temporal_model_forward.2} parent=11 // pred_check_branch
          %721 = sbr.rel (%p719) target = $region64
        $region63: #{temporal_model_forward.2} parent=11 // pred_region
          _
        $region64: #{temporal_model_forward.2} parent=11 // pred_fallthru
          _
        // Predicated region
        $region65: #{temporal_model_forward.2} parent=11 // pred_check
          %p722 = pneg %p536
        $region66: #{temporal_model_forward.2} parent=11 // pred_check_branch
          %724 = sbr.rel (%p722) target = $region68
        $region67: #{temporal_model_forward.2} parent=11 // pred_region
          _
        $region68: #{temporal_model_forward.2} parent=11 // pred_fallthru
          _
        // Predicated region
        $region69: #{temporal_model_forward.2} parent=11 // pred_check
          %p725 = pneg %p557
        $region70: #{temporal_model_forward.2} parent=11 // pred_check_branch
          %727 = sbr.rel (%p725) target = $region72
        $region71: #{temporal_model_forward.2} parent=11 // pred_region
          _
        $region72: #{temporal_model_forward.2} parent=11 // pred_fallthru
          _
        // Predicated region
        $region73: #{temporal_model_forward.2} parent=11 // pred_check
          %p728 = pneg %p578
        $region74: #{temporal_model_forward.2} parent=11 // pred_check_branch
          %730 = sbr.rel (%p728) target = $region76
        $region75: #{temporal_model_forward.2} parent=11 // pred_region
          _
        $region76: #{temporal_model_forward.2} parent=11 // pred_fallthru
          _
        // Predicated region
        $region77: #{temporal_model_forward.2} parent=11 // pred_check
          %p731 = pneg %p599
        $region78: #{temporal_model_forward.2} parent=11 // pred_check_branch
          %733 = sbr.rel (%p731) target = $region80
        $region79: #{temporal_model_forward.2} parent=11 // pred_region
          _
        $region80: #{temporal_model_forward.2} parent=11 // pred_fallthru
          _
        // Predicated region
        $region81: #{temporal_model_forward.2} parent=11 // pred_check
          %p734 = pneg %p620
        $region82: #{temporal_model_forward.2} parent=11 // pred_check_branch
          %736 = sbr.rel (%p734) target = $region84
        $region83: #{temporal_model_forward.2} parent=11 // pred_region
          _
        $region84: #{temporal_model_forward.2} parent=11 // pred_fallthru
          _
      $region12: #{temporal_model_forward.2} parent=5 // pred_fallthru
        _
      %p737 = scmp.lt.s32.totalorder %s34, 2
      // Predicated region
      $region85: #{temporal_model_forward.2} parent=5 // pred_check
        %p738 = pneg %p737
      $region86: #{temporal_model_forward.2} parent=5 // pred_check_branch
        %740 = sbr.rel (%p738) target = $region88
      $region87: #{temporal_model_forward.2} parent=5 // pred_region
        // Predicated region
        $region89: #{temporal_model_forward.2} parent=87 // pred_check
          %p741 = pneg %p54
        $region90: #{temporal_model_forward.2} parent=87 // pred_check_branch
          %743 = sbr.rel (%p741) target = $region92
        $region91: #{temporal_model_forward.2} parent=87 // pred_region
          %p744 = scmp.lt.s32.totalorder %s34, 1
          %s745 = scalar_select %p744, %s34, 1
          %s746 = smul.addr %s745, 8
          %s747 = scalar_lea.vmem %s0, %s746
        $region92: #{temporal_model_forward.2} parent=87 // pred_fallthru
          _
        // Predicated region
        $region93: #{temporal_model_forward.2} parent=87 // pred_check
          %p748 = pneg %p80
        $region94: #{temporal_model_forward.2} parent=87 // pred_check_branch
          %750 = sbr.rel (%p748) target = $region96
        $region95: #{temporal_model_forward.2} parent=87 // pred_region
          %p751 = scmp.lt.s32.totalorder %s34, 1
          %s752 = scalar_select %p751, %s34, 1
          %s753 = smul.addr %s752, 2
          %s754 = scalar_lea.vmem %s1, %s753
        $region96: #{temporal_model_forward.2} parent=87 // pred_fallthru
          _
        // Predicated region
        $region97: #{temporal_model_forward.2} parent=87 // pred_check
          %p755 = pneg %p106
        $region98: #{temporal_model_forward.2} parent=87 // pred_check_branch
          %757 = sbr.rel (%p755) target = $region100
        $region99: #{temporal_model_forward.2} parent=87 // pred_region
          %p758 = scmp.lt.s32.totalorder %s34, 1
          %s759 = scalar_select %p758, %s34, 1
          %s760 = smul.addr %s759, 2
          %s761 = scalar_lea.vmem %s2, %s760
        $region100: #{temporal_model_forward.2} parent=87 // pred_fallthru
          _
        // Predicated region
        $region101: #{temporal_model_forward.2} parent=87 // pred_check
          %p762 = pneg %p132
        $region102: #{temporal_model_forward.2} parent=87 // pred_check_branch
          %764 = sbr.rel (%p762) target = $region104
        $region103: #{temporal_model_forward.2} parent=87 // pred_region
          %p765 = scmp.lt.s32.totalorder %s34, 1
          %s766 = scalar_select %p765, %s34, 1
          %s767 = smul.addr %s766, 2
          %s768 = scalar_lea.vmem %s3, %s767
        $region104: #{temporal_model_forward.2} parent=87 // pred_fallthru
          _
        // Predicated region
        $region105: #{temporal_model_forward.2} parent=87 // pred_check
          %p769 = pneg %p158
        $region106: #{temporal_model_forward.2} parent=87 // pred_check_branch
          %771 = sbr.rel (%p769) target = $region108
        $region107: #{temporal_model_forward.2} parent=87 // pred_region
          %p772 = scmp.lt.s32.totalorder %s34, 1
          %s773 = scalar_select %p772, %s34, 1
          %s774 = smul.addr %s773, 2
          %s775 = scalar_lea.vmem %s4, %s774
        $region108: #{temporal_model_forward.2} parent=87 // pred_fallthru
          _
        // Predicated region
        $region109: #{temporal_model_forward.2} parent=87 // pred_check
          %p776 = pneg %p184
        $region110: #{temporal_model_forward.2} parent=87 // pred_check_branch
          %778 = sbr.rel (%p776) target = $region112
        $region111: #{temporal_model_forward.2} parent=87 // pred_region
          %p779 = scmp.lt.s32.totalorder %s34, 1
          %s780 = scalar_select %p779, %s34, 1
          %s781 = smul.addr %s780, 2
          %s782 = scalar_lea.vmem %s5, %s781
        $region112: #{temporal_model_forward.2} parent=87 // pred_fallthru
          _
        // Predicated region
        $region113: #{temporal_model_forward.2} parent=87 // pred_check
          %p783 = pneg %p210
        $region114: #{temporal_model_forward.2} parent=87 // pred_check_branch
          %785 = sbr.rel (%p783) target = $region116
        $region115: #{temporal_model_forward.2} parent=87 // pred_region
          %p786 = scmp.lt.s32.totalorder %s34, 1
          %s787 = scalar_select %p786, %s34, 1
          %s788 = smul.addr %s787, 2
          %s789 = scalar_lea.vmem %s6, %s788
        $region116: #{temporal_model_forward.2} parent=87 // pred_fallthru
          _
        // Predicated region
        $region117: #{temporal_model_forward.2} parent=87 // pred_check
          %p790 = pneg %p236
        $region118: #{temporal_model_forward.2} parent=87 // pred_check_branch
          %792 = sbr.rel (%p790) target = $region120
        $region119: #{temporal_model_forward.2} parent=87 // pred_region
          %p793 = scmp.lt.s32.totalorder %s34, 1
          %s794 = scalar_select %p793, %s34, 1
          %s795 = scalar_lea.vmem %s7, %s794
        $region120: #{temporal_model_forward.2} parent=87 // pred_fallthru
          _
      $region88: #{temporal_model_forward.2} parent=5 // pred_fallthru
        _
      %p796 = scmp.le.s32.totalorder 1, %s34
      %p797 = scmp.lt.s32.totalorder %s34, 3
      %p798 = pnand %p796, %p797
      %p799 = pneg %p798
      // Predicated region
      $region121: #{temporal_model_forward.2} parent=5 // pred_check
        _
      $region122: #{temporal_model_forward.2} parent=5 // pred_check_branch
        %801 = sbr.rel (%p798) target = $region124
      $region123: #{temporal_model_forward.2} parent=5 // pred_region
        %s802 = ssub.s32 %s34, 1
        // Predicated region
        $region125: #{temporal_model_forward.2} parent=123 // pred_check
          %p803 = pneg %p431
        $region126: #{temporal_model_forward.2} parent=123 // pred_check_branch
          %805 = sbr.rel (%p803) target = $region128
        $region127: #{temporal_model_forward.2} parent=123 // pred_region
          %807 = dma.done [#allocation3], 512
        $region128: #{temporal_model_forward.2} parent=123 // pred_fallthru
          _
        // Predicated region
        $region129: #{temporal_model_forward.2} parent=123 // pred_check
          %p808 = pneg %p473
        $region130: #{temporal_model_forward.2} parent=123 // pred_check_branch
          %810 = sbr.rel (%p808) target = $region132
        $region131: #{temporal_model_forward.2} parent=123 // pred_region
          %812 = dma.done [#allocation5], 512
        $region132: #{temporal_model_forward.2} parent=123 // pred_fallthru
          _
        %p813 = scmp.lt.s32.totalorder %s39, 1
        %s814 = scalar_select %p813, %s39, 1
        %s815 = smul.addr %s814, 8
        %s816 = scalar_lea.vmem %s0, %s815
        %p817 = pneg %p60
        %p818 = pneg %p57
        %p819 = scmp.lt.s32.totalorder %s39, 1
        %s820 = scalar_select %p819, %s39, 1
        %s821 = smul.addr %s820, 2
        %s822 = scalar_lea.vmem %s1, %s821
        %p823 = pneg %p86
        %p824 = pneg %p83
        %p825 = scmp.lt.s32.totalorder %s39, 1
        %s826 = scalar_select %p825, %s39, 1
        %s827 = smul.addr %s826, 2
        %s828 = scalar_lea.vmem %s2, %s827
        %p829 = pneg %p112
        %p830 = pneg %p109
        %p831 = scmp.lt.s32.totalorder %s39, 1
        %s832 = scalar_select %p831, %s39, 1
        %s833 = smul.addr %s832, 2
        %s834 = scalar_lea.vmem %s3, %s833
        %p835 = pneg %p138
        %p836 = pneg %p135
        %p837 = scmp.lt.s32.totalorder %s39, 1
        %s838 = scalar_select %p837, %s39, 1
        %s839 = smul.addr %s838, 2
        %s840 = scalar_lea.vmem %s4, %s839
        %p841 = pneg %p164
        %p842 = pneg %p161
        %p843 = scmp.lt.s32.totalorder %s39, 1
        %s844 = scalar_select %p843, %s39, 1
        %s845 = smul.addr %s844, 2
        %s846 = scalar_lea.vmem %s5, %s845
        %p847 = pneg %p190
        %p848 = pneg %p187
        %p849 = scmp.lt.s32.totalorder %s39, 1
        %s850 = scalar_select %p849, %s39, 1
        %s851 = smul.addr %s850, 2
        %s852 = scalar_lea.vmem %s6, %s851
        %p853 = pneg %p216
        %p854 = pneg %p213
        %p855 = scmp.lt.s32.totalorder %s39, 1
        %s856 = scalar_select %p855, %s39, 1
        %s857 = scalar_lea.vmem %s7, %s856
        %p858 = pneg %p242
        %p859 = pneg %p239
        %p860 = pneg %p263
        %p861 = pneg %p260
        %p862 = pneg %p284
        %p863 = pneg %p281
        %p864 = pneg %p305
        %p865 = pneg %p302
        %p866 = pneg %p326
        %p867 = pneg %p323
        %p868 = pneg %p347
        %p869 = pneg %p344
        %p870 = pneg %p368
        %p871 = pneg %p365
        %p872 = pneg %p389
        %p873 = pneg %p386
        %p874 = pneg %p410
        %p875 = pneg %p407
        %p876 = pneg %p431
        %p877 = pneg %p428
        %p878 = pneg %p452
        %p879 = pneg %p449
        %p880 = pneg %p473
        %p881 = pneg %p470
        %p882 = pneg %p494
        %p883 = pneg %p491
        %p884 = pneg %p515
        %p885 = pneg %p512
        %p886 = pneg %p536
        %p887 = pneg %p533
        %p888 = pneg %p557
        %p889 = pneg %p554
        %p890 = pneg %p578
        %p891 = pneg %p575
        %p892 = pneg %p599
        %p893 = pneg %p596
        %p894 = pneg %p620
        %p895 = pneg %p617
        %p896 = pneg %p646
        %p897 = pneg %p643
        %p898 = scmp.lt.s32.totalorder %s39, 1
        %s899 = scalar_select %p898, %s39, 1
        %s900 = smul.addr %s899, 8
        %s901 = scalar_lea.vmem %s26, %s900
        %p902 = scmp.lt.s32.totalorder %s39, 1
        %s903 = scalar_select %p902, %s39, 1
        %s904 = smul.addr %s903, 8
        %s905 = scalar_lea.vmem %s0, %s904
        %p906 = scmp.lt.s32.totalorder %s39, 1
        %s907 = scalar_select %p906, %s39, 1
        %s908 = smul.addr %s907, 2
        %s909 = scalar_lea.vmem %s1, %s908
        %p910 = scmp.lt.s32.totalorder %s39, 1
        %s911 = scalar_select %p910, %s39, 1
        %s912 = smul.addr %s911, 2
        %s913 = scalar_lea.vmem %s2, %s912
        %p914 = scmp.lt.s32.totalorder %s39, 1
        %s915 = scalar_select %p914, %s39, 1
        %s916 = smul.addr %s915, 2
        %s917 = scalar_lea.vmem %s3, %s916
        %p918 = scmp.lt.s32.totalorder %s39, 1
        %s919 = scalar_select %p918, %s39, 1
        %s920 = smul.addr %s919, 2
        %s921 = scalar_lea.vmem %s4, %s920
        %p922 = scmp.lt.s32.totalorder %s39, 1
        %s923 = scalar_select %p922, %s39, 1
        %s924 = smul.addr %s923, 2
        %s925 = scalar_lea.vmem %s5, %s924
        %p926 = scmp.lt.s32.totalorder %s39, 1
        %s927 = scalar_select %p926, %s39, 1
        %s928 = smul.addr %s927, 2
        %s929 = scalar_lea.vmem %s6, %s928
        %p930 = scmp.lt.s32.totalorder %s39, 1
        %s931 = scalar_select %p930, %s39, 1
        %s932 = scalar_lea.vmem %s7, %s931
        %p933 = scmp.lt.s32.totalorder %s39, 1
        %s934 = scalar_select %p933, %s39, 1
        %s935 = smul.addr %s934, 8
        %s936 = scalar_lea.vmem %s26, %s935
        %v938 = vlaneseq
        %v939 = vshrl.u32 %v938, 7
        %v940 = vlaneseq
        %v941 = vand.u32 %v940, 127
        %vm942 = vcmp.le.s32.totalorder %v941, %v939
        %v943 = vsel %vm942, 0.0, -1e+30
        %v944 = vld [vmem:[%s905] sm:$0xff]
        %v945 = vld [vmem:[%s909] sm:$0x3]
        %v946 = vld [vmem:[%s913] sm:$0x3]
        %v947 = vld [vmem:[%s917] sm:$0x3]
        %v948 = vld [vmem:[%s921] sm:$0x3]
        %v949 = vld [vmem:[%s925] sm:$0x3]
        %v950 = vld [vmem:[%s929] sm:$0x3]
        %v951 = vld [vmem:[%s932] sm:$0x1]
        %vm952 = vcmask 261120
        %v953 = vsel %vm952, %v944, 0.0
        %954 = vadd.xlane.f32.xlu0 %v953
        %v955 = vpop.xlane.xlu0 %954
        %v956 = vrcp.pop 32.0
        %v957 = vmul.f32 32.0, %v956
        %v958 = vsub.f32 1.0, %v957
        %v959 = vmul.f32 %v956, %v958
        %v960 = vadd.f32 %v956, %v959
        %vm961 = vweird.f32 %v956
        %v962 = vsel %vm961, %v956, %v960
        %v963 = vmul.f32 %v955, %v962
        %v964 = vsub.f32 %v944, %v963
        %v965 = vmul.f32 %v964, %v964
        %v966 = vsel %vm952, %v965, 0.0
        %967 = vadd.xlane.f32.xlu0 %v966
        %v968 = vpop.xlane.xlu0 %967
        %v969 = vmul.f32 %v968, %v962
        %v970 = vadd.f32 %v969, 1e-05
        %v971 = vrsqrt.pop %v970
        %v972 = vmul.f32 %v971, %v970
        %v973 = vmul.f32 %v972, %v971
        %v974 = vmul.f32 0.5, %v973
        %v975 = vsub.f32 1.5, %v974
        %v976 = vmul.f32 %v971, %v975
        %vm977 = vweird.f32 %v970
        %vm978 = vweird.f32 %v971
        %vm979 = vmor %vm977, %vm978
        %v980 = vsel %vm979, %v971, %v976
        %v981 = vmul.f32 %v964, %v980
        %v982 = vperm.slane %v945, 0
        %v983 = vmul.f32 %v981, %v982
        %v984 = vperm.slane %v946, 0
        %v985 = vadd.f32 %v983, %v984
        %v986 = vpack.c.bf16 %v985, %v985
        %v987 = vld [vmem:[%s8] sm:$0xff]
        %v988 = vld [vmem:[%s8 + $0x8] sm:$0xff]
        %v989 = vld [vmem:[%s8 + $0x10] sm:$0xff]
        %v990 = vld [vmem:[%s8 + $0x18] sm:$0xff]
        %v991 = vpack.c.bf16 %v988, %v987
        %v992 = vpack.c.bf16 %v990, %v989
        %v993 = vld [vmem:[%s9] sm:$0x1]
        %v995 = vperm.slane %v993, 0
        %v998 = vsel %vm952, %v986, 0
        %1000 = vmatpush.bf16.msra.mxu0 0
        %1001 = vmatpush.bf16.msra.mxu0 0
        %1002 = vmatpush.bf16.msra.mxu0 0
        %1003 = vmatpush.bf16.msra.mxu0 0
        %1004 = vmatpush.bf16.msra.mxu0 0
        %1005 = vmatpush.bf16.msra.mxu0 0
        %1006 = vmatpush.bf16.msra.mxu0 %v992
        %1007 = vmatpush.bf16.msra.mxu0 %v991
        %1008 = vmatmul.bf16.gmra.mxu0 %v998
        %v1009 = vpop.f32.mrf.mxu0
        %v1010 = vadd.f32 %v995, %v1009
        %v1011 = vpop.f32.mrf.mxu0
        %1012 = vdwg.mxu0
        %v1013 = vmul.f32 %v1010, 0.35355338
        %v1014 = vpack.c.bf16 %v1013, %v1013
        %v1015 = vpack.c.bf16 %v1010, %v1010
        %1017 = vrot.lane.b32.xlu0 %v1015, 96
        %v1018 = vpop.permute.xlu0 %1017
        %vm1019 = vcmask 64512
        %v1021 = vsel %vm1019, %v1014, 0
        %v1024 = vsel %vm1019, %v1018, 0
        %1026 = vmatpush.bf16.xpose.msra.mxu0 0
        %1027 = vmatpush.bf16.xpose.msra.mxu0 0
        %1028 = vmatpush.bf16.xpose.msra.mxu0 0
        %1029 = vmatpush.bf16.xpose.msra.mxu0 0
        %1030 = vmatpush.bf16.xpose.msra.mxu0 0
        %1031 = vmatpush.bf16.xpose.msra.mxu0 0
        %1032 = vmatpush.bf16.xpose.msra.mxu0 0
        %1033 = vmatpush.bf16.xpose.msra.mxu0 %v1024
        %1034 = vmatmul.bf16.gmra.mxu0 %v1021
        %v1035 = vpop.f32.mrf.mxu0
        %v1036 = vadd.f32 %v943, %v1035
        %v1037 = vpop.f32.mrf.mxu0
        %1038 = vdwg.mxu0
        %v1039 = vsel %vm1019, %v1036, -inf
        %1040 = vmax.xlane.f32.xlu0 %v1039
        %v1041 = vpop.xlane.xlu0 %1040
        %v1042 = vsub.f32 %v1036, %v1041
        %v1043 = vmul.f32 %v1042, 1.442695
        %v1044 = vpow.pop %v1043
        %v1045 = vsel %vm1019, %v1044, 0.0
        %1046 = vadd.xlane.f32.xlu0 %v1045
        %v1047 = vpop.xlane.xlu0 %1046
        %v1048 = vrcp.pop %v1047
        %v1049 = vmul.f32 %v1044, %v1048
        %v1050 = vpack.c.bf16 %v1049, %v1049
        %1051 = vrot.lane.b32.xlu0 %v1015, 64
        %v1052 = vpop.permute.xlu0 %1051
        %v1054 = vsel %vm1019, %v1050, 0
        %vm1056 = vcmask 1043456
        %v1058 = vsel %vm1056, %v1052, 0
        %1060 = vmatpush.bf16.msra.mxu0 0
        %1061 = vmatpush.bf16.msra.mxu0 0
        %1062 = vmatpush.bf16.msra.mxu0 0
        %1063 = vmatpush.bf16.msra.mxu0 0
        %1064 = vmatpush.bf16.msra.mxu0 0
        %1065 = vmatpush.bf16.msra.mxu0 0
        %1066 = vmatpush.bf16.msra.mxu0 0
        %1067 = vmatpush.bf16.msra.mxu0 %v1058
        %1068 = vmatmul.bf16.gmra.mxu0 %v1054
        %v1069 = vpop.f32.mrf.mxu0
        %v1070 = vadd.f32 0.0, %v1069
        %v1071 = vpop.f32.mrf.mxu0
        %1072 = vdwg.mxu0
        %1074 = vrot.lane.b32.xlu0 %v1014, 120
        %v1075 = vpop.permute.xlu0 %1074
        %1076 = vrot.lane.b32.xlu0 %v1015, 88
        %v1077 = vpop.permute.xlu0 %1076
        %v1079 = vsel %vm1019, %v1075, 0
        %v1082 = vsel %vm1019, %v1077, 0
        %1084 = vmatpush.bf16.xpose.msra.mxu0 0
        %1085 = vmatpush.bf16.xpose.msra.mxu0 0
        %1086 = vmatpush.bf16.xpose.msra.mxu0 0
        %1087 = vmatpush.bf16.xpose.msra.mxu0 0
        %1088 = vmatpush.bf16.xpose.msra.mxu0 0
        %1089 = vmatpush.bf16.xpose.msra.mxu0 0
        %1090 = vmatpush.bf16.xpose.msra.mxu0 0
        %1091 = vmatpush.bf16.xpose.msra.mxu0 %v1082
        %1092 = vmatmul.bf16.gmra.mxu0 %v1079
        %v1093 = vpop.f32.mrf.mxu0
        %v1094 = vadd.f32 %v943, %v1093
        %v1095 = vpop.f32.mrf.mxu0
        %1096 = vdwg.mxu0
        %v1097 = vsel %vm1019, %v1094, -inf
        %1098 = vmax.xlane.f32.xlu0 %v1097
        %v1099 = vpop.xlane.xlu0 %1098
        %v1100 = vsub.f32 %v1094, %v1099
        %v1101 = vmul.f32 %v1100, 1.442695
        %v1102 = vpow.pop %v1101
        %v1103 = vsel %vm1019, %v1102, 0.0
        %1104 = vadd.xlane.f32.xlu0 %v1103
        %v1105 = vpop.xlane.xlu0 %1104
        %v1106 = vrcp.pop %v1105
        %v1107 = vmul.f32 %v1102, %v1106
        %v1108 = vpack.c.bf16 %v1107, %v1107
        %1109 = vrot.lane.b32.xlu0 %v1015, 56
        %v1110 = vpop.permute.xlu0 %1109
        %v1112 = vsel %vm1019, %v1108, 0
        %v1115 = vsel %vm1056, %v1110, 0
        %1117 = vmatpush.bf16.msra.mxu0 0
        %1118 = vmatpush.bf16.msra.mxu0 0
        %1119 = vmatpush.bf16.msra.mxu0 0
        %1120 = vmatpush.bf16.msra.mxu0 0
        %1121 = vmatpush.bf16.msra.mxu0 0
        %1122 = vmatpush.bf16.msra.mxu0 0
        %1123 = vmatpush.bf16.msra.mxu0 0
        %1124 = vmatpush.bf16.msra.mxu0 %v1115
        %1125 = vmatmul.bf16.gmra.mxu0 %v1112
        %v1126 = vpop.f32.mrf.mxu0
        %v1127 = vadd.f32 0.0, %v1126
        %v1128 = vpop.f32.mrf.mxu0
        %1129 = vdwg.mxu0
        %1130 = vrot.lane.b32.xlu0 %v1014, 112
        %v1131 = vpop.permute.xlu0 %1130
        %1132 = vrot.lane.b32.xlu0 %v1015, 80
        %v1133 = vpop.permute.xlu0 %1132
        %v1135 = vsel %vm1019, %v1131, 0
        %v1138 = vsel %vm1019, %v1133, 0
        %1140 = vmatpush.bf16.xpose.msra.mxu0 0
        %1141 = vmatpush.bf16.xpose.msra.mxu0 0
        %1142 = vmatpush.bf16.xpose.msra.mxu0 0
        %1143 = vmatpush.bf16.xpose.msra.mxu0 0
        %1144 = vmatpush.bf16.xpose.msra.mxu0 0
        %1145 = vmatpush.bf16.xpose.msra.mxu0 0
        %1146 = vmatpush.bf16.xpose.msra.mxu0 0
        %1147 = vmatpush.bf16.xpose.msra.mxu0 %v1138
        %1148 = vmatmul.bf16.gmra.mxu0 %v1135
        %v1149 = vpop.f32.mrf.mxu0
        %v1150 = vadd.f32 %v943, %v1149
        %v1151 = vpop.f32.mrf.mxu0
        %1152 = vdwg.mxu0
        %v1153 = vsel %vm1019, %v1150, -inf
        %1154 = vmax.xlane.f32.xlu0 %v1153
        %v1155 = vpop.xlane.xlu0 %1154
        %v1156 = vsub.f32 %v1150, %v1155
        %v1157 = vmul.f32 %v1156, 1.442695
        %v1158 = vpow.pop %v1157
        %v1159 = vsel %vm1019, %v1158, 0.0
        %1160 = vadd.xlane.f32.xlu0 %v1159
        %v1161 = vpop.xlane.xlu0 %1160
        %v1162 = vrcp.pop %v1161
        %v1163 = vmul.f32 %v1158, %v1162
        %v1164 = vpack.c.bf16 %v1163, %v1163
        %1165 = vrot.lane.b32.xlu0 %v1015, 48
        %v1166 = vpop.permute.xlu0 %1165
        %v1168 = vsel %vm1019, %v1164, 0
        %v1171 = vsel %vm1056, %v1166, 0
        %1173 = vmatpush.bf16.msra.mxu0 0
        %1174 = vmatpush.bf16.msra.mxu0 0
        %1175 = vmatpush.bf16.msra.mxu0 0
        %1176 = vmatpush.bf16.msra.mxu0 0
        %1177 = vmatpush.bf16.msra.mxu0 0
        %1178 = vmatpush.bf16.msra.mxu0 0
        %1179 = vmatpush.bf16.msra.mxu0 0
        %1180 = vmatpush.bf16.msra.mxu0 %v1171
        %1181 = vmatmul.bf16.gmra.mxu0 %v1168
        %v1182 = vpop.f32.mrf.mxu0
        %v1183 = vadd.f32 0.0, %v1182
        %v1184 = vpop.f32.mrf.mxu0
        %1185 = vdwg.mxu0
        %1186 = vrot.lane.b32.xlu0 %v1014, 104
        %v1187 = vpop.permute.xlu0 %1186
        %1188 = vrot.lane.b32.xlu0 %v1015, 72
        %v1189 = vpop.permute.xlu0 %1188
        %v1191 = vsel %vm1019, %v1187, 0
        %v1194 = vsel %vm1019, %v1189, 0
        %1196 = vmatpush.bf16.xpose.msra.mxu0 0
        %1197 = vmatpush.bf16.xpose.msra.mxu0 0
        %1198 = vmatpush.bf16.xpose.msra.mxu0 0
        %1199 = vmatpush.bf16.xpose.msra.mxu0 0
        %1200 = vmatpush.bf16.xpose.msra.mxu0 0
        %1201 = vmatpush.bf16.xpose.msra.mxu0 0
        %1202 = vmatpush.bf16.xpose.msra.mxu0 0
        %1203 = vmatpush.bf16.xpose.msra.mxu0 %v1194
        %1204 = vmatmul.bf16.gmra.mxu0 %v1191
        %v1205 = vpop.f32.mrf.mxu0
        %v1206 = vadd.f32 %v943, %v1205
        %v1207 = vpop.f32.mrf.mxu0
        %1208 = vdwg.mxu0
        %v1209 = vsel %vm1019, %v1206, -inf
        %1210 = vmax.xlane.f32.xlu0 %v1209
        %v1211 = vpop.xlane.xlu0 %1210
        %v1212 = vsub.f32 %v1206, %v1211
        %v1213 = vmul.f32 %v1212, 1.442695
        %v1214 = vpow.pop %v1213
        %v1215 = vsel %vm1019, %v1214, 0.0
        %1216 = vadd.xlane.f32.xlu0 %v1215
        %v1217 = vpop.xlane.xlu0 %1216
        %v1218 = vrcp.pop %v1217
        %v1219 = vmul.f32 %v1214, %v1218
        %v1220 = vpack.c.bf16 %v1219, %v1219
        %1221 = vrot.lane.b32.xlu0 %v1015, 40
        %v1222 = vpop.permute.xlu0 %1221
        %v1224 = vsel %vm1019, %v1220, 0
        %v1227 = vsel %vm1056, %v1222, 0
        %1229 = vmatpush.bf16.msra.mxu0 0
        %1230 = vmatpush.bf16.msra.mxu0 0
        %1231 = vmatpush.bf16.msra.mxu0 0
        %1232 = vmatpush.bf16.msra.mxu0 0
        %1233 = vmatpush.bf16.msra.mxu0 0
        %1234 = vmatpush.bf16.msra.mxu0 0
        %1235 = vmatpush.bf16.msra.mxu0 0
        %1236 = vmatpush.bf16.msra.mxu0 %v1227
        %1237 = vmatmul.bf16.gmra.mxu0 %v1224
        %v1238 = vpop.f32.mrf.mxu0
        %v1239 = vadd.f32 0.0, %v1238
        %v1240 = vpop.f32.mrf.mxu0
        %1241 = vdwg.mxu0
        %1243 = vrot.lane.b32.xlu0 %v1127, 8
        %v1244 = vpop.permute.xlu0 %1243
        %1247 = vrot.lane.b32.xlu0 %v1183, 16
        %v1248 = vpop.permute.xlu0 %1247
        %1251 = vrot.lane.b32.xlu0 %v1239, 24
        %v1252 = vpop.permute.xlu0 %1251
        %v1254 = vsel %vm1019, %v1070, %v1244
        %vm1255 = vcmask 130048
        %v1256 = vsel %vm1255, %v1254, %v1248
        %vm1257 = vcmask 195584
        %v1258 = vsel %vm1257, %v1256, %v1252
        %v1259 = vpack.c.bf16 %v1258, %v1258
        %v1260 = vld [vmem:[%s10] sm:$0xff]
        %v1261 = vld [vmem:[%s10 + $0x8] sm:$0xff]
        %v1262 = vld [vmem:[%s10 + $0x10] sm:$0xff]
        %v1263 = vld [vmem:[%s10 + $0x18] sm:$0xff]
        %v1264 = vpack.c.bf16 %v1261, %v1260
        %v1265 = vpack.c.bf16 %v1263, %v1262
        %v1266 = vld [vmem:[%s11] sm:$0x1]
        %v1268 = vperm.slane %v1266, 0
        %v1271 = vsel %vm952, %v1259, 0
        %1273 = vmatpush.bf16.msra.mxu0 0
        %1274 = vmatpush.bf16.msra.mxu0 0
        %1275 = vmatpush.bf16.msra.mxu0 0
        %1276 = vmatpush.bf16.msra.mxu0 0
        %1277 = vmatpush.bf16.msra.mxu0 0
        %1278 = vmatpush.bf16.msra.mxu0 0
        %1279 = vmatpush.bf16.msra.mxu0 %v1265
        %1280 = vmatpush.bf16.msra.mxu0 %v1264
        %1281 = vmatmul.bf16.gmra.mxu0 %v1271
        %v1282 = vpop.f32.mrf.mxu0
        %v1283 = vadd.f32 %v1268, %v1282
        %v1284 = vpop.f32.mrf.mxu0
        %1285 = vdwg.mxu0
        %v1286 = vadd.f32 %v944, %v1283
        %1288 = vrot.lane.b32.xlu0 %v944, 96
        %v1289 = vpop.permute.xlu0 %1288
        %v1291 = vsel %vm952, %v1289, 0.0
        %1292 = vadd.xlane.f32.xlu0 %v1291
        %v1293 = vpop.xlane.xlu0 %1292
        %v1294 = vmul.f32 %v1293, %v962
        %v1295 = vsub.f32 %v944, %v1294
        %v1296 = vmul.f32 %v1295, %v1295
        %1298 = vrot.lane.b32.xlu0 %v1296, 96
        %v1299 = vpop.permute.xlu0 %1298
        %v1301 = vsel %vm952, %v1299, 0.0
        %1302 = vadd.xlane.f32.xlu0 %v1301
        %v1303 = vpop.xlane.xlu0 %1302
        %v1304 = vmul.f32 %v1303, %v962
        %v1305 = vadd.f32 %v1304, 1e-05
        %v1306 = vrsqrt.pop %v1305
        %v1307 = vmul.f32 %v1306, %v1305
        %v1308 = vmul.f32 %v1307, %v1306
        %v1309 = vmul.f32 0.5, %v1308
        %v1310 = vsub.f32 1.5, %v1309
        %v1311 = vmul.f32 %v1306, %v1310
        %vm1312 = vweird.f32 %v1305
        %vm1313 = vweird.f32 %v1306
        %vm1314 = vmor %vm1312, %vm1313
        %v1315 = vsel %vm1314, %v1306, %v1311
        %v1316 = vmul.f32 %v1295, %v1315
        %v1317 = vperm.slane %v945, 1
        %1319 = vrot.lane.b32.xlu0 %v1317, 32
        %v1320 = vpop.permute.xlu0 %1319
        %v1322 = vmul.f32 %v1316, %v1320
        %v1323 = vperm.slane %v946, 1
        %1325 = vrot.lane.b32.xlu0 %v1323, 32
        %v1326 = vpop.permute.xlu0 %1325
        %v1328 = vadd.f32 %v1322, %v1326
        %v1329 = vpack.c.bf16 %v1328, %v1328
        %s1330 = scalar_lea.vmem %s8, 32
        %v1331 = vld [vmem:[%s1330] sm:$0xff]
        %v1332 = vld [vmem:[%s1330 + $0x8] sm:$0xff]
        %v1333 = vld [vmem:[%s1330 + $0x10] sm:$0xff]
        %v1334 = vld [vmem:[%s1330 + $0x18] sm:$0xff]
        %v1335 = vpack.c.bf16 %v1332, %v1331
        %v1336 = vpack.c.bf16 %v1334, %v1333
        %s1337 = scalar_lea.vmem %s9, 1
        %v1338 = vld [vmem:[%s1337] sm:$0x1]
        %v1340 = vperm.slane %v1338, 0
        %1343 = vrot.lane.b32.xlu0 %v1329, 96
        %v1344 = vpop.permute.xlu0 %1343
        %v1346 = vsel %vm952, %v1344, 0
        %1348 = vmatpush.bf16.msra.mxu0 0
        %1349 = vmatpush.bf16.msra.mxu0 0
        %1350 = vmatpush.bf16.msra.mxu0 0
        %1351 = vmatpush.bf16.msra.mxu0 0
        %1352 = vmatpush.bf16.msra.mxu0 0
        %1353 = vmatpush.bf16.msra.mxu0 0
        %1354 = vmatpush.bf16.msra.mxu0 %v1336
        %1355 = vmatpush.bf16.msra.mxu0 %v1335
        %1356 = vmatmul.bf16.gmra.mxu0 %v1346
        %v1357 = vpop.f32.mrf.mxu0
        %v1358 = vadd.f32 %v1340, %v1357
        %v1359 = vpop.f32.mrf.mxu0
        %1360 = vdwg.mxu0
        %v1361 = vmul.f32 %v1358, 0.35355338
        %v1362 = vpack.c.bf16 %v1361, %v1361
        %v1363 = vpack.c.bf16 %v1358, %v1358
        %1365 = vrot.lane.b32.xlu0 %v1363, 96
        %v1366 = vpop.permute.xlu0 %1365
        %v1368 = vsel %vm1019, %v1362, 0
        %v1371 = vsel %vm1019, %v1366, 0
        %1373 = vmatpush.bf16.xpose.msra.mxu0 0
        %1374 = vmatpush.bf16.xpose.msra.mxu0 0
        %1375 = vmatpush.bf16.xpose.msra.mxu0 0
        %1376 = vmatpush.bf16.xpose.msra.mxu0 0
        %1377 = vmatpush.bf16.xpose.msra.mxu0 0
        %1378 = vmatpush.bf16.xpose.msra.mxu0 0
        %1379 = vmatpush.bf16.xpose.msra.mxu0 0
        %1380 = vmatpush.bf16.xpose.msra.mxu0 %v1371
        %1381 = vmatmul.bf16.gmra.mxu0 %v1368
        %v1382 = vpop.f32.mrf.mxu0
        %v1383 = vadd.f32 %v943, %v1382
        %v1384 = vpop.f32.mrf.mxu0
        %1385 = vdwg.mxu0
        %v1386 = vsel %vm1019, %v1383, -inf
        %1387 = vmax.xlane.f32.xlu0 %v1386
        %v1388 = vpop.xlane.xlu0 %1387
        %v1389 = vsub.f32 %v1383, %v1388
        %v1390 = vmul.f32 %v1389, 1.442695
        %v1391 = vpow.pop %v1390
        %v1392 = vsel %vm1019, %v1391, 0.0
        %1393 = vadd.xlane.f32.xlu0 %v1392
        %v1394 = vpop.xlane.xlu0 %1393
        %v1395 = vrcp.pop %v1394
        %v1396 = vmul.f32 %v1391, %v1395
        %v1397 = vpack.c.bf16 %v1396, %v1396
        %1398 = vrot.lane.b32.xlu0 %v1363, 64
        %v1399 = vpop.permute.xlu0 %1398
        %v1401 = vsel %vm1019, %v1397, 0
        %v1404 = vsel %vm1056, %v1399, 0
        %1406 = vmatpush.bf16.msra.mxu0 0
        %1407 = vmatpush.bf16.msra.mxu0 0
        %1408 = vmatpush.bf16.msra.mxu0 0
        %1409 = vmatpush.bf16.msra.mxu0 0
        %1410 = vmatpush.bf16.msra.mxu0 0
        %1411 = vmatpush.bf16.msra.mxu0 0
        %1412 = vmatpush.bf16.msra.mxu0 0
        %1413 = vmatpush.bf16.msra.mxu0 %v1404
        %1414 = vmatmul.bf16.gmra.mxu0 %v1401
        %v1415 = vpop.f32.mrf.mxu0
        %v1416 = vadd.f32 0.0, %v1415
        %v1417 = vpop.f32.mrf.mxu0
        %1418 = vdwg.mxu0
        %1420 = vrot.lane.b32.xlu0 %v1362, 120
        %v1421 = vpop.permute.xlu0 %1420
        %1422 = vrot.lane.b32.xlu0 %v1363, 88
        %v1423 = vpop.permute.xlu0 %1422
        %v1425 = vsel %vm1019, %v1421, 0
        %v1428 = vsel %vm1019, %v1423, 0
        %1430 = vmatpush.bf16.xpose.msra.mxu0 0
        %1431 = vmatpush.bf16.xpose.msra.mxu0 0
        %1432 = vmatpush.bf16.xpose.msra.mxu0 0
        %1433 = vmatpush.bf16.xpose.msra.mxu0 0
        %1434 = vmatpush.bf16.xpose.msra.mxu0 0
        %1435 = vmatpush.bf16.xpose.msra.mxu0 0
        %1436 = vmatpush.bf16.xpose.msra.mxu0 0
        %1437 = vmatpush.bf16.xpose.msra.mxu0 %v1428
        %1438 = vmatmul.bf16.gmra.mxu0 %v1425
        %v1439 = vpop.f32.mrf.mxu0
        %v1440 = vadd.f32 %v943, %v1439
        %v1441 = vpop.f32.mrf.mxu0
        %1442 = vdwg.mxu0
        %v1443 = vsel %vm1019, %v1440, -inf
        %1444 = vmax.xlane.f32.xlu0 %v1443
        %v1445 = vpop.xlane.xlu0 %1444
        %v1446 = vsub.f32 %v1440, %v1445
        %v1447 = vmul.f32 %v1446, 1.442695
        %v1448 = vpow.pop %v1447
        %v1449 = vsel %vm1019, %v1448, 0.0
        %1450 = vadd.xlane.f32.xlu0 %v1449
        %v1451 = vpop.xlane.xlu0 %1450
        %v1452 = vrcp.pop %v1451
        %v1453 = vmul.f32 %v1448, %v1452
        %v1454 = vpack.c.bf16 %v1453, %v1453
        %1455 = vrot.lane.b32.xlu0 %v1363, 56
        %v1456 = vpop.permute.xlu0 %1455
        %v1458 = vsel %vm1019, %v1454, 0
        %v1461 = vsel %vm1056, %v1456, 0
        %1463 = vmatpush.bf16.msra.mxu0 0
        %1464 = vmatpush.bf16.msra.mxu0 0
        %1465 = vmatpush.bf16.msra.mxu0 0
        %1466 = vmatpush.bf16.msra.mxu0 0
        %1467 = vmatpush.bf16.msra.mxu0 0
        %1468 = vmatpush.bf16.msra.mxu0 0
        %1469 = vmatpush.bf16.msra.mxu0 0
        %1470 = vmatpush.bf16.msra.mxu0 %v1461
        %1471 = vmatmul.bf16.gmra.mxu0 %v1458
        %v1472 = vpop.f32.mrf.mxu0
        %v1473 = vadd.f32 0.0, %v1472
        %v1474 = vpop.f32.mrf.mxu0
        %1475 = vdwg.mxu0
        %1476 = vrot.lane.b32.xlu0 %v1362, 112
        %v1477 = vpop.permute.xlu0 %1476
        %1478 = vrot.lane.b32.xlu0 %v1363, 80
        %v1479 = vpop.permute.xlu0 %1478
        %v1481 = vsel %vm1019, %v1477, 0
        %v1484 = vsel %vm1019, %v1479, 0
        %1486 = vmatpush.bf16.xpose.msra.mxu0 0
        %1487 = vmatpush.bf16.xpose.msra.mxu0 0
        %1488 = vmatpush.bf16.xpose.msra.mxu0 0
        %1489 = vmatpush.bf16.xpose.msra.mxu0 0
        %1490 = vmatpush.bf16.xpose.msra.mxu0 0
        %1491 = vmatpush.bf16.xpose.msra.mxu0 0
        %1492 = vmatpush.bf16.xpose.msra.mxu0 0
        %1493 = vmatpush.bf16.xpose.msra.mxu0 %v1484
        %1494 = vmatmul.bf16.gmra.mxu0 %v1481
        %v1495 = vpop.f32.mrf.mxu0
        %v1496 = vadd.f32 %v943, %v1495
        %v1497 = vpop.f32.mrf.mxu0
        %1498 = vdwg.mxu0
        %v1499 = vsel %vm1019, %v1496, -inf
        %1500 = vmax.xlane.f32.xlu0 %v1499
        %v1501 = vpop.xlane.xlu0 %1500
        %v1502 = vsub.f32 %v1496, %v1501
        %v1503 = vmul.f32 %v1502, 1.442695
        %v1504 = vpow.pop %v1503
        %v1505 = vsel %vm1019, %v1504, 0.0
        %1506 = vadd.xlane.f32.xlu0 %v1505
        %v1507 = vpop.xlane.xlu0 %1506
        %v1508 = vrcp.pop %v1507
        %v1509 = vmul.f32 %v1504, %v1508
        %v1510 = vpack.c.bf16 %v1509, %v1509
        %1511 = vrot.lane.b32.xlu0 %v1363, 48
        %v1512 = vpop.permute.xlu0 %1511
        %v1514 = vsel %vm1019, %v1510, 0
        %v1517 = vsel %vm1056, %v1512, 0
        %1519 = vmatpush.bf16.msra.mxu0 0
        %1520 = vmatpush.bf16.msra.mxu0 0
        %1521 = vmatpush.bf16.msra.mxu0 0
        %1522 = vmatpush.bf16.msra.mxu0 0
        %1523 = vmatpush.bf16.msra.mxu0 0
        %1524 = vmatpush.bf16.msra.mxu0 0
        %1525 = vmatpush.bf16.msra.mxu0 0
        %1526 = vmatpush.bf16.msra.mxu0 %v1517
        %1527 = vmatmul.bf16.gmra.mxu0 %v1514
        %v1528 = vpop.f32.mrf.mxu0
        %v1529 = vadd.f32 0.0, %v1528
        %v1530 = vpop.f32.mrf.mxu0
        %1531 = vdwg.mxu0
        %1532 = vrot.lane.b32.xlu0 %v1362, 104
        %v1533 = vpop.permute.xlu0 %1532
        %1534 = vrot.lane.b32.xlu0 %v1363, 72
        %v1535 = vpop.permute.xlu0 %1534
        %v1537 = vsel %vm1019, %v1533, 0
        %v1540 = vsel %vm1019, %v1535, 0
        %1542 = vmatpush.bf16.xpose.msra.mxu0 0
        %1543 = vmatpush.bf16.xpose.msra.mxu0 0
        %1544 = vmatpush.bf16.xpose.msra.mxu0 0
        %1545 = vmatpush.bf16.xpose.msra.mxu0 0
        %1546 = vmatpush.bf16.xpose.msra.mxu0 0
        %1547 = vmatpush.bf16.xpose.msra.mxu0 0
        %1548 = vmatpush.bf16.xpose.msra.mxu0 0
        %1549 = vmatpush.bf16.xpose.msra.mxu0 %v1540
        %1550 = vmatmul.bf16.gmra.mxu0 %v1537
        %v1551 = vpop.f32.mrf.mxu0
        %v1552 = vadd.f32 %v943, %v1551
        %v1553 = vpop.f32.mrf.mxu0
        %1554 = vdwg.mxu0
        %v1555 = vsel %vm1019, %v1552, -inf
        %1556 = vmax.xlane.f32.xlu0 %v1555
        %v1557 = vpop.xlane.xlu0 %1556
        %v1558 = vsub.f32 %v1552, %v1557
        %v1559 = vmul.f32 %v1558, 1.442695
        %v1560 = vpow.pop %v1559
        %v1561 = vsel %vm1019, %v1560, 0.0
        %1562 = vadd.xlane.f32.xlu0 %v1561
        %v1563 = vpop.xlane.xlu0 %1562
        %v1564 = vrcp.pop %v1563
        %v1565 = vmul.f32 %v1560, %v1564
        %v1566 = vpack.c.bf16 %v1565, %v1565
        %1567 = vrot.lane.b32.xlu0 %v1363, 40
        %v1568 = vpop.permute.xlu0 %1567
        %v1570 = vsel %vm1019, %v1566, 0
        %v1573 = vsel %vm1056, %v1568, 0
        %1575 = vmatpush.bf16.msra.mxu0 0
        %1576 = vmatpush.bf16.msra.mxu0 0
        %1577 = vmatpush.bf16.msra.mxu0 0
        %1578 = vmatpush.bf16.msra.mxu0 0
        %1579 = vmatpush.bf16.msra.mxu0 0
        %1580 = vmatpush.bf16.msra.mxu0 0
        %1581 = vmatpush.bf16.msra.mxu0 0
        %1582 = vmatpush.bf16.msra.mxu0 %v1573
        %1583 = vmatmul.bf16.gmra.mxu0 %v1570
        %v1584 = vpop.f32.mrf.mxu0
        %v1585 = vadd.f32 0.0, %v1584
        %v1586 = vpop.f32.mrf.mxu0
        %1587 = vdwg.mxu0
        %1589 = vrot.lane.b32.xlu0 %v1473, 8
        %v1590 = vpop.permute.xlu0 %1589
        %1593 = vrot.lane.b32.xlu0 %v1529, 16
        %v1594 = vpop.permute.xlu0 %1593
        %1597 = vrot.lane.b32.xlu0 %v1585, 24
        %v1598 = vpop.permute.xlu0 %1597
        %v1600 = vsel %vm1019, %v1416, %v1590
        %v1601 = vsel %vm1255, %v1600, %v1594
        %v1602 = vsel %vm1257, %v1601, %v1598
        %v1603 = vpack.c.bf16 %v1602, %v1602
        %s1604 = scalar_lea.vmem %s10, 32
        %v1605 = vld [vmem:[%s1604] sm:$0xff]
        %v1606 = vld [vmem:[%s1604 + $0x8] sm:$0xff]
        %v1607 = vld [vmem:[%s1604 + $0x10] sm:$0xff]
        %v1608 = vld [vmem:[%s1604 + $0x18] sm:$0xff]
        %v1609 = vpack.c.bf16 %v1606, %v1605
        %v1610 = vpack.c.bf16 %v1608, %v1607
        %s1611 = scalar_lea.vmem %s11, 1
        %v1612 = vld [vmem:[%s1611] sm:$0x1]
        %v1614 = vperm.slane %v1612, 0
        %v1617 = vsel %vm952, %v1603, 0
        %1619 = vmatpush.bf16.msra.mxu0 0
        %1620 = vmatpush.bf16.msra.mxu0 0
        %1621 = vmatpush.bf16.msra.mxu0 0
        %1622 = vmatpush.bf16.msra.mxu0 0
        %1623 = vmatpush.bf16.msra.mxu0 0
        %1624 = vmatpush.bf16.msra.mxu0 0
        %1625 = vmatpush.bf16.msra.mxu0 %v1610
        %1626 = vmatpush.bf16.msra.mxu0 %v1609
        %1627 = vmatmul.bf16.gmra.mxu0 %v1617
        %v1628 = vpop.f32.mrf.mxu0
        %v1629 = vadd.f32 %v1614, %v1628
        %v1630 = vpop.f32.mrf.mxu0
        %1631 = vdwg.mxu0
        %1633 = vrot.lane.b32.xlu0 %v1629, 32
        %v1634 = vpop.permute.xlu0 %1633
        %v1636 = vadd.f32 %v944, %v1634
        %v1637 = vpack.c.bf16 %v1286, %v1286
        %v1638 = vld [vmem:[%s12] sm:$0xff]
        %v1639 = vld [vmem:[%s12 + $0x8] sm:$0xff]
        %v1640 = vld [vmem:[%s12 + $0x10] sm:$0xff]
        %v1641 = vld [vmem:[%s12 + $0x18] sm:$0xff]
        %v1642 = vpack.c.bf16 %v1639, %v1638
        %v1643 = vpack.c.bf16 %v1641, %v1640
        %v1644 = vld [vmem:[%s13] sm:$0x1]
        %v1646 = vperm.slane %v1644, 0
        %v1649 = vsel %vm952, %v1637, 0
        %1651 = vmatpush.bf16.msra.mxu0 0
        %1652 = vmatpush.bf16.msra.mxu0 0
        %1653 = vmatpush.bf16.msra.mxu0 0
        %1654 = vmatpush.bf16.msra.mxu0 0
        %1655 = vmatpush.bf16.msra.mxu0 0
        %1656 = vmatpush.bf16.msra.mxu0 0
        %1657 = vmatpush.bf16.msra.mxu0 %v1643
        %1658 = vmatpush.bf16.msra.mxu0 %v1642
        %1659 = vmatmul.bf16.gmra.mxu0 %v1649
        %v1660 = vpop.f32.mrf.mxu0
        %v1661 = vadd.f32 %v1646, %v1660
        %v1662 = vpop.f32.mrf.mxu0
        %1663 = vdwg.mxu0
        %v1664 = vsel %vm1255, %v1661, 0.0
        %1665 = vadd.xlane.f32.xlu0 %v1664
        %v1666 = vpop.xlane.xlu0 %1665
        %v1667 = vrcp.pop 16.0
        %v1668 = vmul.f32 16.0, %v1667
        %v1669 = vsub.f32 1.0, %v1668
        %v1670 = vmul.f32 %v1667, %v1669
        %v1671 = vadd.f32 %v1667, %v1670
        %vm1672 = vweird.f32 %v1667
        %v1673 = vsel %vm1672, %v1667, %v1671
        %v1674 = vmul.f32 %v1666, %v1673
        %v1675 = vsub.f32 %v1661, %v1674
        %v1676 = vmul.f32 %v1675, %v1675
        %v1677 = vsel %vm1255, %v1676, 0.0
        %1678 = vadd.xlane.f32.xlu0 %v1677
        %v1679 = vpop.xlane.xlu0 %1678
        %v1680 = vmul.f32 %v1679, %v1673
        %v1681 = vadd.f32 %v1680, 1e-05
        %v1682 = vrsqrt.pop %v1681
        %v1683 = vmul.f32 %v1682, %v1681
        %v1684 = vmul.f32 %v1683, %v1682
        %v1685 = vmul.f32 0.5, %v1684
        %v1686 = vsub.f32 1.5, %v1685
        %v1687 = vmul.f32 %v1682, %v1686
        %vm1688 = vweird.f32 %v1681
        %vm1689 = vweird.f32 %v1682
        %vm1690 = vmor %vm1688, %vm1689
        %v1691 = vsel %vm1690, %v1682, %v1687
        %v1692 = vmul.f32 %v1675, %v1691
        %v1693 = vperm.slane %v947, 0
        %v1694 = vmul.f32 %v1692, %v1693
        %v1695 = vperm.slane %v948, 0
        %v1696 = vadd.f32 %v1694, %v1695
        %v1697 = vpack.c.bf16 %v1636, %v1636
        %s1698 = scalar_lea.vmem %s12, 32
        %v1699 = vld [vmem:[%s1698] sm:$0xff]
        %v1700 = vld [vmem:[%s1698 + $0x8] sm:$0xff]
        %v1701 = vld [vmem:[%s1698 + $0x10] sm:$0xff]
        %v1702 = vld [vmem:[%s1698 + $0x18] sm:$0xff]
        %v1703 = vpack.c.bf16 %v1700, %v1699
        %v1704 = vpack.c.bf16 %v1702, %v1701
        %s1705 = scalar_lea.vmem %s13, 1
        %v1706 = vld [vmem:[%s1705] sm:$0x1]
        %v1708 = vperm.slane %v1706, 0
        %1711 = vrot.lane.b32.xlu0 %v1697, 96
        %v1712 = vpop.permute.xlu0 %1711
        %v1714 = vsel %vm952, %v1712, 0
        %1716 = vmatpush.bf16.msra.mxu0 0
        %1717 = vmatpush.bf16.msra.mxu0 0
        %1718 = vmatpush.bf16.msra.mxu0 0
        %1719 = vmatpush.bf16.msra.mxu0 0
        %1720 = vmatpush.bf16.msra.mxu0 0
        %1721 = vmatpush.bf16.msra.mxu0 0
        %1722 = vmatpush.bf16.msra.mxu0 %v1704
        %1723 = vmatpush.bf16.msra.mxu0 %v1703
        %1724 = vmatmul.bf16.gmra.mxu0 %v1714
        %v1725 = vpop.f32.mrf.mxu0
        %v1726 = vadd.f32 %v1708, %v1725
        %v1727 = vpop.f32.mrf.mxu0
        %1728 = vdwg.mxu0
        %v1729 = vsel %vm1255, %v1726, 0.0
        %1730 = vadd.xlane.f32.xlu0 %v1729
        %v1731 = vpop.xlane.xlu0 %1730
        %v1732 = vmul.f32 %v1731, %v1673
        %v1733 = vsub.f32 %v1726, %v1732
        %v1734 = vmul.f32 %v1733, %v1733
        %v1735 = vsel %vm1255, %v1734, 0.0
        %1736 = vadd.xlane.f32.xlu0 %v1735
        %v1737 = vpop.xlane.xlu0 %1736
        %v1738 = vmul.f32 %v1737, %v1673
        %v1739 = vadd.f32 %v1738, 1e-05
        %v1740 = vrsqrt.pop %v1739
        %v1741 = vmul.f32 %v1740, %v1739
        %v1742 = vmul.f32 %v1741, %v1740
        %v1743 = vmul.f32 0.5, %v1742
        %v1744 = vsub.f32 1.5, %v1743
        %v1745 = vmul.f32 %v1740, %v1744
        %vm1746 = vweird.f32 %v1739
        %vm1747 = vweird.f32 %v1740
        %vm1748 = vmor %vm1746, %vm1747
        %v1749 = vsel %vm1748, %v1740, %v1745
        %v1750 = vmul.f32 %v1733, %v1749
        %v1751 = vperm.slane %v947, 1
        %v1752 = vmul.f32 %v1750, %v1751
        %v1753 = vperm.slane %v948, 1
        %v1754 = vadd.f32 %v1752, %v1753
        %v1755 = vpack.c.bf16 %v1696, %v1696
        %v1756 = vpack.c.bf16 %v1754, %v1754
        %v1757 = vld [vmem:[%s14] sm:$0xff]
        %v1758 = vld [vmem:[%s14 + $0x8] sm:$0xff]
        %v1759 = vld [vmem:[%s15] sm:$0x1]
        %v1760 = vpack.c.bf16 %v1758, %v1757
        %v1762 = vperm.slane %v1759, 0
        %v1765 = vsel %vm1255, %v1755, 0
        %1767 = vmatpush.bf16.msra.mxu0 0
        %1768 = vmatpush.bf16.msra.mxu0 0
        %1769 = vmatpush.bf16.msra.mxu0 0
        %1770 = vmatpush.bf16.msra.mxu0 0
        %1771 = vmatpush.bf16.msra.mxu0 0
        %1772 = vmatpush.bf16.msra.mxu0 0
        %1773 = vmatpush.bf16.msra.mxu0 0
        %1774 = vmatpush.bf16.msra.mxu0 %v1760
        %1775 = vmatmul.bf16.gmra.mxu0 %v1765
        %v1776 = vpop.f32.mrf.mxu0
        %v1777 = vadd.f32 %v1762, %v1776
        %v1778 = vpop.f32.mrf.mxu0
        %1779 = vdwg.mxu0
        %1781 = vrot.lane.b32.xlu0 %v1760, 112
        %v1782 = vpop.permute.xlu0 %1781
        %1784 = vrot.lane.b32.xlu0 %v1762, 112
        %v1785 = vpop.permute.xlu0 %1784
        %v1788 = vsel %vm1255, %v1756, 0
        %1790 = vmatpush.bf16.msra.mxu0 0
        %1791 = vmatpush.bf16.msra.mxu0 0
        %1792 = vmatpush.bf16.msra.mxu0 0
        %1793 = vmatpush.bf16.msra.mxu0 0
        %1794 = vmatpush.bf16.msra.mxu0 0
        %1795 = vmatpush.bf16.msra.mxu0 0
        %1796 = vmatpush.bf16.msra.mxu0 0
        %1797 = vmatpush.bf16.msra.mxu0 %v1782
        %1798 = vmatmul.bf16.gmra.mxu0 %v1788
        %v1799 = vpop.f32.mrf.mxu0
        %v1800 = vadd.f32 %v1785, %v1799
        %v1801 = vpop.f32.mrf.mxu0
        %1802 = vdwg.mxu0
        %v1803 = vmul.f32 %v1777, 0.5
        %v1804 = vpack.c.bf16 %v1803, %v1803
        %v1805 = vpack.c.bf16 %v1800, %v1800
        %vm1806 = vcmask 31744
        %v1808 = vsel %vm1806, %v1804, 0
        %v1811 = vsel %vm1806, %v1805, 0
        %1813 = vmatpush.bf16.xpose.msra.mxu0 0
        %1814 = vmatpush.bf16.xpose.msra.mxu0 0
        %1815 = vmatpush.bf16.xpose.msra.mxu0 0
        %1816 = vmatpush.bf16.xpose.msra.mxu0 0
        %1817 = vmatpush.bf16.xpose.msra.mxu0 0
        %1818 = vmatpush.bf16.xpose.msra.mxu0 0
        %1819 = vmatpush.bf16.xpose.msra.mxu0 0
        %1820 = vmatpush.bf16.xpose.msra.mxu0 %v1811
        %1821 = vmatmul.bf16.gmra.mxu0 %v1808
        %v1822 = vpop.f32.mrf.mxu0
        %v1823 = vadd.f32 %v943, %v1822
        %v1824 = vpop.f32.mrf.mxu0
        %1825 = vdwg.mxu0
        %v1826 = vsel %vm1019, %v1823, -inf
        %1827 = vmax.xlane.f32.xlu0 %v1826
        %v1828 = vpop.xlane.xlu0 %1827
        %v1829 = vsub.f32 %v1823, %v1828
        %v1830 = vmul.f32 %v1829, 1.442695
        %v1831 = vpow.pop %v1830
        %v1832 = vsel %vm1019, %v1831, 0.0
        %1833 = vadd.xlane.f32.xlu0 %v1832
        %v1834 = vpop.xlane.xlu0 %1833
        %v1835 = vrcp.pop %v1834
        %v1836 = vmul.f32 %v1831, %v1835
        %v1837 = vpack.c.bf16 %v1836, %v1836
        %1839 = vrot.lane.b32.xlu0 %v1805, 112
        %v1840 = vpop.permute.xlu0 %1839
        %v1842 = vsel %vm1019, %v1837, 0
        %v1845 = vsel %vm1056, %v1840, 0
        %1847 = vmatpush.bf16.msra.mxu0 0
        %1848 = vmatpush.bf16.msra.mxu0 0
        %1849 = vmatpush.bf16.msra.mxu0 0
        %1850 = vmatpush.bf16.msra.mxu0 0
        %1851 = vmatpush.bf16.msra.mxu0 0
        %1852 = vmatpush.bf16.msra.mxu0 0
        %1853 = vmatpush.bf16.msra.mxu0 0
        %1854 = vmatpush.bf16.msra.mxu0 %v1845
        %1855 = vmatmul.bf16.gmra.mxu0 %v1842
        %v1856 = vpop.f32.mrf.mxu0
        %v1857 = vadd.f32 0.0, %v1856
        %v1858 = vpop.f32.mrf.mxu0
        %1859 = vdwg.mxu0
        %1861 = vrot.lane.b32.xlu0 %v1804, 124
        %v1862 = vpop.permute.xlu0 %1861
        %1863 = vrot.lane.b32.xlu0 %v1805, 124
        %v1864 = vpop.permute.xlu0 %1863
        %v1866 = vsel %vm1806, %v1862, 0
        %v1869 = vsel %vm1806, %v1864, 0
        %1871 = vmatpush.bf16.xpose.msra.mxu0 0
        %1872 = vmatpush.bf16.xpose.msra.mxu0 0
        %1873 = vmatpush.bf16.xpose.msra.mxu0 0
        %1874 = vmatpush.bf16.xpose.msra.mxu0 0
        %1875 = vmatpush.bf16.xpose.msra.mxu0 0
        %1876 = vmatpush.bf16.xpose.msra.mxu0 0
        %1877 = vmatpush.bf16.xpose.msra.mxu0 0
        %1878 = vmatpush.bf16.xpose.msra.mxu0 %v1869
        %1879 = vmatmul.bf16.gmra.mxu0 %v1866
        %v1880 = vpop.f32.mrf.mxu0
        %v1881 = vadd.f32 %v943, %v1880
        %v1882 = vpop.f32.mrf.mxu0
        %1883 = vdwg.mxu0
        %v1884 = vsel %vm1019, %v1881, -inf
        %1885 = vmax.xlane.f32.xlu0 %v1884
        %v1886 = vpop.xlane.xlu0 %1885
        %v1887 = vsub.f32 %v1881, %v1886
        %v1888 = vmul.f32 %v1887, 1.442695
        %v1889 = vpow.pop %v1888
        %v1890 = vsel %vm1019, %v1889, 0.0
        %1891 = vadd.xlane.f32.xlu0 %v1890
        %v1892 = vpop.xlane.xlu0 %1891
        %v1893 = vrcp.pop %v1892
        %v1894 = vmul.f32 %v1889, %v1893
        %v1895 = vpack.c.bf16 %v1894, %v1894
        %1896 = vrot.lane.b32.xlu0 %v1805, 108
        %v1897 = vpop.permute.xlu0 %1896
        %v1899 = vsel %vm1019, %v1895, 0
        %v1902 = vsel %vm1056, %v1897, 0
        %1904 = vmatpush.bf16.msra.mxu0 0
        %1905 = vmatpush.bf16.msra.mxu0 0
        %1906 = vmatpush.bf16.msra.mxu0 0
        %1907 = vmatpush.bf16.msra.mxu0 0
        %1908 = vmatpush.bf16.msra.mxu0 0
        %1909 = vmatpush.bf16.msra.mxu0 0
        %1910 = vmatpush.bf16.msra.mxu0 0
        %1911 = vmatpush.bf16.msra.mxu0 %v1902
        %1912 = vmatmul.bf16.gmra.mxu0 %v1899
        %v1913 = vpop.f32.mrf.mxu0
        %v1914 = vadd.f32 0.0, %v1913
        %v1915 = vpop.f32.mrf.mxu0
        %1916 = vdwg.mxu0
        %1917 = vrot.lane.b32.xlu0 %v1804, 120
        %v1918 = vpop.permute.xlu0 %1917
        %1919 = vrot.lane.b32.xlu0 %v1805, 120
        %v1920 = vpop.permute.xlu0 %1919
        %v1922 = vsel %vm1806, %v1918, 0
        %v1925 = vsel %vm1806, %v1920, 0
        %1927 = vmatpush.bf16.xpose.msra.mxu0 0
        %1928 = vmatpush.bf16.xpose.msra.mxu0 0
        %1929 = vmatpush.bf16.xpose.msra.mxu0 0
        %1930 = vmatpush.bf16.xpose.msra.mxu0 0
        %1931 = vmatpush.bf16.xpose.msra.mxu0 0
        %1932 = vmatpush.bf16.xpose.msra.mxu0 0
        %1933 = vmatpush.bf16.xpose.msra.mxu0 0
        %1934 = vmatpush.bf16.xpose.msra.mxu0 %v1925
        %1935 = vmatmul.bf16.gmra.mxu0 %v1922
        %v1936 = vpop.f32.mrf.mxu0
        %v1937 = vadd.f32 %v943, %v1936
        %v1938 = vpop.f32.mrf.mxu0
        %1939 = vdwg.mxu0
        %v1940 = vsel %vm1019, %v1937, -inf
        %1941 = vmax.xlane.f32.xlu0 %v1940
        %v1942 = vpop.xlane.xlu0 %1941
        %v1943 = vsub.f32 %v1937, %v1942
        %v1944 = vmul.f32 %v1943, 1.442695
        %v1945 = vpow.pop %v1944
        %v1946 = vsel %vm1019, %v1945, 0.0
        %1947 = vadd.xlane.f32.xlu0 %v1946
        %v1948 = vpop.xlane.xlu0 %1947
        %v1949 = vrcp.pop %v1948
        %v1950 = vmul.f32 %v1945, %v1949
        %v1951 = vpack.c.bf16 %v1950, %v1950
        %1952 = vrot.lane.b32.xlu0 %v1805, 104
        %v1953 = vpop.permute.xlu0 %1952
        %v1955 = vsel %vm1019, %v1951, 0
        %v1958 = vsel %vm1056, %v1953, 0
        %1960 = vmatpush.bf16.msra.mxu0 0
        %1961 = vmatpush.bf16.msra.mxu0 0
        %1962 = vmatpush.bf16.msra.mxu0 0
        %1963 = vmatpush.bf16.msra.mxu0 0
        %1964 = vmatpush.bf16.msra.mxu0 0
        %1965 = vmatpush.bf16.msra.mxu0 0
        %1966 = vmatpush.bf16.msra.mxu0 0
        %1967 = vmatpush.bf16.msra.mxu0 %v1958
        %1968 = vmatmul.bf16.gmra.mxu0 %v1955
        %v1969 = vpop.f32.mrf.mxu0
        %v1970 = vadd.f32 0.0, %v1969
        %v1971 = vpop.f32.mrf.mxu0
        %1972 = vdwg.mxu0
        %1973 = vrot.lane.b32.xlu0 %v1804, 116
        %v1974 = vpop.permute.xlu0 %1973
        %1975 = vrot.lane.b32.xlu0 %v1805, 116
        %v1976 = vpop.permute.xlu0 %1975
        %v1978 = vsel %vm1806, %v1974, 0
        %v1981 = vsel %vm1806, %v1976, 0
        %1983 = vmatpush.bf16.xpose.msra.mxu0 0
        %1984 = vmatpush.bf16.xpose.msra.mxu0 0
        %1985 = vmatpush.bf16.xpose.msra.mxu0 0
        %1986 = vmatpush.bf16.xpose.msra.mxu0 0
        %1987 = vmatpush.bf16.xpose.msra.mxu0 0
        %1988 = vmatpush.bf16.xpose.msra.mxu0 0
        %1989 = vmatpush.bf16.xpose.msra.mxu0 0
        %1990 = vmatpush.bf16.xpose.msra.mxu0 %v1981
        %1991 = vmatmul.bf16.gmra.mxu0 %v1978
        %v1992 = vpop.f32.mrf.mxu0
        %v1993 = vadd.f32 %v943, %v1992
        %v1994 = vpop.f32.mrf.mxu0
        %1995 = vdwg.mxu0
        %v1996 = vsel %vm1019, %v1993, -inf
        %1997 = vmax.xlane.f32.xlu0 %v1996
        %v1998 = vpop.xlane.xlu0 %1997
        %v1999 = vsub.f32 %v1993, %v1998
        %v2000 = vmul.f32 %v1999, 1.442695
        %v2001 = vpow.pop %v2000
        %v2002 = vsel %vm1019, %v2001, 0.0
        %2003 = vadd.xlane.f32.xlu0 %v2002
        %v2004 = vpop.xlane.xlu0 %2003
        %v2005 = vrcp.pop %v2004
        %v2006 = vmul.f32 %v2001, %v2005
        %v2007 = vpack.c.bf16 %v2006, %v2006
        %2008 = vrot.lane.b32.xlu0 %v1805, 100
        %v2009 = vpop.permute.xlu0 %2008
        %v2011 = vsel %vm1019, %v2007, 0
        %v2014 = vsel %vm1056, %v2009, 0
        %2016 = vmatpush.bf16.msra.mxu0 0
        %2017 = vmatpush.bf16.msra.mxu0 0
        %2018 = vmatpush.bf16.msra.mxu0 0
        %2019 = vmatpush.bf16.msra.mxu0 0
        %2020 = vmatpush.bf16.msra.mxu0 0
        %2021 = vmatpush.bf16.msra.mxu0 0
        %2022 = vmatpush.bf16.msra.mxu0 0
        %2023 = vmatpush.bf16.msra.mxu0 %v2014
        %2024 = vmatmul.bf16.gmra.mxu0 %v2011
        %v2025 = vpop.f32.mrf.mxu0
        %v2026 = vadd.f32 0.0, %v2025
        %v2027 = vpop.f32.mrf.mxu0
        %2028 = vdwg.mxu0
        %2030 = vrot.lane.b32.xlu0 %v1914, 4
        %v2031 = vpop.permute.xlu0 %2030
        %2034 = vrot.lane.b32.xlu0 %v1970, 8
        %v2035 = vpop.permute.xlu0 %2034
        %2038 = vrot.lane.b32.xlu0 %v2026, 12
        %v2039 = vpop.permute.xlu0 %2038
        %v2041 = vsel %vm1806, %v1857, %v2031
        %v2042 = vsel %vm1019, %v2041, %v2035
        %vm2043 = vcmask 97280
        %v2044 = vsel %vm2043, %v2042, %v2039
        %v2045 = vpack.c.bf16 %v2044, %v2044
        %v2046 = vld [vmem:[#allocation2] sm:$0xff]
        %v2047 = vld [vmem:[#allocation2 + $0x8] sm:$0xff]
        %v2048 = vpack.c.bf16 %v2047, %v2046
        %v2049 = vld [vmem:[%s17] sm:$0x1]
        %v2051 = vperm.slane %v2049, 0
        %v2054 = vsel %vm1255, %v2045, 0
        %2056 = vmatpush.bf16.msra.mxu0 0
        %2057 = vmatpush.bf16.msra.mxu0 0
        %2058 = vmatpush.bf16.msra.mxu0 0
        %2059 = vmatpush.bf16.msra.mxu0 0
        %2060 = vmatpush.bf16.msra.mxu0 0
        %2061 = vmatpush.bf16.msra.mxu0 0
        %2062 = vmatpush.bf16.msra.mxu0 0
        %2063 = vmatpush.bf16.msra.mxu0 %v2048
        %2064 = vmatmul.bf16.gmra.mxu0 %v2054
        %v2065 = vpop.f32.mrf.mxu0
        %v2066 = vadd.f32 %v2051, %v2065
        %v2067 = vpop.f32.mrf.mxu0
        %2068 = vdwg.mxu0
        %v2069 = vmul.f32 %v2066, %v2066
        %v2070 = vmul.f32 %v2066, %v2069
        %v2071 = vmul.f32 %v2070, 0.044715
        %v2072 = vadd.f32 %v2066, %v2071
        %v2073 = vmul.f32 %v2072, 0.7978846
        %v2074 = vtanh.pop %v2073
        %v2075 = vadd.f32 %v2074, 1.0
        %v2076 = vmul.f32 %v2075, 0.5
        %v2077 = vmul.f32 %v2066, %v2076
        %v2078 = vpack.c.bf16 %v2077, %v2077
        %v2079 = vld [vmem:[#allocation4] sm:$0xff]
        %v2080 = vld [vmem:[#allocation4 + $0x8] sm:$0xff]
        %v2081 = vpack.c.bf16 %v2080, %v2079
        %v2082 = vld [vmem:[%s19] sm:$0x1]
        %v2084 = vperm.slane %v2082, 0
        %v2087 = vsel %vm1255, %v2078, 0
        %2089 = vmatpush.bf16.msra.mxu0 0
        %2090 = vmatpush.bf16.msra.mxu0 0
        %2091 = vmatpush.bf16.msra.mxu0 0
        %2092 = vmatpush.bf16.msra.mxu0 0
        %2093 = vmatpush.bf16.msra.mxu0 0
        %2094 = vmatpush.bf16.msra.mxu0 0
        %2095 = vmatpush.bf16.msra.mxu0 0
        %2096 = vmatpush.bf16.msra.mxu0 %v2081
        %2097 = vmatmul.bf16.gmra.mxu0 %v2087
        %v2098 = vpop.f32.mrf.mxu0
        %v2099 = vadd.f32 %v2084, %v2098
        %v2100 = vpop.f32.mrf.mxu0
        %2101 = vdwg.mxu0
        %v2102 = vadd.f32 %v1286, %v2099
        %v2104 = vperm.slane %v951, 0
        %v2106 = vadd.f32 %v2102, %v2104
        %s2107 = scalar_lea.vmem %s14, 16
        %v2108 = vld [vmem:[%s2107] sm:$0xff]
        %v2109 = vld [vmem:[%s2107 + $0x8] sm:$0xff]
        %s2110 = scalar_lea.vmem %s15, 1
        %v2111 = vld [vmem:[%s2110] sm:$0x1]
        %v2112 = vpack.c.bf16 %v2109, %v2108
        %v2114 = vperm.slane %v2111, 0
        %2116 = vmatpush.bf16.msra.mxu0 0
        %2117 = vmatpush.bf16.msra.mxu0 0
        %2118 = vmatpush.bf16.msra.mxu0 0
        %2119 = vmatpush.bf16.msra.mxu0 0
        %2120 = vmatpush.bf16.msra.mxu0 0
        %2121 = vmatpush.bf16.msra.mxu0 0
        %2122 = vmatpush.bf16.msra.mxu0 0
        %2123 = vmatpush.bf16.msra.mxu0 %v2112
        %2124 = vmatmul.bf16.gmra.mxu0 %v1788
        %v2125 = vpop.f32.mrf.mxu0
        %v2126 = vadd.f32 %v2114, %v2125
        %v2127 = vpop.f32.mrf.mxu0
        %2128 = vdwg.mxu0
        %2130 = vrot.lane.b32.xlu0 %v2112, 112
        %v2131 = vpop.permute.xlu0 %2130
        %2133 = vrot.lane.b32.xlu0 %v2114, 112
        %v2134 = vpop.permute.xlu0 %2133
        %2136 = vmatpush.bf16.msra.mxu0 0
        %2137 = vmatpush.bf16.msra.mxu0 0
        %2138 = vmatpush.bf16.msra.mxu0 0
        %2139 = vmatpush.bf16.msra.mxu0 0
        %2140 = vmatpush.bf16.msra.mxu0 0
        %2141 = vmatpush.bf16.msra.mxu0 0
        %2142 = vmatpush.bf16.msra.mxu0 0
        %2143 = vmatpush.bf16.msra.mxu0 %v2131
        %2144 = vmatmul.bf16.gmra.mxu0 %v1765
        %v2145 = vpop.f32.mrf.mxu0
        %v2146 = vadd.f32 %v2134, %v2145
        %v2147 = vpop.f32.mrf.mxu0
        %2148 = vdwg.mxu0
        %v2149 = vmul.f32 %v2126, 0.5
        %v2150 = vpack.c.bf16 %v2149, %v2149
        %v2151 = vpack.c.bf16 %v2146, %v2146
        %v2153 = vsel %vm1806, %v2150, 0
        %v2156 = vsel %vm1806, %v2151, 0
        %2158 = vmatpush.bf16.xpose.msra.mxu0 0
        %2159 = vmatpush.bf16.xpose.msra.mxu0 0
        %2160 = vmatpush.bf16.xpose.msra.mxu0 0
        %2161 = vmatpush.bf16.xpose.msra.mxu0 0
        %2162 = vmatpush.bf16.xpose.msra.mxu0 0
        %2163 = vmatpush.bf16.xpose.msra.mxu0 0
        %2164 = vmatpush.bf16.xpose.msra.mxu0 0
        %2165 = vmatpush.bf16.xpose.msra.mxu0 %v2156
        %2166 = vmatmul.bf16.gmra.mxu0 %v2153
        %v2167 = vpop.f32.mrf.mxu0
        %v2168 = vadd.f32 %v943, %v2167
        %v2169 = vpop.f32.mrf.mxu0
        %2170 = vdwg.mxu0
        %v2171 = vsel %vm1019, %v2168, -inf
        %2172 = vmax.xlane.f32.xlu0 %v2171
        %v2173 = vpop.xlane.xlu0 %2172
        %v2174 = vsub.f32 %v2168, %v2173
        %v2175 = vmul.f32 %v2174, 1.442695
        %v2176 = vpow.pop %v2175
        %v2177 = vsel %vm1019, %v2176, 0.0
        %2178 = vadd.xlane.f32.xlu0 %v2177
        %v2179 = vpop.xlane.xlu0 %2178
        %v2180 = vrcp.pop %v2179
        %v2181 = vmul.f32 %v2176, %v2180
        %v2182 = vpack.c.bf16 %v2181, %v2181
        %2184 = vrot.lane.b32.xlu0 %v2151, 112
        %v2185 = vpop.permute.xlu0 %2184
        %v2187 = vsel %vm1019, %v2182, 0
        %v2190 = vsel %vm1056, %v2185, 0
        %2192 = vmatpush.bf16.msra.mxu0 0
        %2193 = vmatpush.bf16.msra.mxu0 0
        %2194 = vmatpush.bf16.msra.mxu0 0
        %2195 = vmatpush.bf16.msra.mxu0 0
        %2196 = vmatpush.bf16.msra.mxu0 0
        %2197 = vmatpush.bf16.msra.mxu0 0
        %2198 = vmatpush.bf16.msra.mxu0 0
        %2199 = vmatpush.bf16.msra.mxu0 %v2190
        %2200 = vmatmul.bf16.gmra.mxu0 %v2187
        %v2201 = vpop.f32.mrf.mxu0
        %v2202 = vadd.f32 0.0, %v2201
        %v2203 = vpop.f32.mrf.mxu0
        %2204 = vdwg.mxu0
        %2206 = vrot.lane.b32.xlu0 %v2150, 124
        %v2207 = vpop.permute.xlu0 %2206
        %2208 = vrot.lane.b32.xlu0 %v2151, 124
        %v2209 = vpop.permute.xlu0 %2208
        %v2211 = vsel %vm1806, %v2207, 0
        %v2214 = vsel %vm1806, %v2209, 0
        %2216 = vmatpush.bf16.xpose.msra.mxu0 0
        %2217 = vmatpush.bf16.xpose.msra.mxu0 0
        %2218 = vmatpush.bf16.xpose.msra.mxu0 0
        %2219 = vmatpush.bf16.xpose.msra.mxu0 0
        %2220 = vmatpush.bf16.xpose.msra.mxu0 0
        %2221 = vmatpush.bf16.xpose.msra.mxu0 0
        %2222 = vmatpush.bf16.xpose.msra.mxu0 0
        %2223 = vmatpush.bf16.xpose.msra.mxu0 %v2214
        %2224 = vmatmul.bf16.gmra.mxu0 %v2211
        %v2225 = vpop.f32.mrf.mxu0
        %v2226 = vadd.f32 %v943, %v2225
        %v2227 = vpop.f32.mrf.mxu0
        %2228 = vdwg.mxu0
        %v2229 = vsel %vm1019, %v2226, -inf
        %2230 = vmax.xlane.f32.xlu0 %v2229
        %v2231 = vpop.xlane.xlu0 %2230
        %v2232 = vsub.f32 %v2226, %v2231
        %v2233 = vmul.f32 %v2232, 1.442695
        %v2234 = vpow.pop %v2233
        %v2235 = vsel %vm1019, %v2234, 0.0
        %2236 = vadd.xlane.f32.xlu0 %v2235
        %v2237 = vpop.xlane.xlu0 %2236
        %v2238 = vrcp.pop %v2237
        %v2239 = vmul.f32 %v2234, %v2238
        %v2240 = vpack.c.bf16 %v2239, %v2239
        %2241 = vrot.lane.b32.xlu0 %v2151, 108
        %v2242 = vpop.permute.xlu0 %2241
        %v2244 = vsel %vm1019, %v2240, 0
        %v2247 = vsel %vm1056, %v2242, 0
        %2249 = vmatpush.bf16.msra.mxu0 0
        %2250 = vmatpush.bf16.msra.mxu0 0
        %2251 = vmatpush.bf16.msra.mxu0 0
        %2252 = vmatpush.bf16.msra.mxu0 0
        %2253 = vmatpush.bf16.msra.mxu0 0
        %2254 = vmatpush.bf16.msra.mxu0 0
        %2255 = vmatpush.bf16.msra.mxu0 0
        %2256 = vmatpush.bf16.msra.mxu0 %v2247
        %2257 = vmatmul.bf16.gmra.mxu0 %v2244
        %v2258 = vpop.f32.mrf.mxu0
        %v2259 = vadd.f32 0.0, %v2258
        %v2260 = vpop.f32.mrf.mxu0
        %2261 = vdwg.mxu0
        %2262 = vrot.lane.b32.xlu0 %v2150, 120
        %v2263 = vpop.permute.xlu0 %2262
        %2264 = vrot.lane.b32.xlu0 %v2151, 120
        %v2265 = vpop.permute.xlu0 %2264
        %v2267 = vsel %vm1806, %v2263, 0
        %v2270 = vsel %vm1806, %v2265, 0
        %2272 = vmatpush.bf16.xpose.msra.mxu0 0
        %2273 = vmatpush.bf16.xpose.msra.mxu0 0
        %2274 = vmatpush.bf16.xpose.msra.mxu0 0
        %2275 = vmatpush.bf16.xpose.msra.mxu0 0
        %2276 = vmatpush.bf16.xpose.msra.mxu0 0
        %2277 = vmatpush.bf16.xpose.msra.mxu0 0
        %2278 = vmatpush.bf16.xpose.msra.mxu0 0
        %2279 = vmatpush.bf16.xpose.msra.mxu0 %v2270
        %2280 = vmatmul.bf16.gmra.mxu0 %v2267
        %v2281 = vpop.f32.mrf.mxu0
        %v2282 = vadd.f32 %v943, %v2281
        %v2283 = vpop.f32.mrf.mxu0
        %2284 = vdwg.mxu0
        %v2285 = vsel %vm1019, %v2282, -inf
        %2286 = vmax.xlane.f32.xlu0 %v2285
        %v2287 = vpop.xlane.xlu0 %2286
        %v2288 = vsub.f32 %v2282, %v2287
        %v2289 = vmul.f32 %v2288, 1.442695
        %v2290 = vpow.pop %v2289
        %v2291 = vsel %vm1019, %v2290, 0.0
        %2292 = vadd.xlane.f32.xlu0 %v2291
        %v2293 = vpop.xlane.xlu0 %2292
        %v2294 = vrcp.pop %v2293
        %v2295 = vmul.f32 %v2290, %v2294
        %v2296 = vpack.c.bf16 %v2295, %v2295
        %2297 = vrot.lane.b32.xlu0 %v2151, 104
        %v2298 = vpop.permute.xlu0 %2297
        %v2300 = vsel %vm1019, %v2296, 0
        %v2303 = vsel %vm1056, %v2298, 0
        %2305 = vmatpush.bf16.msra.mxu0 0
        %2306 = vmatpush.bf16.msra.mxu0 0
        %2307 = vmatpush.bf16.msra.mxu0 0
        %2308 = vmatpush.bf16.msra.mxu0 0
        %2309 = vmatpush.bf16.msra.mxu0 0
        %2310 = vmatpush.bf16.msra.mxu0 0
        %2311 = vmatpush.bf16.msra.mxu0 0
        %2312 = vmatpush.bf16.msra.mxu0 %v2303
        %2313 = vmatmul.bf16.gmra.mxu0 %v2300
        %v2314 = vpop.f32.mrf.mxu0
        %v2315 = vadd.f32 0.0, %v2314
        %v2316 = vpop.f32.mrf.mxu0
        %2317 = vdwg.mxu0
        %2318 = vrot.lane.b32.xlu0 %v2150, 116
        %v2319 = vpop.permute.xlu0 %2318
        %2320 = vrot.lane.b32.xlu0 %v2151, 116
        %v2321 = vpop.permute.xlu0 %2320
        %v2323 = vsel %vm1806, %v2319, 0
        %v2326 = vsel %vm1806, %v2321, 0
        %2328 = vmatpush.bf16.xpose.msra.mxu0 0
        %2329 = vmatpush.bf16.xpose.msra.mxu0 0
        %2330 = vmatpush.bf16.xpose.msra.mxu0 0
        %2331 = vmatpush.bf16.xpose.msra.mxu0 0
        %2332 = vmatpush.bf16.xpose.msra.mxu0 0
        %2333 = vmatpush.bf16.xpose.msra.mxu0 0
        %2334 = vmatpush.bf16.xpose.msra.mxu0 0
        %2335 = vmatpush.bf16.xpose.msra.mxu0 %v2326
        %2336 = vmatmul.bf16.gmra.mxu0 %v2323
        %v2337 = vpop.f32.mrf.mxu0
        %v2338 = vadd.f32 %v943, %v2337
        %v2339 = vpop.f32.mrf.mxu0
        %2340 = vdwg.mxu0
        %v2341 = vsel %vm1019, %v2338, -inf
        %2342 = vmax.xlane.f32.xlu0 %v2341
        %v2343 = vpop.xlane.xlu0 %2342
        %v2344 = vsub.f32 %v2338, %v2343
        %v2345 = vmul.f32 %v2344, 1.442695
        %v2346 = vpow.pop %v2345
        %v2347 = vsel %vm1019, %v2346, 0.0
        %2348 = vadd.xlane.f32.xlu0 %v2347
        %v2349 = vpop.xlane.xlu0 %2348
        %v2350 = vrcp.pop %v2349
        %v2351 = vmul.f32 %v2346, %v2350
        %v2352 = vpack.c.bf16 %v2351, %v2351
        %2353 = vrot.lane.b32.xlu0 %v2151, 100
        %v2354 = vpop.permute.xlu0 %2353
        %v2356 = vsel %vm1019, %v2352, 0
        %v2359 = vsel %vm1056, %v2354, 0
        %2361 = vmatpush.bf16.msra.mxu0 0
        %2362 = vmatpush.bf16.msra.mxu0 0
        %2363 = vmatpush.bf16.msra.mxu0 0
        %2364 = vmatpush.bf16.msra.mxu0 0
        %2365 = vmatpush.bf16.msra.mxu0 0
        %2366 = vmatpush.bf16.msra.mxu0 0
        %2367 = vmatpush.bf16.msra.mxu0 0
        %2368 = vmatpush.bf16.msra.mxu0 %v2359
        %2369 = vmatmul.bf16.gmra.mxu0 %v2356
        %v2370 = vpop.f32.mrf.mxu0
        %v2371 = vadd.f32 0.0, %v2370
        %v2372 = vpop.f32.mrf.mxu0
        %2373 = vdwg.mxu0
        %2375 = vrot.lane.b32.xlu0 %v2259, 4
        %v2376 = vpop.permute.xlu0 %2375
        %2379 = vrot.lane.b32.xlu0 %v2315, 8
        %v2380 = vpop.permute.xlu0 %2379
        %2383 = vrot.lane.b32.xlu0 %v2371, 12
        %v2384 = vpop.permute.xlu0 %2383
        %v2386 = vsel %vm1806, %v2202, %v2376
        %v2387 = vsel %vm1019, %v2386, %v2380
        %v2388 = vsel %vm2043, %v2387, %v2384
        %v2389 = vpack.c.bf16 %v2388, %v2388
        %s2390 = scalar_lea.vmem [#allocation2], 16
        %v2391 = vld [vmem:[%s2390] sm:$0xff]
        %v2392 = vld [vmem:[%s2390 + $0x8] sm:$0xff]
        %v2393 = vpack.c.bf16 %v2392, %v2391
        %s2394 = scalar_lea.vmem %s17, 1
        %v2395 = vld [vmem:[%s2394] sm:$0x1]
        %v2397 = vperm.slane %v2395, 0
        %v2400 = vsel %vm1255, %v2389, 0
        %2402 = vmatpush.bf16.msra.mxu0 0
        %2403 = vmatpush.bf16.msra.mxu0 0
        %2404 = vmatpush.bf16.msra.mxu0 0
        %2405 = vmatpush.bf16.msra.mxu0 0
        %2406 = vmatpush.bf16.msra.mxu0 0
        %2407 = vmatpush.bf16.msra.mxu0 0
        %2408 = vmatpush.bf16.msra.mxu0 0
        %2409 = vmatpush.bf16.msra.mxu0 %v2393
        %2410 = vmatmul.bf16.gmra.mxu0 %v2400
        %v2411 = vpop.f32.mrf.mxu0
        %v2412 = vadd.f32 %v2397, %v2411
        %v2413 = vpop.f32.mrf.mxu0
        %2414 = vdwg.mxu0
        %v2415 = vmul.f32 %v2412, %v2412
        %v2416 = vmul.f32 %v2412, %v2415
        %v2417 = vmul.f32 %v2416, 0.044715
        %v2418 = vadd.f32 %v2412, %v2417
        %v2419 = vmul.f32 %v2418, 0.7978846
        %v2420 = vtanh.pop %v2419
        %v2421 = vadd.f32 %v2420, 1.0
        %v2422 = vmul.f32 %v2421, 0.5
        %v2423 = vmul.f32 %v2412, %v2422
        %v2424 = vpack.c.bf16 %v2423, %v2423
        %s2425 = scalar_lea.vmem [#allocation4], 16
        %v2426 = vld [vmem:[%s2425] sm:$0xff]
        %v2427 = vld [vmem:[%s2425 + $0x8] sm:$0xff]
        %v2428 = vpack.c.bf16 %v2427, %v2426
        %s2429 = scalar_lea.vmem %s19, 1
        %v2430 = vld [vmem:[%s2429] sm:$0x1]
        %v2432 = vperm.slane %v2430, 0
        %v2435 = vsel %vm1255, %v2424, 0
        %2437 = vmatpush.bf16.msra.mxu0 0
        %2438 = vmatpush.bf16.msra.mxu0 0
        %2439 = vmatpush.bf16.msra.mxu0 0
        %2440 = vmatpush.bf16.msra.mxu0 0
        %2441 = vmatpush.bf16.msra.mxu0 0
        %2442 = vmatpush.bf16.msra.mxu0 0
        %2443 = vmatpush.bf16.msra.mxu0 0
        %2444 = vmatpush.bf16.msra.mxu0 %v2428
        %2445 = vmatmul.bf16.gmra.mxu0 %v2435
        %v2446 = vpop.f32.mrf.mxu0
        %v2447 = vadd.f32 %v2432, %v2446
        %v2448 = vpop.f32.mrf.mxu0
        %2449 = vdwg.mxu0
        %2451 = vrot.lane.b32.xlu0 %v2447, 32
        %v2452 = vpop.permute.xlu0 %2451
        %v2454 = vadd.f32 %v1636, %v2452
        %2455 = vrot.lane.b32.xlu0 %v2104, 32
        %v2456 = vpop.permute.xlu0 %2455
        %v2458 = vadd.f32 %v2454, %v2456
        %v2459 = vsel %vm952, %v2106, 0.0
        %2460 = vadd.xlane.f32.xlu0 %v2459
        %v2461 = vpop.xlane.xlu0 %2460
        %v2462 = vmul.f32 %v2461, %v962
        %v2463 = vsub.f32 %v2106, %v2462
        %v2464 = vmul.f32 %v2463, %v2463
        %v2465 = vsel %vm952, %v2464, 0.0
        %2466 = vadd.xlane.f32.xlu0 %v2465
        %v2467 = vpop.xlane.xlu0 %2466
        %v2468 = vmul.f32 %v2467, %v962
        %v2469 = vadd.f32 %v2468, 1e-05
        %v2470 = vrsqrt.pop %v2469
        %v2471 = vmul.f32 %v2470, %v2469
        %v2472 = vmul.f32 %v2471, %v2470
        %v2473 = vmul.f32 0.5, %v2472
        %v2474 = vsub.f32 1.5, %v2473
        %v2475 = vmul.f32 %v2470, %v2474
        %vm2476 = vweird.f32 %v2469
        %vm2477 = vweird.f32 %v2470
        %vm2478 = vmor %vm2476, %vm2477
        %v2479 = vsel %vm2478, %v2470, %v2475
        %v2480 = vmul.f32 %v2463, %v2479
        %v2481 = vperm.slane %v949, 0
        %v2482 = vmul.f32 %v2480, %v2481
        %v2483 = vperm.slane %v950, 0
        %v2484 = vadd.f32 %v2482, %v2483
        %v2485 = vpack.c.bf16 %v2484, %v2484
        %v2486 = vld [vmem:[%s20] sm:$0xff]
        %v2487 = vld [vmem:[%s20 + $0x8] sm:$0xff]
        %v2488 = vld [vmem:[%s20 + $0x10] sm:$0xff]
        %v2489 = vld [vmem:[%s20 + $0x18] sm:$0xff]
        %v2490 = vpack.c.bf16 %v2487, %v2486
        %v2491 = vpack.c.bf16 %v2489, %v2488
        %v2492 = vld [vmem:[%s21] sm:$0x1]
        %v2494 = vperm.slane %v2492, 0
        %v2497 = vsel %vm952, %v2485, 0
        %2499 = vmatpush.bf16.msra.mxu0 0
        %2500 = vmatpush.bf16.msra.mxu0 0
        %2501 = vmatpush.bf16.msra.mxu0 0
        %2502 = vmatpush.bf16.msra.mxu0 0
        %2503 = vmatpush.bf16.msra.mxu0 0
        %2504 = vmatpush.bf16.msra.mxu0 0
        %2505 = vmatpush.bf16.msra.mxu0 %v2491
        %2506 = vmatpush.bf16.msra.mxu0 %v2490
        %2507 = vmatmul.bf16.gmra.mxu0 %v2497
        %v2508 = vpop.f32.mrf.mxu0
        %v2509 = vadd.f32 %v2494, %v2508
        %v2510 = vpop.f32.mrf.mxu0
        %2511 = vdwg.mxu0
        %v2512 = vmul.f32 %v2509, %v2509
        %v2513 = vmul.f32 %v2509, %v2512
        %v2514 = vmul.f32 %v2513, 0.044715
        %v2515 = vadd.f32 %v2509, %v2514
        %v2516 = vmul.f32 %v2515, 0.7978846
        %v2517 = vtanh.pop %v2516
        %v2518 = vadd.f32 %v2517, 1.0
        %v2519 = vmul.f32 %v2518, 0.5
        %v2520 = vmul.f32 %v2509, %v2519
        %v2521 = vpack.c.bf16 %v2520, %v2520
        %v2522 = vld [vmem:[%s22] sm:$0xff]
        %v2523 = vld [vmem:[%s22 + $0x8] sm:$0xff]
        %v2524 = vld [vmem:[%s22 + $0x10] sm:$0xff]
        %v2525 = vld [vmem:[%s22 + $0x18] sm:$0xff]
        %v2526 = vld [vmem:[%s22 + $0x20] sm:$0xff]
        %v2527 = vld [vmem:[%s22 + $0x28] sm:$0xff]
        %v2528 = vld [vmem:[%s22 + $0x30] sm:$0xff]
        %v2529 = vld [vmem:[%s22 + $0x38] sm:$0xff]
        %v2530 = vpack.c.bf16 %v2523, %v2522
        %v2531 = vpack.c.bf16 %v2525, %v2524
        %v2532 = vpack.c.bf16 %v2527, %v2526
        %v2533 = vpack.c.bf16 %v2529, %v2528
        %v2534 = vld [vmem:[%s23] sm:$0x1]
        %v2536 = vperm.slane %v2534, 0
        %vm2538 = vcmask 523264
        %v2540 = vsel %vm2538, %v2521, 0
        %2542 = vmatpush.bf16.msra.mxu0 0
        %2543 = vmatpush.bf16.msra.mxu0 0
        %2544 = vmatpush.bf16.msra.mxu0 0
        %2545 = vmatpush.bf16.msra.mxu0 0
        %2546 = vmatpush.bf16.msra.mxu0 %v2533
        %2547 = vmatpush.bf16.msra.mxu0 %v2532
        %2548 = vmatpush.bf16.msra.mxu0 %v2531
        %2549 = vmatpush.bf16.msra.mxu0 %v2530
        %2550 = vmatmul.bf16.gmra.mxu0 %v2540
        %v2551 = vpop.f32.mrf.mxu0
        %v2552 = vadd.f32 %v2536, %v2551
        %v2553 = vpop.f32.mrf.mxu0
        %2554 = vdwg.mxu0
        %v2555 = vadd.f32 %v2106, %v2552
        %v2556 = vpack.c.bf16 %v2555, %v2555
        %v2557 = vld [vmem:[%s24] sm:$0xff]
        %v2558 = vld [vmem:[%s24 + $0x8] sm:$0xff]
        %v2559 = vld [vmem:[%s24 + $0x10] sm:$0xff]
        %v2560 = vld [vmem:[%s24 + $0x18] sm:$0xff]
        %v2561 = vpack.c.bf16 %v2558, %v2557
        %v2562 = vpack.c.bf16 %v2560, %v2559
        %v2563 = vld [vmem:[%s25] sm:$0x1]
        %v2565 = vperm.slane %v2563, 0
        %v2568 = vsel %vm952, %v2556, 0
        %2570 = vmatpush.bf16.msra.mxu0 0
        %2571 = vmatpush.bf16.msra.mxu0 0
        %2572 = vmatpush.bf16.msra.mxu0 0
        %2573 = vmatpush.bf16.msra.mxu0 0
        %2574 = vmatpush.bf16.msra.mxu0 0
        %2575 = vmatpush.bf16.msra.mxu0 0
        %2576 = vmatpush.bf16.msra.mxu0 %v2562
        %2577 = vmatpush.bf16.msra.mxu0 %v2561
        %2578 = vmatmul.bf16.gmra.mxu0 %v2568
        %v2579 = vpop.f32.mrf.mxu0
        %v2580 = vadd.f32 %v2565, %v2579
        %v2581 = vpop.f32.mrf.mxu0
        %2582 = vdwg.mxu0
        %2584 = vrot.lane.b32.xlu0 %v2458, 96
        %v2585 = vpop.permute.xlu0 %2584
        %v2587 = vsel %vm952, %v2585, 0.0
        %2588 = vadd.xlane.f32.xlu0 %v2587
        %v2589 = vpop.xlane.xlu0 %2588
        %v2590 = vmul.f32 %v2589, %v962
        %v2591 = vsub.f32 %v2458, %v2590
        %v2592 = vmul.f32 %v2591, %v2591
        %2594 = vrot.lane.b32.xlu0 %v2592, 96
        %v2595 = vpop.permute.xlu0 %2594
        %v2597 = vsel %vm952, %v2595, 0.0
        %2598 = vadd.xlane.f32.xlu0 %v2597
        %v2599 = vpop.xlane.xlu0 %2598
        %v2600 = vmul.f32 %v2599, %v962
        %v2601 = vadd.f32 %v2600, 1e-05
        %v2602 = vrsqrt.pop %v2601
        %v2603 = vmul.f32 %v2602, %v2601
        %v2604 = vmul.f32 %v2603, %v2602
        %v2605 = vmul.f32 0.5, %v2604
        %v2606 = vsub.f32 1.5, %v2605
        %v2607 = vmul.f32 %v2602, %v2606
        %vm2608 = vweird.f32 %v2601
        %vm2609 = vweird.f32 %v2602
        %vm2610 = vmor %vm2608, %vm2609
        %v2611 = vsel %vm2610, %v2602, %v2607
        %v2612 = vmul.f32 %v2591, %v2611
        %v2613 = vperm.slane %v949, 1
        %2615 = vrot.lane.b32.xlu0 %v2613, 32
        %v2616 = vpop.permute.xlu0 %2615
        %v2618 = vmul.f32 %v2612, %v2616
        %v2619 = vperm.slane %v950, 1
        %2621 = vrot.lane.b32.xlu0 %v2619, 32
        %v2622 = vpop.permute.xlu0 %2621
        %v2624 = vadd.f32 %v2618, %v2622
        %v2625 = vpack.c.bf16 %v2624, %v2624
        %s2626 = scalar_lea.vmem %s20, 32
        %v2627 = vld [vmem:[%s2626] sm:$0xff]
        %v2628 = vld [vmem:[%s2626 + $0x8] sm:$0xff]
        %v2629 = vld [vmem:[%s2626 + $0x10] sm:$0xff]
        %v2630 = vld [vmem:[%s2626 + $0x18] sm:$0xff]
        %v2631 = vpack.c.bf16 %v2628, %v2627
        %v2632 = vpack.c.bf16 %v2630, %v2629
        %s2633 = scalar_lea.vmem %s21, 1
        %v2634 = vld [vmem:[%s2633] sm:$0x1]
        %v2636 = vperm.slane %v2634, 0
        %2639 = vrot.lane.b32.xlu0 %v2625, 96
        %v2640 = vpop.permute.xlu0 %2639
        %v2642 = vsel %vm952, %v2640, 0
        %2644 = vmatpush.bf16.msra.mxu0 0
        %2645 = vmatpush.bf16.msra.mxu0 0
        %2646 = vmatpush.bf16.msra.mxu0 0
        %2647 = vmatpush.bf16.msra.mxu0 0
        %2648 = vmatpush.bf16.msra.mxu0 0
        %2649 = vmatpush.bf16.msra.mxu0 0
        %2650 = vmatpush.bf16.msra.mxu0 %v2632
        %2651 = vmatpush.bf16.msra.mxu0 %v2631
        %2652 = vmatmul.bf16.gmra.mxu0 %v2642
        %v2653 = vpop.f32.mrf.mxu0
        %v2654 = vadd.f32 %v2636, %v2653
        %v2655 = vpop.f32.mrf.mxu0
        %2656 = vdwg.mxu0
        %v2657 = vmul.f32 %v2654, %v2654
        %v2658 = vmul.f32 %v2654, %v2657
        %v2659 = vmul.f32 %v2658, 0.044715
        %v2660 = vadd.f32 %v2654, %v2659
        %v2661 = vmul.f32 %v2660, 0.7978846
        %v2662 = vtanh.pop %v2661
        %v2663 = vadd.f32 %v2662, 1.0
        %v2664 = vmul.f32 %v2663, 0.5
        %v2665 = vmul.f32 %v2654, %v2664
        %v2666 = vpack.c.bf16 %v2665, %v2665
        %s2667 = scalar_lea.vmem %s22, 64
        %v2668 = vld [vmem:[%s2667] sm:$0xff]
        %v2669 = vld [vmem:[%s2667 + $0x8] sm:$0xff]
        %v2670 = vld [vmem:[%s2667 + $0x10] sm:$0xff]
        %v2671 = vld [vmem:[%s2667 + $0x18] sm:$0xff]
        %v2672 = vld [vmem:[%s2667 + $0x20] sm:$0xff]
        %v2673 = vld [vmem:[%s2667 + $0x28] sm:$0xff]
        %v2674 = vld [vmem:[%s2667 + $0x30] sm:$0xff]
        %v2675 = vld [vmem:[%s2667 + $0x38] sm:$0xff]
        %v2676 = vpack.c.bf16 %v2669, %v2668
        %v2677 = vpack.c.bf16 %v2671, %v2670
        %v2678 = vpack.c.bf16 %v2673, %v2672
        %v2679 = vpack.c.bf16 %v2675, %v2674
        %s2680 = scalar_lea.vmem %s23, 1
        %v2681 = vld [vmem:[%s2680] sm:$0x1]
        %v2683 = vperm.slane %v2681, 0
        %v2686 = vsel %vm2538, %v2666, 0
        %2688 = vmatpush.bf16.msra.mxu0 0
        %2689 = vmatpush.bf16.msra.mxu0 0
        %2690 = vmatpush.bf16.msra.mxu0 0
        %2691 = vmatpush.bf16.msra.mxu0 0
        %2692 = vmatpush.bf16.msra.mxu0 %v2679
        %2693 = vmatpush.bf16.msra.mxu0 %v2678
        %2694 = vmatpush.bf16.msra.mxu0 %v2677
        %2695 = vmatpush.bf16.msra.mxu0 %v2676
        %2696 = vmatmul.bf16.gmra.mxu0 %v2686
        %v2697 = vpop.f32.mrf.mxu0
        %v2698 = vadd.f32 %v2683, %v2697
        %v2699 = vpop.f32.mrf.mxu0
        %2700 = vdwg.mxu0
        %2702 = vrot.lane.b32.xlu0 %v2698, 32
        %v2703 = vpop.permute.xlu0 %2702
        %v2705 = vadd.f32 %v2458, %v2703
        %v2706 = vpack.c.bf16 %v2705, %v2705
        %s2707 = scalar_lea.vmem %s24, 32
        %v2708 = vld [vmem:[%s2707] sm:$0xff]
        %v2709 = vld [vmem:[%s2707 + $0x8] sm:$0xff]
        %v2710 = vld [vmem:[%s2707 + $0x10] sm:$0xff]
        %v2711 = vld [vmem:[%s2707 + $0x18] sm:$0xff]
        %v2712 = vpack.c.bf16 %v2709, %v2708
        %v2713 = vpack.c.bf16 %v2711, %v2710
        %s2714 = scalar_lea.vmem %s25, 1
        %v2715 = vld [vmem:[%s2714] sm:$0x1]
        %v2717 = vperm.slane %v2715, 0
        %2720 = vrot.lane.b32.xlu0 %v2706, 96
        %v2721 = vpop.permute.xlu0 %2720
        %v2723 = vsel %vm952, %v2721, 0
        %2725 = vmatpush.bf16.msra.mxu0 0
        %2726 = vmatpush.bf16.msra.mxu0 0
        %2727 = vmatpush.bf16.msra.mxu0 0
        %2728 = vmatpush.bf16.msra.mxu0 0
        %2729 = vmatpush.bf16.msra.mxu0 0
        %2730 = vmatpush.bf16.msra.mxu0 0
        %2731 = vmatpush.bf16.msra.mxu0 %v2713
        %2732 = vmatpush.bf16.msra.mxu0 %v2712
        %2733 = vmatmul.bf16.gmra.mxu0 %v2723
        %v2734 = vpop.f32.mrf.mxu0
        %v2735 = vadd.f32 %v2717, %v2734
        %v2736 = vpop.f32.mrf.mxu0
        %2737 = vdwg.mxu0
        %2739 = vrot.lane.b32.xlu0 %v2735, 32
        %v2740 = vpop.permute.xlu0 %2739
        %v2742 = vsel %vm952, %v2580, %v2740
        %2743 = vst.msk [vmem:[%s936] sm:$0xff] %vm2538, %v2742
        %p2744 = scmp.lt.s32.totalorder %s39, 1
        %s2745 = scalar_select %p2744, %s39, 1
        %s2746 = smul.addr %s2745, 8
        %s2747 = scalar_lea.vmem %s26, %s2746
        // Predicated region
        $region133: #{temporal_model_forward.2} parent=123 // pred_check
          %p2748 = pneg %p643
        $region134: #{temporal_model_forward.2} parent=123 // pred_check_branch
          %2750 = sbr.rel (%p2748) target = $region136
        $region135: #{temporal_model_forward.2} parent=123 // pred_region
          _
        $region136: #{temporal_model_forward.2} parent=123 // pred_fallthru
          _
      $region124: #{temporal_model_forward.2} parent=5 // pred_fallthru
        _
      %p2751 = scmp.le.s32.totalorder 2, %s34
      // Predicated region
      $region137: #{temporal_model_forward.2} parent=5 // pred_check
        %p2752 = pneg %p2751
      $region138: #{temporal_model_forward.2} parent=5 // pred_check_branch
        %2754 = sbr.rel (%p2752) target = $region140
      $region139: #{temporal_model_forward.2} parent=5 // pred_region
        %s2755 = ssub.s32 %s34, 2
        // Predicated region
        $region141: #{temporal_model_forward.2} parent=139 // pred_check
          %p2756 = pneg %p649
        $region142: #{temporal_model_forward.2} parent=139 // pred_check_branch
          %2758 = sbr.rel (%p2756) target = $region144
        $region143: #{temporal_model_forward.2} parent=139 // pred_region
          %p2759 = scmp.lt.s32.totalorder %s40, 1
          %s2760 = scalar_select %p2759, %s40, 1
          %s2761 = smul.addr %s2760, 8
          %s2762 = scalar_lea.vmem %s26, %s2761
        $region144: #{temporal_model_forward.2} parent=139 // pred_fallthru
          _
      $region140: #{temporal_model_forward.2} parent=5 // pred_fallthru
        _
    $region6: #{temporal_model_forward.2} parent=1 // loop_footer
      %s38 = sadd.s32 1, %s34
    $region7: #{temporal_model_forward.2} parent=1 // loop_footer_branch
      %33 = sbr.rel target = $region3
    $region8: #{temporal_model_forward.2} parent=1 // loop_exit
      _
    %2763 = vsyncpa [#allocation3], 1
    %s2764 = scalar_lea.sflag [#allocation3], 1
    %2765 = vsyncpa %s2764, 1
    %2766 = vsyncpa [#allocation5], 1

</llo_original>
